<compile_context>
chip_gen: v7x
topology: tpu7x:2x2x1
jax: 0.10.0
libtpu: 0.0.40
codegen_flags: <defaults>
</compile_context>

<pallas_src>
import functools

import jax
import jax.numpy as jnp
from jax.experimental import pallas as pl
from jax.experimental.pallas import tpu as pltpu


# --------------------------------------------------------------------------- #
# Kernel
# --------------------------------------------------------------------------- #
def _residual_block_kernel(x_ref, w1_ref, b1_ref, w2_ref, b2_ref,
                           out_ref, xpad_ref):
    """One batch tile per grid step.

    x_ref    : (bt, H, W, Cp)      input tile (NHWC, f32) -- also the residual
    w*_ref   : (3, 3*Cp, Cp)       per-dy weights, BN scale folded, conv dtype;
                                   row index = dx*Cp + ci, col = co
    b*_ref   : (1, Cp)             folded BN bias (f32)
    out_ref  : (bt, H, W, Cp)      output tile (f32)
    xpad_ref : (bt, H+2, W+2, Cp)  conv-dtype VMEM scratch holding the
                                   zero-halo'd conv operand
    """
    bt, H, W, C = out_ref.shape
    Hp, Wp = xpad_ref.shape[1], xpad_ref.shape[2]
    pdt = xpad_ref.dtype

    # Zero only the 1-pixel halo strips (interior stores below never touch
    # them, so this stays valid for both convs and across grid steps).
    xpad_ref[:, 0:1, :, :] = jnp.zeros((bt, 1, Wp, C), pdt)
    xpad_ref[:, H + 1:H + 2, :, :] = jnp.zeros((bt, 1, Wp, C), pdt)
    xpad_ref[:, :, 0:1, :] = jnp.zeros((bt, Hp, 1, C), pdt)
    xpad_ref[:, :, W + 1:W + 2, :] = jnp.zeros((bt, Hp, 1, C), pdt)

    def conv3x3(a, w_ref):
        # Stage the operand with its zero halo in the conv dtype (single cast
        # on the store; no separate full-tensor astype pass).
        xpad_ref[:, 1:H + 1, 1:W + 1, :] = a.astype(pdt)
        xp = xpad_ref[...]
        parts = []
        for dy in range(3):
            # Pack the 3 dx taps into the contraction dim: K = 3*Cp fills the
            # 256-deep MXU; the sublane shifts for dx land on the XLU slot.
            op = jnp.concatenate(
                [xp[:, dy:dy + H, dx:dx + W, :] for dx in range(3)], axis=-1)
            parts.append(jnp.einsum('bhwk,kc->bhwc', op, w_ref[dy],
                                    preferred_element_type=jnp.float32))
        # Small balanced tree (3 terms) for the dy accumulation.
        return (parts[0] + parts[1]) + parts[2]

    x = x_ref[...]                                   # f32 residual path

    # conv1 (BN1 scale folded) -> +bias -> ReLU      (f32)
    h1 = jnp.maximum(conv3x3(x, w1_ref) + b1_ref[0], 0.0)

    # conv2 (BN2 scale folded) -> +bias -> +identity -> ReLU
    h2 = conv3x3(h1, w2_ref) + b2_ref[0]
    out_ref[...] = jnp.maximum(h2 + x, 0.0).astype(out_ref.dtype)


# --------------------------------------------------------------------------- #
# Host-side helpers
# --------------------------------------------------------------------------- #
def _round_up(x, m):
    return ((x + m - 1) // m) * m


def _vmem_capacity_bytes():
    try:
        return int(pltpu.get_tpu_info().vmem_capacity_bytes)
    except Exception:
        return 64 * 1024 * 1024   # conservative (v7x per-TC physical VMEM)


def _pick_batch_tile(n, h, w, cp, conv_itemsize, vmem_budget_bytes):
    """Largest divisor of n whose per-step working set fits the budget,
    capped so the parallel grid has >=2 steps (v7x dual TensorCores)."""
    act = 4
    xpad = (h + 2) * (w + 2) * cp * conv_itemsize       # padded-operand scratch
    io = 2 * 2 * h * w * cp * act                        # dbl-buffered in + out
    operand = h * w * 3 * cp * conv_itemsize             # one dy-group operand
    interm = 2 * h * w * cp * act                         # conv1 act + accumulator
    per = xpad + io + operand + interm
    bt = max(1, min(n, vmem_budget_bytes // max(per, 1)))
    if n >= 2:
        bt = min(bt, max(1, n // 2))
    while n % bt:
        bt -= 1
    return bt


def _fold_conv_weights(w_oihw, bn, eps, cp, conv_dtype):
    """OIHW (Co,Ci,3,3) + BN -> ((3, 3*Cp, Cp) scaled weights, (1, Cp) bias).

    Weight row index = dx*Cp + ci, column = co; BN scale folded in f32 before
    the conv-dtype cast (single rounding)."""
    gamma, beta, mean, var = bn['gamma'], bn['beta'], bn['mean'], bn['var']
    s = gamma / jnp.sqrt(var + eps)
    b = beta - mean * s
    co, ci, kh, kw = w_oihw.shape
    w = w_oihw.astype(jnp.float32) * s[:, None, None, None]     # fold scale
    w = jnp.transpose(w, (2, 3, 1, 0))                          # (kh, kw, ci, co)
    w = jnp.pad(w, ((0, 0), (0, 0), (0, cp - ci), (0, cp - co)))
    w = w.reshape(kh, kw * cp, cp).astype(conv_dtype)           # (3, 3*Cp, Cp)
    b = jnp.pad(b.astype(jnp.float32), (0, cp - co)).reshape(1, cp)
    return w, b


def residual_block_nhwc(x, w1, b1, w2, b2, *, conv_dtype=jnp.bfloat16):
    """x: (N,H,W,Cp) f32, Cp % 128 == 0; w*: (3,3*Cp,Cp); b*: (1,Cp) f32."""
    N, H, W, Cp = x.shape
    conv_itemsize = jnp.dtype(conv_dtype).itemsize

    vmem_cap = _vmem_capacity_bytes()
    vmem_limit = min(int(vmem_cap * 3 // 4), 100 * 1024 * 1024)
    bt = _pick_batch_tile(N, H, W, Cp, conv_itemsize, vmem_limit // 2)

    grid_spec = pltpu.PrefetchScalarGridSpec(
        num_scalar_prefetch=0,
        grid=(N // bt,),
        in_specs=[
            pl.BlockSpec((bt, H, W, Cp), lambda n: (n, 0, 0, 0)),
            pl.BlockSpec((3, 3 * Cp, Cp), lambda n: (0, 0, 0)),
            pl.BlockSpec((1, Cp), lambda n: (0, 0)),
            pl.BlockSpec((3, 3 * Cp, Cp), lambda n: (0, 0, 0)),
            pl.BlockSpec((1, Cp), lambda n: (0, 0)),
        ],
        out_specs=pl.BlockSpec((bt, H, W, Cp), lambda n: (n, 0, 0, 0)),
        scratch_shapes=[pltpu.VMEM((bt, H + 2, W + 2, Cp), conv_dtype)],
    )

    return pl.pallas_call(
        _residual_block_kernel,
        out_shape=jax.ShapeDtypeStruct((N, H, W, Cp), x.dtype),
        grid_spec=grid_spec,
        compiler_params=pltpu.CompilerParams(
            dimension_semantics=("parallel",),
            vmem_limit_bytes=vmem_limit),
    )(x, w1, b1, w2, b2)


@functools.partial(jax.jit, static_argnames=("conv_dtype",))
def residual_block_nchw(x_nchw, w1_oihw, bn1, w2_oihw, bn2, eps=1e-5, *,
                        conv_dtype=jnp.bfloat16):
    """PyTorch-convention entry point.

    NOTE: the NCHW<->NHWC transposes below cost a full extra HBM round trip of
    the activation; production callers should keep activations NHWC
    (channel-padded) and call residual_block_nhwc directly.
    """
    N, C, H, W = x_nchw.shape
    cp = _round_up(C, 128)

    x = jnp.transpose(x_nchw, (0, 2, 3, 1)).astype(jnp.float32)   # NHWC, f32
    x = jnp.pad(x, ((0, 0), (0, 0), (0, 0), (0, cp - C)))

    w1, b1 = _fold_conv_weights(w1_oihw, bn1, eps, cp, conv_dtype)
    w2, b2 = _fold_conv_weights(w2_oihw, bn2, eps, cp, conv_dtype)

    out = residual_block_nhwc(x, w1, b1, w2, b2, conv_dtype=conv_dtype)
    out = out[..., :C]
    return jnp.transpose(out, (0, 3, 1, 2))                       # back to NCHW


# --------------------------------------------------------------------------- #
# Plain-JAX reference (mirrors the kernel's quantization: BN scale folded into
# the weights in f32 before the conv-dtype cast; f32 accumulation / bias /
# residual / ReLU).
# --------------------------------------------------------------------------- #
def _reference_nchw(x, w1, bn1, w2, bn2, eps=1e-5, conv_dtype=jnp.float32):
    def fold(w, p):
        s = p['gamma'] / jnp.sqrt(p['var'] + eps)
        b = p['beta'] - p['mean'] * s
        return (w.astype(jnp.float32) * s[:, None, None, None]).astype(conv_dtype), b

    def conv(a, w):
        return jax.lax.conv_general_dilated(
            a.astype(conv_dtype), w,
            window_strides=(1, 1), padding=((1, 1), (1, 1)),
            dimension_numbers=('NCHW', 'OIHW', 'NCHW'),
            preferred_element_type=jnp.float32)

    w1f, b1 = fold(w1, bn1)
    w2f, b2 = fold(w2, bn2)
    out = jax.nn.relu(conv(x, w1f) + b1[None, :, None, None])
    out = conv(out, w2f) + b2[None, :, None, None]
    return jax.nn.relu(out + x)


if __name__ == "__main__":
    key = jax.random.PRNGKey(0)
    N, C, H, W = 2, 4, 16, 16

    ks = jax.random.split(key, 9)
    x = jax.random.normal(ks[0], (N, C, H, W), jnp.float32)
    w1 = jax.random.normal(ks[1], (C, C, 3, 3), jnp.float32) * 0.2
    w2 = jax.random.normal(ks[2], (C, C, 3, 3), jnp.float32) * 0.2
    bn1 = dict(
        gamma=1.0 + 0.1 * jax.random.normal(ks[3], (C,), jnp.float32),
        beta=0.1 * jax.random.normal(ks[4], (C,), jnp.float32),
        mean=0.1 * jax.random.normal(ks[5], (C,), jnp.float32),
        var=jnp.abs(jax.random.normal(ks[6], (C,), jnp.float32)) + 0.5,
    )
    bn2 = dict(
        gamma=1.0 + 0.1 * jax.random.normal(ks[7], (C,), jnp.float32),
        beta=0.1 * jax.random.normal(ks[8], (C,), jnp.float32),
        mean=jnp.zeros((C,), jnp.float32),
        var=jnp.ones((C,), jnp.float32),
    )

    # 1) f32 MXU path: tight check against the f32 lax.conv reference.
    out_f32 = jax.block_until_ready(
        residual_block_nchw(x, w1, bn1, w2, bn2, conv_dtype=jnp.float32))
    ref_f32 = _reference_nchw(x, w1, bn1, w2, bn2, conv_dtype=jnp.float32)
    assert out_f32.shape == (N, C, H, W)
    assert jnp.allclose(out_f32, ref_f32, atol=1e-3, rtol=1e-3), \
        "f32 kernel mismatch vs f32 reference"

    # 2) Default bf16 MXU path (v6e/v7x): check against the matching
    #    mixed-precision reference (bf16 conv operands/weights, f32 elsewhere).
    out_bf16 = jax.block_until_ready(residual_block_nchw(x, w1, bn1, w2, bn2))
    ref_bf16 = _reference_nchw(x, w1, bn1, w2, bn2, conv_dtype=jnp.bfloat16)
    assert out_bf16.shape == (N, C, H, W)
    assert jnp.allclose(out_bf16, ref_bf16, atol=2e-3, rtol=2e-3), \
        "bf16 kernel mismatch vs mixed-precision reference"

    print("KERNEL_OK")
</pallas_src>

<mosaic_0001>
module attributes {stable_mosaic.version = 11 : i64} {
  func.func @_residual_block_kernel(%arg0: i32, %arg1: memref<1x16x16x128xf32, #tpu.memory_space<vmem>>, %arg2: memref<3x384x128xf32, #tpu.memory_space<vmem>>, %arg3: memref<1x128xf32, #tpu.memory_space<vmem>>, %arg4: memref<3x384x128xf32, #tpu.memory_space<vmem>>, %arg5: memref<1x128xf32, #tpu.memory_space<vmem>>, %arg6: memref<1x16x16x128xf32, #tpu.memory_space<vmem>>, %arg7: memref<1x18x18x128xf32, #tpu.memory_space<vmem>>) attributes {dimension_semantics = [#tpu.dimension_semantics<parallel>], iteration_bounds = array<i64: 2>, scalar_prefetch = 0 : i64, scratch_operands = 1 : i64, tpu.core_type = #tpu.core_type<tc>, window_params = [{transform_indices = @transform_0, window_bounds = array<i64: 1, 16, 16, 128>}, {pipeline_mode = #tpu.pipeline_mode<synchronous>, transform_indices = @transform_1, window_bounds = array<i64: 3, 384, 128>}, {pipeline_mode = #tpu.pipeline_mode<synchronous>, transform_indices = @transform_2, window_bounds = array<i64: 1, 128>}, {pipeline_mode = #tpu.pipeline_mode<synchronous>, transform_indices = @transform_3, window_bounds = array<i64: 3, 384, 128>}, {pipeline_mode = #tpu.pipeline_mode<synchronous>, transform_indices = @transform_4, window_bounds = array<i64: 1, 128>}, {transform_indices = @transform_5, window_bounds = array<i64: 1, 16, 16, 128>}]} {
    %cst = arith.constant 0.000000e+00 : f32
    %0 = vector.broadcast %cst : f32 to vector<1x1x18x128xf32>
    %c0 = arith.constant 0 : index
    %c0_0 = arith.constant 0 : index
    %c0_1 = arith.constant 0 : index
    %c0_2 = arith.constant 0 : index
    %1 = vector.load %arg7[%c0, %c0_0, %c0_1, %c0_2] : memref<1x18x18x128xf32, #tpu.memory_space<vmem>>, vector<1x1x18x128xf32>
    tpu.vector_store %arg7[%c0, %c0_0, %c0_1, %c0_2], %0 {strides = array<i32>} : memref<1x18x18x128xf32, #tpu.memory_space<vmem>>, vector<1x1x18x128xf32>,
    %cst_3 = arith.constant 0.000000e+00 : f32
    %2 = vector.broadcast %cst_3 : f32 to vector<1x1x18x128xf32>
    %c0_4 = arith.constant 0 : index
    %c17 = arith.constant 17 : index
    %c0_5 = arith.constant 0 : index
    %c0_6 = arith.constant 0 : index
    %3 = vector.load %arg7[%c0_4, %c17, %c0_5, %c0_6] : memref<1x18x18x128xf32, #tpu.memory_space<vmem>>, vector<1x1x18x128xf32>
    tpu.vector_store %arg7[%c0_4, %c17, %c0_5, %c0_6], %2 {strides = array<i32>} : memref<1x18x18x128xf32, #tpu.memory_space<vmem>>, vector<1x1x18x128xf32>,
    %cst_7 = arith.constant 0.000000e+00 : f32
    %4 = vector.broadcast %cst_7 : f32 to vector<1x18x1x128xf32>
    %c0_8 = arith.constant 0 : index
    %c0_9 = arith.constant 0 : index
    %c0_10 = arith.constant 0 : index
    %c0_11 = arith.constant 0 : index
    %5 = vector.load %arg7[%c0_8, %c0_9, %c0_10, %c0_11] : memref<1x18x18x128xf32, #tpu.memory_space<vmem>>, vector<1x18x1x128xf32>
    tpu.vector_store %arg7[%c0_8, %c0_9, %c0_10, %c0_11], %4 {strides = array<i32>} : memref<1x18x18x128xf32, #tpu.memory_space<vmem>>, vector<1x18x1x128xf32>,
    %cst_12 = arith.constant 0.000000e+00 : f32
    %6 = vector.broadcast %cst_12 : f32 to vector<1x18x1x128xf32>
    %c0_13 = arith.constant 0 : index
    %c0_14 = arith.constant 0 : index
    %c17_15 = arith.constant 17 : index
    %c0_16 = arith.constant 0 : index
    %7 = vector.load %arg7[%c0_13, %c0_14, %c17_15, %c0_16] : memref<1x18x18x128xf32, #tpu.memory_space<vmem>>, vector<1x18x1x128xf32>
    tpu.vector_store %arg7[%c0_13, %c0_14, %c17_15, %c0_16], %6 {strides = array<i32>} : memref<1x18x18x128xf32, #tpu.memory_space<vmem>>, vector<1x18x1x128xf32>,
    %c0_17 = arith.constant 0 : index
    %c0_18 = arith.constant 0 : index
    %c0_19 = arith.constant 0 : index
    %c0_20 = arith.constant 0 : index
    %8 = vector.load %arg1[%c0_17, %c0_18, %c0_19, %c0_20] : memref<1x16x16x128xf32, #tpu.memory_space<vmem>>, vector<1x16x16x128xf32>
    %c0_21 = arith.constant 0 : index
    %c1 = arith.constant 1 : index
    %c1_22 = arith.constant 1 : index
    %c0_23 = arith.constant 0 : index
    %9 = vector.load %arg7[%c0_21, %c1, %c1_22, %c0_23] : memref<1x18x18x128xf32, #tpu.memory_space<vmem>>, vector<1x16x16x128xf32>
    tpu.vector_store %arg7[%c0_21, %c1, %c1_22, %c0_23], %8 {strides = array<i32>} : memref<1x18x18x128xf32, #tpu.memory_space<vmem>>, vector<1x16x16x128xf32>,
    %c0_24 = arith.constant 0 : index
    %c0_25 = arith.constant 0 : index
    %c0_26 = arith.constant 0 : index
    %c0_27 = arith.constant 0 : index
    %10 = vector.load %arg7[%c0_24, %c0_25, %c0_26, %c0_27] : memref<1x18x18x128xf32, #tpu.memory_space<vmem>>, vector<1x18x18x128xf32>
    %11 = vector.extract_strided_slice %10 {offsets = [0, 0, 0, 0], sizes = [1, 16, 16, 128], strides = [1, 1, 1, 1]} : vector<1x18x18x128xf32> to vector<1x16x16x128xf32>
    %12 = vector.extract_strided_slice %10 {offsets = [0, 0, 1, 0], sizes = [1, 16, 16, 128], strides = [1, 1, 1, 1]} : vector<1x18x18x128xf32> to vector<1x16x16x128xf32>
    %13 = vector.extract_strided_slice %10 {offsets = [0, 0, 2, 0], sizes = [1, 16, 16, 128], strides = [1, 1, 1, 1]} : vector<1x18x18x128xf32> to vector<1x16x16x128xf32>
    %14 = tpu.concatenate %11, %12, %13 in 3 : vector<1x16x16x128xf32>, vector<1x16x16x128xf32>, vector<1x16x16x128xf32> -> vector<1x16x16x384xf32>
    %c0_28 = arith.constant 0 : index
    %c0_29 = arith.constant 0 : index
    %c0_30 = arith.constant 0 : index
    %15 = vector.load %arg2[%c0_28, %c0_29, %c0_30] : memref<3x384x128xf32, #tpu.memory_space<vmem>>, vector<1x384x128xf32>
    %16 = vector.shape_cast %15 : vector<1x384x128xf32> to vector<384x128xf32>
    "tpu.trace_start"() <{level = 10 : i32, message = "bhwk,kc->bhwc"}> : () -> ()
    %cst_31 = arith.constant dense<0.000000e+00> : vector<1x16x16x128xf32>
    %17 = tpu.matmul %14, %16, %cst_31 {dimension_numbers = #tpu.dot_dimension_numbers<[3], [0], [0, 1, 2], [1], [0, 0, 0, 1, 0, 2, 1, 1], [], []>} : vector<1x16x16x384xf32>, vector<384x128xf32>, vector<1x16x16x128xf32> -> vector<1x16x16x128xf32>
    "tpu.trace_stop"() : () -> ()
    %18 = vector.extract_strided_slice %10 {offsets = [0, 1, 0, 0], sizes = [1, 16, 16, 128], strides = [1, 1, 1, 1]} : vector<1x18x18x128xf32> to vector<1x16x16x128xf32>
    %19 = vector.extract_strided_slice %10 {offsets = [0, 1, 1, 0], sizes = [1, 16, 16, 128], strides = [1, 1, 1, 1]} : vector<1x18x18x128xf32> to vector<1x16x16x128xf32>
    %20 = vector.extract_strided_slice %10 {offsets = [0, 1, 2, 0], sizes = [1, 16, 16, 128], strides = [1, 1, 1, 1]} : vector<1x18x18x128xf32> to vector<1x16x16x128xf32>
    %21 = tpu.concatenate %18, %19, %20 in 3 : vector<1x16x16x128xf32>, vector<1x16x16x128xf32>, vector<1x16x16x128xf32> -> vector<1x16x16x384xf32>
    %c1_32 = arith.constant 1 : index
    %c0_33 = arith.constant 0 : index
    %c0_34 = arith.constant 0 : index
    %22 = vector.load %arg2[%c1_32, %c0_33, %c0_34] : memref<3x384x128xf32, #tpu.memory_space<vmem>>, vector<1x384x128xf32>
    %23 = vector.shape_cast %22 : vector<1x384x128xf32> to vector<384x128xf32>
    "tpu.trace_start"() <{level = 10 : i32, message = "bhwk,kc->bhwc"}> : () -> ()
    %cst_35 = arith.constant dense<0.000000e+00> : vector<1x16x16x128xf32>
    %24 = tpu.matmul %21, %23, %cst_35 {dimension_numbers = #tpu.dot_dimension_numbers<[3], [0], [0, 1, 2], [1], [0, 0, 0, 1, 0, 2, 1, 1], [], []>} : vector<1x16x16x384xf32>, vector<384x128xf32>, vector<1x16x16x128xf32> -> vector<1x16x16x128xf32>
    "tpu.trace_stop"() : () -> ()
    %25 = vector.extract_strided_slice %10 {offsets = [0, 2, 0, 0], sizes = [1, 16, 16, 128], strides = [1, 1, 1, 1]} : vector<1x18x18x128xf32> to vector<1x16x16x128xf32>
    %26 = vector.extract_strided_slice %10 {offsets = [0, 2, 1, 0], sizes = [1, 16, 16, 128], strides = [1, 1, 1, 1]} : vector<1x18x18x128xf32> to vector<1x16x16x128xf32>
    %27 = vector.extract_strided_slice %10 {offsets = [0, 2, 2, 0], sizes = [1, 16, 16, 128], strides = [1, 1, 1, 1]} : vector<1x18x18x128xf32> to vector<1x16x16x128xf32>
    %28 = tpu.concatenate %25, %26, %27 in 3 : vector<1x16x16x128xf32>, vector<1x16x16x128xf32>, vector<1x16x16x128xf32> -> vector<1x16x16x384xf32>
    %c2 = arith.constant 2 : index
    %c0_36 = arith.constant 0 : index
    %c0_37 = arith.constant 0 : index
    %29 = vector.load %arg2[%c2, %c0_36, %c0_37] : memref<3x384x128xf32, #tpu.memory_space<vmem>>, vector<1x384x128xf32>
    %30 = vector.shape_cast %29 : vector<1x384x128xf32> to vector<384x128xf32>
    "tpu.trace_start"() <{level = 10 : i32, message = "bhwk,kc->bhwc"}> : () -> ()
    %cst_38 = arith.constant dense<0.000000e+00> : vector<1x16x16x128xf32>
    %31 = tpu.matmul %28, %30, %cst_38 {dimension_numbers = #tpu.dot_dimension_numbers<[3], [0], [0, 1, 2], [1], [0, 0, 0, 1, 0, 2, 1, 1], [], []>} : vector<1x16x16x384xf32>, vector<384x128xf32>, vector<1x16x16x128xf32> -> vector<1x16x16x128xf32>
    "tpu.trace_stop"() : () -> ()
    %32 = arith.addf %17, %24 : vector<1x16x16x128xf32>
    %33 = arith.addf %32, %31 : vector<1x16x16x128xf32>
    %c0_39 = arith.constant 0 : index
    %c0_40 = arith.constant 0 : index
    %34 = vector.load %arg3[%c0_39, %c0_40] : memref<1x128xf32, #tpu.memory_space<vmem>>, vector<1x128xf32>
    %35 = vector.shape_cast %34 : vector<1x128xf32> to vector<128xf32>
    %36 = vector.shape_cast %35 : vector<128xf32> to vector<1x1x1x128xf32>
    %37 = vector.broadcast %36 : vector<1x1x1x128xf32> to vector<1x16x16x128xf32>
    %38 = arith.addf %33, %37 : vector<1x16x16x128xf32>
    %cst_41 = arith.constant 0.000000e+00 : f32
    %39 = vector.broadcast %cst_41 : f32 to vector<1x16x16x128xf32>
    %40 = arith.maximumf %38, %39 : vector<1x16x16x128xf32>
    %c0_42 = arith.constant 0 : index
    %c1_43 = arith.constant 1 : index
    %c1_44 = arith.constant 1 : index
    %c0_45 = arith.constant 0 : index
    %41 = vector.load %arg7[%c0_42, %c1_43, %c1_44, %c0_45] : memref<1x18x18x128xf32, #tpu.memory_space<vmem>>, vector<1x16x16x128xf32>
    tpu.vector_store %arg7[%c0_42, %c1_43, %c1_44, %c0_45], %40 {strides = array<i32>} : memref<1x18x18x128xf32, #tpu.memory_space<vmem>>, vector<1x16x16x128xf32>,
    %c0_46 = arith.constant 0 : index
    %c0_47 = arith.constant 0 : index
    %c0_48 = arith.constant 0 : index
    %c0_49 = arith.constant 0 : index
    %42 = vector.load %arg7[%c0_46, %c0_47, %c0_48, %c0_49] : memref<1x18x18x128xf32, #tpu.memory_space<vmem>>, vector<1x18x18x128xf32>
    %43 = vector.extract_strided_slice %42 {offsets = [0, 0, 0, 0], sizes = [1, 16, 16, 128], strides = [1, 1, 1, 1]} : vector<1x18x18x128xf32> to vector<1x16x16x128xf32>
    %44 = vector.extract_strided_slice %42 {offsets = [0, 0, 1, 0], sizes = [1, 16, 16, 128], strides = [1, 1, 1, 1]} : vector<1x18x18x128xf32> to vector<1x16x16x128xf32>
    %45 = vector.extract_strided_slice %42 {offsets = [0, 0, 2, 0], sizes = [1, 16, 16, 128], strides = [1, 1, 1, 1]} : vector<1x18x18x128xf32> to vector<1x16x16x128xf32>
    %46 = tpu.concatenate %43, %44, %45 in 3 : vector<1x16x16x128xf32>, vector<1x16x16x128xf32>, vector<1x16x16x128xf32> -> vector<1x16x16x384xf32>
    %c0_50 = arith.constant 0 : index
    %c0_51 = arith.constant 0 : index
    %c0_52 = arith.constant 0 : index
    %47 = vector.load %arg4[%c0_50, %c0_51, %c0_52] : memref<3x384x128xf32, #tpu.memory_space<vmem>>, vector<1x384x128xf32>
    %48 = vector.shape_cast %47 : vector<1x384x128xf32> to vector<384x128xf32>
    "tpu.trace_start"() <{level = 10 : i32, message = "bhwk,kc->bhwc"}> : () -> ()
    %cst_53 = arith.constant dense<0.000000e+00> : vector<1x16x16x128xf32>
    %49 = tpu.matmul %46, %48, %cst_53 {dimension_numbers = #tpu.dot_dimension_numbers<[3], [0], [0, 1, 2], [1], [0, 0, 0, 1, 0, 2, 1, 1], [], []>} : vector<1x16x16x384xf32>, vector<384x128xf32>, vector<1x16x16x128xf32> -> vector<1x16x16x128xf32>
    "tpu.trace_stop"() : () -> ()
    %50 = vector.extract_strided_slice %42 {offsets = [0, 1, 0, 0], sizes = [1, 16, 16, 128], strides = [1, 1, 1, 1]} : vector<1x18x18x128xf32> to vector<1x16x16x128xf32>
    %51 = vector.extract_strided_slice %42 {offsets = [0, 1, 1, 0], sizes = [1, 16, 16, 128], strides = [1, 1, 1, 1]} : vector<1x18x18x128xf32> to vector<1x16x16x128xf32>
    %52 = vector.extract_strided_slice %42 {offsets = [0, 1, 2, 0], sizes = [1, 16, 16, 128], strides = [1, 1, 1, 1]} : vector<1x18x18x128xf32> to vector<1x16x16x128xf32>
    %53 = tpu.concatenate %50, %51, %52 in 3 : vector<1x16x16x128xf32>, vector<1x16x16x128xf32>, vector<1x16x16x128xf32> -> vector<1x16x16x384xf32>
    %c1_54 = arith.constant 1 : index
    %c0_55 = arith.constant 0 : index
    %c0_56 = arith.constant 0 : index
    %54 = vector.load %arg4[%c1_54, %c0_55, %c0_56] : memref<3x384x128xf32, #tpu.memory_space<vmem>>, vector<1x384x128xf32>
    %55 = vector.shape_cast %54 : vector<1x384x128xf32> to vector<384x128xf32>
    "tpu.trace_start"() <{level = 10 : i32, message = "bhwk,kc->bhwc"}> : () -> ()
    %cst_57 = arith.constant dense<0.000000e+00> : vector<1x16x16x128xf32>
    %56 = tpu.matmul %53, %55, %cst_57 {dimension_numbers = #tpu.dot_dimension_numbers<[3], [0], [0, 1, 2], [1], [0, 0, 0, 1, 0, 2, 1, 1], [], []>} : vector<1x16x16x384xf32>, vector<384x128xf32>, vector<1x16x16x128xf32> -> vector<1x16x16x128xf32>
    "tpu.trace_stop"() : () -> ()
    %57 = vector.extract_strided_slice %42 {offsets = [0, 2, 0, 0], sizes = [1, 16, 16, 128], strides = [1, 1, 1, 1]} : vector<1x18x18x128xf32> to vector<1x16x16x128xf32>
    %58 = vector.extract_strided_slice %42 {offsets = [0, 2, 1, 0], sizes = [1, 16, 16, 128], strides = [1, 1, 1, 1]} : vector<1x18x18x128xf32> to vector<1x16x16x128xf32>
    %59 = vector.extract_strided_slice %42 {offsets = [0, 2, 2, 0], sizes = [1, 16, 16, 128], strides = [1, 1, 1, 1]} : vector<1x18x18x128xf32> to vector<1x16x16x128xf32>
    %60 = tpu.concatenate %57, %58, %59 in 3 : vector<1x16x16x128xf32>, vector<1x16x16x128xf32>, vector<1x16x16x128xf32> -> vector<1x16x16x384xf32>
    %c2_58 = arith.constant 2 : index
    %c0_59 = arith.constant 0 : index
    %c0_60 = arith.constant 0 : index
    %61 = vector.load %arg4[%c2_58, %c0_59, %c0_60] : memref<3x384x128xf32, #tpu.memory_space<vmem>>, vector<1x384x128xf32>
    %62 = vector.shape_cast %61 : vector<1x384x128xf32> to vector<384x128xf32>
    "tpu.trace_start"() <{level = 10 : i32, message = "bhwk,kc->bhwc"}> : () -> ()
    %cst_61 = arith.constant dense<0.000000e+00> : vector<1x16x16x128xf32>
    %63 = tpu.matmul %60, %62, %cst_61 {dimension_numbers = #tpu.dot_dimension_numbers<[3], [0], [0, 1, 2], [1], [0, 0, 0, 1, 0, 2, 1, 1], [], []>} : vector<1x16x16x384xf32>, vector<384x128xf32>, vector<1x16x16x128xf32> -> vector<1x16x16x128xf32>
    "tpu.trace_stop"() : () -> ()
    %64 = arith.addf %49, %56 : vector<1x16x16x128xf32>
    %65 = arith.addf %64, %63 : vector<1x16x16x128xf32>
    %c0_62 = arith.constant 0 : index
    %c0_63 = arith.constant 0 : index
    %66 = vector.load %arg5[%c0_62, %c0_63] : memref<1x128xf32, #tpu.memory_space<vmem>>, vector<1x128xf32>
    %67 = vector.shape_cast %66 : vector<1x128xf32> to vector<128xf32>
    %68 = vector.shape_cast %67 : vector<128xf32> to vector<1x1x1x128xf32>
    %69 = vector.broadcast %68 : vector<1x1x1x128xf32> to vector<1x16x16x128xf32>
    %70 = arith.addf %65, %69 : vector<1x16x16x128xf32>
    %71 = arith.addf %70, %8 : vector<1x16x16x128xf32>
    %cst_64 = arith.constant 0.000000e+00 : f32
    %72 = vector.broadcast %cst_64 : f32 to vector<1x16x16x128xf32>
    %73 = arith.maximumf %71, %72 : vector<1x16x16x128xf32>
    %c0_65 = arith.constant 0 : index
    %c0_66 = arith.constant 0 : index
    %c0_67 = arith.constant 0 : index
    %c0_68 = arith.constant 0 : index
    %74 = vector.load %arg6[%c0_65, %c0_66, %c0_67, %c0_68] : memref<1x16x16x128xf32, #tpu.memory_space<vmem>>, vector<1x16x16x128xf32>
    tpu.vector_store %arg6[%c0_65, %c0_66, %c0_67, %c0_68], %73 {strides = array<i32>} : memref<1x16x16x128xf32, #tpu.memory_space<vmem>>, vector<1x16x16x128xf32>,
    return
  }
  func.func @transform_0(%arg0: i32) -> (i32, i32, i32, i32) {
    %c0_i32 = arith.constant 0 : i32
    %c0_i32_0 = arith.constant 0 : i32
    %c0_i32_1 = arith.constant 0 : i32
    %c0_i32_2 = arith.constant 0 : i32
    return %arg0, %c0_i32, %c0_i32_0, %c0_i32_1 : i32, i32, i32, i32
  }
  func.func @transform_1(%arg0: i32) -> (i32, i32, i32) {
    %c0_i32 = arith.constant 0 : i32
    %c0_i32_0 = arith.constant 0 : i32
    %c0_i32_1 = arith.constant 0 : i32
    %c0_i32_2 = arith.constant 0 : i32
    return %c0_i32, %c0_i32_0, %c0_i32_1 : i32, i32, i32
  }
  func.func @transform_2(%arg0: i32) -> (i32, i32) {
    %c0_i32 = arith.constant 0 : i32
    %c0_i32_0 = arith.constant 0 : i32
    %c0_i32_1 = arith.constant 0 : i32
    return %c0_i32, %c0_i32_0 : i32, i32
  }
  func.func @transform_3(%arg0: i32) -> (i32, i32, i32) {
    %c0_i32 = arith.constant 0 : i32
    %c0_i32_0 = arith.constant 0 : i32
    %c0_i32_1 = arith.constant 0 : i32
    %c0_i32_2 = arith.constant 0 : i32
    return %c0_i32, %c0_i32_0, %c0_i32_1 : i32, i32, i32
  }
  func.func @transform_4(%arg0: i32) -> (i32, i32) {
    %c0_i32 = arith.constant 0 : i32
    %c0_i32_0 = arith.constant 0 : i32
    %c0_i32_1 = arith.constant 0 : i32
    return %c0_i32, %c0_i32_0 : i32, i32
  }
  func.func @transform_5(%arg0: i32) -> (i32, i32, i32, i32) {
    %c0_i32 = arith.constant 0 : i32
    %c0_i32_0 = arith.constant 0 : i32
    %c0_i32_1 = arith.constant 0 : i32
    %c0_i32_2 = arith.constant 0 : i32
    return %arg0, %c0_i32, %c0_i32_0, %c0_i32_1 : i32, i32, i32, i32
  }
}

</mosaic_0001>

<llo_original>
// kernel: residual_block_nchw.1
$region0: #{residual_block_nchw.1}
  #allocation0 [shape = 'u32[]', space=smem, size = 0x4, offset = 0x4, fixed_abs, tag = 'smem constant byte address 0x4 - core index']
  #allocation1 [shape = 'u32[144,128]{1,0:T(1,128)}', space=vmem, size = 0x12000, scoped, tag = 'internal scratch']
  #allocation2 [shape = 'f32[1,18,18,128]{3,2,1,0:T(8,128)}', space=vmem, size = 0x36000, scoped, tag = 'scratch operand']
  %s0 = inlined_call_operand.vmem [shape: f32[2,16,16,128], index: 0, kind: input, shape index: {}]
  %s1 = inlined_call_operand.vmem [shape: f32[3,384,128], index: 1, kind: input, shape index: {}]
  %s2 = inlined_call_operand.vmem [shape: f32[1,128], index: 2, kind: input, shape index: {}]
  %s3 = inlined_call_operand.vmem [shape: f32[3,384,128], index: 3, kind: input, shape index: {}]
  %s4 = inlined_call_operand.vmem [shape: f32[1,128], index: 4, kind: input, shape index: {}]
  %s5 = inlined_call_operand.vmem [shape: f32[2,16,16,128], index: 5, kind: output, shape index: {}]
  %s6 = sld [smem:[#allocation0]]
  $region53: #{residual_block_nchw.1} parent=0
    _
  %s8 = ssub.s32 1, %s6
  %s9 = scalar_select 0, %s8, %s6
  loop: start=0, step=1, limit=4
  $region2: #{residual_block_nchw.1} parent=0 // loop_pre_header
    _
  $region3: #{residual_block_nchw.1} parent=0 // loop_header
    %s11 = sphi 0, %s15
    %p12 = scmp.ge.s32.totalorder %s11, 4
    %s21 = sphi 0, %s23
    %s24 = sphi 0, %s21
    %s25 = sphi 0, %s24
    %s41 = sphi 0, %s25
    %s45 = sphi 0, %s45
    %s47 = sphi 0, %s45
    %s48 = sphi 0, %s47
    %s62 = sphi 0, %s48
    %s66 = sphi 0, %s66
    %s68 = sphi 0, %s66
    %s69 = sphi 0, %s68
    %s83 = sphi 0, %s69
    %s87 = sphi 0, %s87
    %s89 = sphi 0, %s87
    %s90 = sphi 0, %s89
    %s104 = sphi 0, %s90
    %s108 = sphi 0, %s108
    %s110 = sphi 0, %s108
    %s111 = sphi 0, %s110
    %s125 = sphi 0, %s111
    %s131 = sphi 0, %s133
    %s134 = sphi 0, %s131
    %s135 = sphi 0, %s134
    %s151 = sphi 0, %s135
  $region4: #{residual_block_nchw.1} parent=0 // loop_header_branch
    %14 = sbr.rel (%p12) target = $region8
  $region5: #{residual_block_nchw.1} parent=0 // loop_body
    %s16 = ssub.s32 %s11, 1
    %s17 = ssub.s32 %s11, 2
    %s18 = sadd.s32 %s11, 1
    %s19 = ssub.s32 %s11, %s18
    %p20 = scmp.eq.s32.totalorder %s19, 0
    %s22 = sadd.s32 %s21, 1
    %s23 = scalar_select %p20, %s21, %s22
    %p26 = pneg %p20
    %p27 = scmp.eq.s32.totalorder %s11, 1
    %p28 = por %p26, %p27
    %p29 = scmp.ne.s32.totalorder %s21, %s24
    %p30 = scmp.eq.s32.totalorder %s11, 0
    %p31 = por %p29, %p30
    %p32 = scmp.ne.s32.totalorder %s21, %s24
    %p33 = scmp.eq.s32.totalorder %s16, 1
    %p34 = por %p32, %p33
    %p35 = scmp.ne.s32.totalorder %s24, %s25
    %p36 = scmp.eq.s32.totalorder %s16, 0
    %p37 = por %p35, %p36
    %p38 = scmp.ne.s32.totalorder %s24, %s25
    %p39 = scmp.eq.s32.totalorder %s17, 1
    %p40 = por %p38, %p39
    %p42 = scmp.ne.s32.totalorder %s25, %s41
    %p43 = scmp.eq.s32.totalorder %s17, 0
    %p44 = por %p42, %p43
    %s46 = sadd.s32 %s45, 1
    %p49 = scmp.eq.s32.totalorder %s11, 1
    %p50 = scmp.ne.s32.totalorder %s45, %s47
    %p51 = scmp.eq.s32.totalorder %s11, 0
    %p52 = por %p50, %p51
    %p53 = scmp.ne.s32.totalorder %s45, %s47
    %p54 = scmp.eq.s32.totalorder %s16, 1
    %p55 = por %p53, %p54
    %p56 = scmp.ne.s32.totalorder %s47, %s48
    %p57 = scmp.eq.s32.totalorder %s16, 0
    %p58 = por %p56, %p57
    %p59 = scmp.ne.s32.totalorder %s47, %s48
    %p60 = scmp.eq.s32.totalorder %s17, 1
    %p61 = por %p59, %p60
    %p63 = scmp.ne.s32.totalorder %s48, %s62
    %p64 = scmp.eq.s32.totalorder %s17, 0
    %p65 = por %p63, %p64
    %s67 = sadd.s32 %s66, 1
    %p70 = scmp.eq.s32.totalorder %s11, 1
    %p71 = scmp.ne.s32.totalorder %s66, %s68
    %p72 = scmp.eq.s32.totalorder %s11, 0
    %p73 = por %p71, %p72
    %p74 = scmp.ne.s32.totalorder %s66, %s68
    %p75 = scmp.eq.s32.totalorder %s16, 1
    %p76 = por %p74, %p75
    %p77 = scmp.ne.s32.totalorder %s68, %s69
    %p78 = scmp.eq.s32.totalorder %s16, 0
    %p79 = por %p77, %p78
    %p80 = scmp.ne.s32.totalorder %s68, %s69
    %p81 = scmp.eq.s32.totalorder %s17, 1
    %p82 = por %p80, %p81
    %p84 = scmp.ne.s32.totalorder %s69, %s83
    %p85 = scmp.eq.s32.totalorder %s17, 0
    %p86 = por %p84, %p85
    %s88 = sadd.s32 %s87, 1
    %p91 = scmp.eq.s32.totalorder %s11, 1
    %p92 = scmp.ne.s32.totalorder %s87, %s89
    %p93 = scmp.eq.s32.totalorder %s11, 0
    %p94 = por %p92, %p93
    %p95 = scmp.ne.s32.totalorder %s87, %s89
    %p96 = scmp.eq.s32.totalorder %s16, 1
    %p97 = por %p95, %p96
    %p98 = scmp.ne.s32.totalorder %s89, %s90
    %p99 = scmp.eq.s32.totalorder %s16, 0
    %p100 = por %p98, %p99
    %p101 = scmp.ne.s32.totalorder %s89, %s90
    %p102 = scmp.eq.s32.totalorder %s17, 1
    %p103 = por %p101, %p102
    %p105 = scmp.ne.s32.totalorder %s90, %s104
    %p106 = scmp.eq.s32.totalorder %s17, 0
    %p107 = por %p105, %p106
    %s109 = sadd.s32 %s108, 1
    %p112 = scmp.eq.s32.totalorder %s11, 1
    %p113 = scmp.ne.s32.totalorder %s108, %s110
    %p114 = scmp.eq.s32.totalorder %s11, 0
    %p115 = por %p113, %p114
    %p116 = scmp.ne.s32.totalorder %s108, %s110
    %p117 = scmp.eq.s32.totalorder %s16, 1
    %p118 = por %p116, %p117
    %p119 = scmp.ne.s32.totalorder %s110, %s111
    %p120 = scmp.eq.s32.totalorder %s16, 0
    %p121 = por %p119, %p120
    %p122 = scmp.ne.s32.totalorder %s110, %s111
    %p123 = scmp.eq.s32.totalorder %s17, 1
    %p124 = por %p122, %p123
    %p126 = scmp.ne.s32.totalorder %s111, %s125
    %p127 = scmp.eq.s32.totalorder %s17, 0
    %p128 = por %p126, %p127
    %s129 = ssub.s32 %s11, %s18
    %p130 = scmp.eq.s32.totalorder %s129, 0
    %s132 = sadd.s32 %s131, 1
    %s133 = scalar_select %p130, %s131, %s132
    %p136 = pneg %p130
    %p137 = scmp.eq.s32.totalorder %s11, 1
    %p138 = por %p136, %p137
    %p139 = scmp.ne.s32.totalorder %s131, %s134
    %p140 = scmp.eq.s32.totalorder %s11, 0
    %p141 = por %p139, %p140
    %p142 = scmp.ne.s32.totalorder %s131, %s134
    %p143 = scmp.eq.s32.totalorder %s16, 1
    %p144 = por %p142, %p143
    %p145 = scmp.ne.s32.totalorder %s134, %s135
    %p146 = scmp.eq.s32.totalorder %s16, 0
    %p147 = por %p145, %p146
    %p148 = scmp.ne.s32.totalorder %s134, %s135
    %p149 = scmp.eq.s32.totalorder %s17, 1
    %p150 = por %p148, %p149
    %p152 = scmp.ne.s32.totalorder %s135, %s151
    %p153 = scmp.eq.s32.totalorder %s17, 0
    %p154 = por %p152, %p153
    %p155 = scmp.le.s32.totalorder 1, %s11
    %p156 = scmp.lt.s32.totalorder %s11, 3
    %p157 = pnand %p155, %p156
    %p158 = pneg %p157
    // Predicated region
    $region9: #{residual_block_nchw.1} parent=5 // pred_check
      _
    $region10: #{residual_block_nchw.1} parent=5 // pred_check_branch
      %160 = sbr.rel (%p157) target = $region12
    $region11: #{residual_block_nchw.1} parent=5 // pred_region
      %s161 = ssub.s32 %s11, 1
      // Predicated region
      $region13: #{residual_block_nchw.1} parent=11 // pred_check
        %p162 = pneg %p58
      $region14: #{residual_block_nchw.1} parent=11 // pred_check_branch
        %164 = sbr.rel (%p162) target = $region16
      $region15: #{residual_block_nchw.1} parent=11 // pred_region
        _
      $region16: #{residual_block_nchw.1} parent=11 // pred_fallthru
        _
      // Predicated region
      $region17: #{residual_block_nchw.1} parent=11 // pred_check
        %p165 = pneg %p79
      $region18: #{residual_block_nchw.1} parent=11 // pred_check_branch
        %167 = sbr.rel (%p165) target = $region20
      $region19: #{residual_block_nchw.1} parent=11 // pred_region
        _
      $region20: #{residual_block_nchw.1} parent=11 // pred_fallthru
        _
      // Predicated region
      $region21: #{residual_block_nchw.1} parent=11 // pred_check
        %p168 = pneg %p100
      $region22: #{residual_block_nchw.1} parent=11 // pred_check_branch
        %170 = sbr.rel (%p168) target = $region24
      $region23: #{residual_block_nchw.1} parent=11 // pred_region
        _
      $region24: #{residual_block_nchw.1} parent=11 // pred_fallthru
        _
      // Predicated region
      $region25: #{residual_block_nchw.1} parent=11 // pred_check
        %p171 = pneg %p121
      $region26: #{residual_block_nchw.1} parent=11 // pred_check_branch
        %173 = sbr.rel (%p171) target = $region28
      $region27: #{residual_block_nchw.1} parent=11 // pred_region
        _
      $region28: #{residual_block_nchw.1} parent=11 // pred_fallthru
        _
    $region12: #{residual_block_nchw.1} parent=5 // pred_fallthru
      _
    %p174 = scmp.lt.s32.totalorder %s11, 2
    // Predicated region
    $region29: #{residual_block_nchw.1} parent=5 // pred_check
      %p175 = pneg %p174
    $region30: #{residual_block_nchw.1} parent=5 // pred_check_branch
      %177 = sbr.rel (%p175) target = $region32
    $region31: #{residual_block_nchw.1} parent=5 // pred_region
      // Predicated region
      $region33: #{residual_block_nchw.1} parent=31 // pred_check
        %p178 = pneg %p31
      $region34: #{residual_block_nchw.1} parent=31 // pred_check_branch
        %180 = sbr.rel (%p178) target = $region36
      $region35: #{residual_block_nchw.1} parent=31 // pred_region
        %p181 = scmp.lt.s32.totalorder %s11, 1
        %s182 = scalar_select %p181, %s11, 1
        %s183 = smul.addr %s182, 32
        %s184 = smul.addr %s183, 8
        %s185 = scalar_lea.vmem %s0, %s184
      $region36: #{residual_block_nchw.1} parent=31 // pred_fallthru
        _
    $region32: #{residual_block_nchw.1} parent=5 // pred_fallthru
      _
    %p186 = scmp.le.s32.totalorder 1, %s11
    %p187 = scmp.lt.s32.totalorder %s11, 3
    %p188 = pnand %p186, %p187
    %p189 = pneg %p188
    // Predicated region
    $region37: #{residual_block_nchw.1} parent=5 // pred_check
      _
    $region38: #{residual_block_nchw.1} parent=5 // pred_check_branch
      %191 = sbr.rel (%p188) target = $region40
    $region39: #{residual_block_nchw.1} parent=5 // pred_region
      %s192 = ssub.s32 %s11, 1
      %p193 = scmp.lt.s32.totalorder %s16, 1
      %s194 = scalar_select %p193, %s16, 1
      %s195 = smul.addr %s194, 32
      %s196 = smul.addr %s195, 8
      %s197 = scalar_lea.vmem %s0, %s196
      %p198 = pneg %p37
      %p199 = pneg %p34
      %p200 = pneg %p58
      %p201 = pneg %p55
      %p202 = pneg %p79
      %p203 = pneg %p76
      %p204 = pneg %p100
      %p205 = pneg %p97
      %p206 = pneg %p121
      %p207 = pneg %p118
      %p208 = pneg %p147
      %p209 = pneg %p144
      %p210 = scmp.lt.s32.totalorder %s16, 1
      %s211 = scalar_select %p210, %s16, 1
      %s212 = smul.addr %s211, 32
      %s213 = smul.addr %s212, 8
      %s214 = scalar_lea.vmem %s5, %s213
      %p215 = scmp.lt.s32.totalorder %s16, 1
      %s216 = scalar_select %p215, %s16, 1
      %s217 = smul.addr %s216, 32
      %s218 = smul.addr %s217, 8
      %s219 = scalar_lea.vmem %s0, %s218
      %p220 = scmp.lt.s32.totalorder %s16, 1
      %s221 = scalar_select %p220, %s16, 1
      %s222 = smul.addr %s221, 32
      %s223 = smul.addr %s222, 8
      %s224 = scalar_lea.vmem %s5, %s223
      %225 = vst [vmem:[#allocation2] sm:$0xff] 0.0
      %226 = vst [vmem:[#allocation2 + $0x8] sm:$0xff] 0.0
      %227 = vst [vmem:[#allocation2 + $0x10] sm:$0x3] 0.0
      %s228 = scalar_lea.vmem [#allocation2], 408
      %229 = vst [vmem:[%s228] sm:$0xff] 0.0
      %230 = vst [vmem:[%s228 + $0x8] sm:$0xff] 0.0
      %231 = vst [vmem:[%s228 + $0x10] sm:$0x3] 0.0
      %232 = vst [vmem:[#allocation2] sm:$0x1] 0.0
      %233 = vst [vmem:[#allocation2 + $0x18] sm:$0x1] 0.0
      %234 = vst [vmem:[#allocation2 + $0x30] sm:$0x1] 0.0
      %235 = vst [vmem:[#allocation2 + $0x48] sm:$0x1] 0.0
      %236 = vst [vmem:[#allocation2 + $0x60] sm:$0x1] 0.0
      %237 = vst [vmem:[#allocation2 + $0x78] sm:$0x1] 0.0
      %238 = vst [vmem:[#allocation2 + $0x90] sm:$0x1] 0.0
      %239 = vst [vmem:[#allocation2 + $0xa8] sm:$0x1] 0.0
      %240 = vst [vmem:[#allocation2 + $0xc0] sm:$0x1] 0.0
      %241 = vst [vmem:[#allocation2 + $0xd8] sm:$0x1] 0.0
      %242 = vst [vmem:[#allocation2 + $0xf0] sm:$0x1] 0.0
      %243 = vst [vmem:[#allocation2 + $0x108] sm:$0x1] 0.0
      %244 = vst [vmem:[#allocation2 + $0x120] sm:$0x1] 0.0
      %245 = vst [vmem:[#allocation2 + $0x138] sm:$0x1] 0.0
      %246 = vst [vmem:[#allocation2 + $0x150] sm:$0x1] 0.0
      %247 = vst [vmem:[#allocation2 + $0x168] sm:$0x1] 0.0
      %248 = vst [vmem:[#allocation2 + $0x180] sm:$0x1] 0.0
      %249 = vst [vmem:[#allocation2 + $0x198] sm:$0x1] 0.0
      %250 = vst [vmem:[#allocation2 + $0x11] sm:$0x1] 0.0
      %251 = vst [vmem:[#allocation2 + $0x29] sm:$0x1] 0.0
      %252 = vst [vmem:[#allocation2 + $0x41] sm:$0x1] 0.0
      %253 = vst [vmem:[#allocation2 + $0x59] sm:$0x1] 0.0
      %254 = vst [vmem:[#allocation2 + $0x71] sm:$0x1] 0.0
      %255 = vst [vmem:[#allocation2 + $0x89] sm:$0x1] 0.0
      %256 = vst [vmem:[#allocation2 + $0xa1] sm:$0x1] 0.0
      %257 = vst [vmem:[#allocation2 + $0xb9] sm:$0x1] 0.0
      %258 = vst [vmem:[#allocation2 + $0xd1] sm:$0x1] 0.0
      %259 = vst [vmem:[#allocation2 + $0xe9] sm:$0x1] 0.0
      %260 = vst [vmem:[#allocation2 + $0x101] sm:$0x1] 0.0
      %261 = vst [vmem:[#allocation2 + $0x119] sm:$0x1] 0.0
      %262 = vst [vmem:[#allocation2 + $0x131] sm:$0x1] 0.0
      %263 = vst [vmem:[#allocation2 + $0x149] sm:$0x1] 0.0
      %264 = vst [vmem:[#allocation2 + $0x161] sm:$0x1] 0.0
      %265 = vst [vmem:[#allocation2 + $0x179] sm:$0x1] 0.0
      %266 = vst [vmem:[#allocation2 + $0x191] sm:$0x1] 0.0
      %267 = vst [vmem:[#allocation2 + $0x1a9] sm:$0x1] 0.0
      %v268 = vld [vmem:[%s219] sm:$0xff]
      %v269 = vld [vmem:[%s219 + $0x8] sm:$0xff]
      %v270 = vld [vmem:[%s219 + $0x10] sm:$0xff]
      %v271 = vld [vmem:[%s219 + $0x18] sm:$0xff]
      %v272 = vld [vmem:[%s219 + $0x20] sm:$0xff]
      %v273 = vld [vmem:[%s219 + $0x28] sm:$0xff]
      %v274 = vld [vmem:[%s219 + $0x30] sm:$0xff]
      %v275 = vld [vmem:[%s219 + $0x38] sm:$0xff]
      %v276 = vld [vmem:[%s219 + $0x40] sm:$0xff]
      %v277 = vld [vmem:[%s219 + $0x48] sm:$0xff]
      %v278 = vld [vmem:[%s219 + $0x50] sm:$0xff]
      %v279 = vld [vmem:[%s219 + $0x58] sm:$0xff]
      %v280 = vld [vmem:[%s219 + $0x60] sm:$0xff]
      %v281 = vld [vmem:[%s219 + $0x68] sm:$0xff]
      %v282 = vld [vmem:[%s219 + $0x70] sm:$0xff]
      %v283 = vld [vmem:[%s219 + $0x78] sm:$0xff]
      %v284 = vld [vmem:[%s219 + $0x80] sm:$0xff]
      %v285 = vld [vmem:[%s219 + $0x88] sm:$0xff]
      %v286 = vld [vmem:[%s219 + $0x90] sm:$0xff]
      %v287 = vld [vmem:[%s219 + $0x98] sm:$0xff]
      %v288 = vld [vmem:[%s219 + $0xa0] sm:$0xff]
      %v289 = vld [vmem:[%s219 + $0xa8] sm:$0xff]
      %v290 = vld [vmem:[%s219 + $0xb0] sm:$0xff]
      %v291 = vld [vmem:[%s219 + $0xb8] sm:$0xff]
      %v292 = vld [vmem:[%s219 + $0xc0] sm:$0xff]
      %v293 = vld [vmem:[%s219 + $0xc8] sm:$0xff]
      %v294 = vld [vmem:[%s219 + $0xd0] sm:$0xff]
      %v295 = vld [vmem:[%s219 + $0xd8] sm:$0xff]
      %v296 = vld [vmem:[%s219 + $0xe0] sm:$0xff]
      %v297 = vld [vmem:[%s219 + $0xe8] sm:$0xff]
      %v298 = vld [vmem:[%s219 + $0xf0] sm:$0xff]
      %v299 = vld [vmem:[%s219 + $0xf8] sm:$0xff]
      %s300 = scalar_lea.vmem [#allocation2], 24
      %301 = vst [vmem:[%s300 + $0x1] sm:$0xff] %v268
      %302 = vst [vmem:[%s300 + $0x9] sm:$0xff] %v269
      %303 = vst [vmem:[%s300 + $0x19] sm:$0xff] %v270
      %304 = vst [vmem:[%s300 + $0x21] sm:$0xff] %v271
      %305 = vst [vmem:[%s300 + $0x31] sm:$0xff] %v272
      %306 = vst [vmem:[%s300 + $0x39] sm:$0xff] %v273
      %307 = vst [vmem:[%s300 + $0x49] sm:$0xff] %v274
      %308 = vst [vmem:[%s300 + $0x51] sm:$0xff] %v275
      %309 = vst [vmem:[%s300 + $0x61] sm:$0xff] %v276
      %310 = vst [vmem:[%s300 + $0x69] sm:$0xff] %v277
      %311 = vst [vmem:[%s300 + $0x79] sm:$0xff] %v278
      %312 = vst [vmem:[%s300 + $0x81] sm:$0xff] %v279
      %313 = vst [vmem:[%s300 + $0x91] sm:$0xff] %v280
      %314 = vst [vmem:[%s300 + $0x99] sm:$0xff] %v281
      %315 = vst [vmem:[%s300 + $0xa9] sm:$0xff] %v282
      %316 = vst [vmem:[%s300 + $0xb1] sm:$0xff] %v283
      %317 = vst [vmem:[%s300 + $0xc1] sm:$0xff] %v284
      %318 = vst [vmem:[%s300 + $0xc9] sm:$0xff] %v285
      %319 = vst [vmem:[%s300 + $0xd9] sm:$0xff] %v286
      %320 = vst [vmem:[%s300 + $0xe1] sm:$0xff] %v287
      %321 = vst [vmem:[%s300 + $0xf1] sm:$0xff] %v288
      %322 = vst [vmem:[%s300 + $0xf9] sm:$0xff] %v289
      %323 = vst [vmem:[%s300 + $0x109] sm:$0xff] %v290
      %324 = vst [vmem:[%s300 + $0x111] sm:$0xff] %v291
      %325 = vst [vmem:[%s300 + $0x121] sm:$0xff] %v292
      %326 = vst [vmem:[%s300 + $0x129] sm:$0xff] %v293
      %327 = vst [vmem:[%s300 + $0x139] sm:$0xff] %v294
      %328 = vst [vmem:[%s300 + $0x141] sm:$0xff] %v295
      %329 = vst [vmem:[%s300 + $0x151] sm:$0xff] %v296
      %330 = vst [vmem:[%s300 + $0x159] sm:$0xff] %v297
      %331 = vst [vmem:[%s300 + $0x169] sm:$0xff] %v298
      %332 = vst [vmem:[%s300 + $0x171] sm:$0xff] %v299
      %v333 = vld [vmem:[#allocation2] sm:$0xff]
      %v334 = vld [vmem:[#allocation2 + $0x8] sm:$0xff]
      %v335 = vld [vmem:[#allocation2 + $0x10] sm:$0x3]
      %v336 = vld [vmem:[#allocation2 + $0x18] sm:$0xff]
      %v337 = vld [vmem:[#allocation2 + $0x20] sm:$0xff]
      %v338 = vld [vmem:[#allocation2 + $0x28] sm:$0x3]
      %v339 = vld [vmem:[#allocation2 + $0x30] sm:$0xff]
      %v340 = vld [vmem:[#allocation2 + $0x38] sm:$0xff]
      %v341 = vld [vmem:[#allocation2 + $0x40] sm:$0x3]
      %v342 = vld [vmem:[#allocation2 + $0x48] sm:$0xff]
      %v343 = vld [vmem:[#allocation2 + $0x50] sm:$0xff]
      %v344 = vld [vmem:[#allocation2 + $0x58] sm:$0x3]
      %v345 = vld [vmem:[#allocation2 + $0x60] sm:$0xff]
      %v346 = vld [vmem:[#allocation2 + $0x68] sm:$0xff]
      %v347 = vld [vmem:[#allocation2 + $0x70] sm:$0x3]
      %v348 = vld [vmem:[#allocation2 + $0x78] sm:$0xff]
      %v349 = vld [vmem:[#allocation2 + $0x80] sm:$0xff]
      %v350 = vld [vmem:[#allocation2 + $0x88] sm:$0x3]
      %v351 = vld [vmem:[#allocation2 + $0x90] sm:$0xff]
      %v352 = vld [vmem:[#allocation2 + $0x98] sm:$0xff]
      %v353 = vld [vmem:[#allocation2 + $0xa0] sm:$0x3]
      %v354 = vld [vmem:[#allocation2 + $0xa8] sm:$0xff]
      %v355 = vld [vmem:[#allocation2 + $0xb0] sm:$0xff]
      %v356 = vld [vmem:[#allocation2 + $0xb8] sm:$0x3]
      %v357 = vld [vmem:[#allocation2 + $0xc0] sm:$0xff]
      %v358 = vld [vmem:[#allocation2 + $0xc8] sm:$0xff]
      %v359 = vld [vmem:[#allocation2 + $0xd0] sm:$0x3]
      %v360 = vld [vmem:[#allocation2 + $0xd8] sm:$0xff]
      %v361 = vld [vmem:[#allocation2 + $0xe0] sm:$0xff]
      %v362 = vld [vmem:[#allocation2 + $0xe8] sm:$0x3]
      %v363 = vld [vmem:[#allocation2 + $0xf0] sm:$0xff]
      %v364 = vld [vmem:[#allocation2 + $0xf8] sm:$0xff]
      %v365 = vld [vmem:[#allocation2 + $0x100] sm:$0x3]
      %v366 = vld [vmem:[#allocation2 + $0x108] sm:$0xff]
      %v367 = vld [vmem:[#allocation2 + $0x110] sm:$0xff]
      %v368 = vld [vmem:[#allocation2 + $0x118] sm:$0x3]
      %v369 = vld [vmem:[#allocation2 + $0x120] sm:$0xff]
      %v370 = vld [vmem:[#allocation2 + $0x128] sm:$0xff]
      %v371 = vld [vmem:[#allocation2 + $0x130] sm:$0x3]
      %v372 = vld [vmem:[#allocation2 + $0x138] sm:$0xff]
      %v373 = vld [vmem:[#allocation2 + $0x140] sm:$0xff]
      %v374 = vld [vmem:[#allocation2 + $0x148] sm:$0x3]
      %v375 = vld [vmem:[#allocation2 + $0x150] sm:$0xff]
      %v376 = vld [vmem:[#allocation2 + $0x158] sm:$0xff]
      %v377 = vld [vmem:[#allocation2 + $0x160] sm:$0x3]
      %v378 = vld [vmem:[#allocation2 + $0x168] sm:$0xff]
      %v379 = vld [vmem:[#allocation2 + $0x170] sm:$0xff]
      %v380 = vld [vmem:[#allocation2 + $0x178] sm:$0x3]
      %v381 = vld [vmem:[#allocation2 + $0x180] sm:$0xff]
      %v382 = vld [vmem:[#allocation2 + $0x188] sm:$0xff]
      %v383 = vld [vmem:[#allocation2 + $0x190] sm:$0x3]
      %v384 = vld [vmem:[#allocation2 + $0x198] sm:$0xff]
      %v385 = vld [vmem:[#allocation2 + $0x1a0] sm:$0xff]
      %v386 = vld [vmem:[#allocation2 + $0x1a8] sm:$0x3]
      %vm435 = vcmask 1046528
      %v436 = vrot.slane %v333, 1
      %v437 = vrot.slane %v334, 1
      %v438 = vsel %vm435, %v436, %v437
      %v439 = vrot.slane %v335, 1
      %v440 = vsel %vm435, %v437, %v439
      %v441 = vrot.slane %v336, 1
      %v442 = vrot.slane %v337, 1
      %v443 = vsel %vm435, %v441, %v442
      %v444 = vrot.slane %v338, 1
      %v445 = vsel %vm435, %v442, %v444
      %v446 = vrot.slane %v339, 1
      %v447 = vrot.slane %v340, 1
      %v448 = vsel %vm435, %v446, %v447
      %v449 = vrot.slane %v341, 1
      %v450 = vsel %vm435, %v447, %v449
      %v451 = vrot.slane %v342, 1
      %v452 = vrot.slane %v343, 1
      %v453 = vsel %vm435, %v451, %v452
      %v454 = vrot.slane %v344, 1
      %v455 = vsel %vm435, %v452, %v454
      %v456 = vrot.slane %v345, 1
      %v457 = vrot.slane %v346, 1
      %v458 = vsel %vm435, %v456, %v457
      %v459 = vrot.slane %v347, 1
      %v460 = vsel %vm435, %v457, %v459
      %v461 = vrot.slane %v348, 1
      %v462 = vrot.slane %v349, 1
      %v463 = vsel %vm435, %v461, %v462
      %v464 = vrot.slane %v350, 1
      %v465 = vsel %vm435, %v462, %v464
      %v466 = vrot.slane %v351, 1
      %v467 = vrot.slane %v352, 1
      %v468 = vsel %vm435, %v466, %v467
      %v469 = vrot.slane %v353, 1
      %v470 = vsel %vm435, %v467, %v469
      %v471 = vrot.slane %v354, 1
      %v472 = vrot.slane %v355, 1
      %v473 = vsel %vm435, %v471, %v472
      %v474 = vrot.slane %v356, 1
      %v475 = vsel %vm435, %v472, %v474
      %v476 = vrot.slane %v357, 1
      %v477 = vrot.slane %v358, 1
      %v478 = vsel %vm435, %v476, %v477
      %v479 = vrot.slane %v359, 1
      %v480 = vsel %vm435, %v477, %v479
      %v481 = vrot.slane %v360, 1
      %v482 = vrot.slane %v361, 1
      %v483 = vsel %vm435, %v481, %v482
      %v484 = vrot.slane %v362, 1
      %v485 = vsel %vm435, %v482, %v484
      %v486 = vrot.slane %v363, 1
      %v487 = vrot.slane %v364, 1
      %v488 = vsel %vm435, %v486, %v487
      %v489 = vrot.slane %v365, 1
      %v490 = vsel %vm435, %v487, %v489
      %v491 = vrot.slane %v366, 1
      %v492 = vrot.slane %v367, 1
      %v493 = vsel %vm435, %v491, %v492
      %v494 = vrot.slane %v368, 1
      %v495 = vsel %vm435, %v492, %v494
      %v496 = vrot.slane %v369, 1
      %v497 = vrot.slane %v370, 1
      %v498 = vsel %vm435, %v496, %v497
      %v499 = vrot.slane %v371, 1
      %v500 = vsel %vm435, %v497, %v499
      %v501 = vrot.slane %v372, 1
      %v502 = vrot.slane %v373, 1
      %v503 = vsel %vm435, %v501, %v502
      %v504 = vrot.slane %v374, 1
      %v505 = vsel %vm435, %v502, %v504
      %v506 = vrot.slane %v375, 1
      %v507 = vrot.slane %v376, 1
      %v508 = vsel %vm435, %v506, %v507
      %v509 = vrot.slane %v377, 1
      %v510 = vsel %vm435, %v507, %v509
      %v511 = vrot.slane %v378, 1
      %v512 = vrot.slane %v379, 1
      %v513 = vsel %vm435, %v511, %v512
      %v514 = vrot.slane %v380, 1
      %v515 = vsel %vm435, %v512, %v514
      %vm548 = vcmask 1045504
      %v549 = vrot.slane %v333, 2
      %v550 = vrot.slane %v334, 2
      %v551 = vsel %vm548, %v549, %v550
      %v552 = vrot.slane %v335, 2
      %v553 = vsel %vm548, %v550, %v552
      %v554 = vrot.slane %v336, 2
      %v555 = vrot.slane %v337, 2
      %v556 = vsel %vm548, %v554, %v555
      %v557 = vrot.slane %v338, 2
      %v558 = vsel %vm548, %v555, %v557
      %v559 = vrot.slane %v339, 2
      %v560 = vrot.slane %v340, 2
      %v561 = vsel %vm548, %v559, %v560
      %v562 = vrot.slane %v341, 2
      %v563 = vsel %vm548, %v560, %v562
      %v564 = vrot.slane %v342, 2
      %v565 = vrot.slane %v343, 2
      %v566 = vsel %vm548, %v564, %v565
      %v567 = vrot.slane %v344, 2
      %v568 = vsel %vm548, %v565, %v567
      %v569 = vrot.slane %v345, 2
      %v570 = vrot.slane %v346, 2
      %v571 = vsel %vm548, %v569, %v570
      %v572 = vrot.slane %v347, 2
      %v573 = vsel %vm548, %v570, %v572
      %v574 = vrot.slane %v348, 2
      %v575 = vrot.slane %v349, 2
      %v576 = vsel %vm548, %v574, %v575
      %v577 = vrot.slane %v350, 2
      %v578 = vsel %vm548, %v575, %v577
      %v579 = vrot.slane %v351, 2
      %v580 = vrot.slane %v352, 2
      %v581 = vsel %vm548, %v579, %v580
      %v582 = vrot.slane %v353, 2
      %v583 = vsel %vm548, %v580, %v582
      %v584 = vrot.slane %v354, 2
      %v585 = vrot.slane %v355, 2
      %v586 = vsel %vm548, %v584, %v585
      %v587 = vrot.slane %v356, 2
      %v588 = vsel %vm548, %v585, %v587
      %v589 = vrot.slane %v357, 2
      %v590 = vrot.slane %v358, 2
      %v591 = vsel %vm548, %v589, %v590
      %v592 = vrot.slane %v359, 2
      %v593 = vsel %vm548, %v590, %v592
      %v594 = vrot.slane %v360, 2
      %v595 = vrot.slane %v361, 2
      %v596 = vsel %vm548, %v594, %v595
      %v597 = vrot.slane %v362, 2
      %v598 = vsel %vm548, %v595, %v597
      %v599 = vrot.slane %v363, 2
      %v600 = vrot.slane %v364, 2
      %v601 = vsel %vm548, %v599, %v600
      %v602 = vrot.slane %v365, 2
      %v603 = vsel %vm548, %v600, %v602
      %v604 = vrot.slane %v366, 2
      %v605 = vrot.slane %v367, 2
      %v606 = vsel %vm548, %v604, %v605
      %v607 = vrot.slane %v368, 2
      %v608 = vsel %vm548, %v605, %v607
      %v609 = vrot.slane %v369, 2
      %v610 = vrot.slane %v370, 2
      %v611 = vsel %vm548, %v609, %v610
      %v612 = vrot.slane %v371, 2
      %v613 = vsel %vm548, %v610, %v612
      %v614 = vrot.slane %v372, 2
      %v615 = vrot.slane %v373, 2
      %v616 = vsel %vm548, %v614, %v615
      %v617 = vrot.slane %v374, 2
      %v618 = vsel %vm548, %v615, %v617
      %v619 = vrot.slane %v375, 2
      %v620 = vrot.slane %v376, 2
      %v621 = vsel %vm548, %v619, %v620
      %v622 = vrot.slane %v377, 2
      %v623 = vsel %vm548, %v620, %v622
      %v624 = vrot.slane %v378, 2
      %v625 = vrot.slane %v379, 2
      %v626 = vsel %vm548, %v624, %v625
      %v627 = vrot.slane %v380, 2
      %v628 = vsel %vm548, %v625, %v627
      %v661 = vld [vmem:[%s1] sm:$0xff]
      %v662 = vld [vmem:[%s1 + $0x8] sm:$0xff]
      %v663 = vld [vmem:[%s1 + $0x10] sm:$0xff]
      %v664 = vld [vmem:[%s1 + $0x18] sm:$0xff]
      %v665 = vld [vmem:[%s1 + $0x20] sm:$0xff]
      %v666 = vld [vmem:[%s1 + $0x28] sm:$0xff]
      %v667 = vld [vmem:[%s1 + $0x30] sm:$0xff]
      %v668 = vld [vmem:[%s1 + $0x38] sm:$0xff]
      %v669 = vld [vmem:[%s1 + $0x40] sm:$0xff]
      %v670 = vld [vmem:[%s1 + $0x48] sm:$0xff]
      %v671 = vld [vmem:[%s1 + $0x50] sm:$0xff]
      %v672 = vld [vmem:[%s1 + $0x58] sm:$0xff]
      %v673 = vld [vmem:[%s1 + $0x60] sm:$0xff]
      %v674 = vld [vmem:[%s1 + $0x68] sm:$0xff]
      %v675 = vld [vmem:[%s1 + $0x70] sm:$0xff]
      %v676 = vld [vmem:[%s1 + $0x78] sm:$0xff]
      %v677 = vld [vmem:[%s1 + $0x80] sm:$0xff]
      %v678 = vld [vmem:[%s1 + $0x88] sm:$0xff]
      %v679 = vld [vmem:[%s1 + $0x90] sm:$0xff]
      %v680 = vld [vmem:[%s1 + $0x98] sm:$0xff]
      %v681 = vld [vmem:[%s1 + $0xa0] sm:$0xff]
      %v682 = vld [vmem:[%s1 + $0xa8] sm:$0xff]
      %v683 = vld [vmem:[%s1 + $0xb0] sm:$0xff]
      %v684 = vld [vmem:[%s1 + $0xb8] sm:$0xff]
      %v685 = vld [vmem:[%s1 + $0xc0] sm:$0xff]
      %v686 = vld [vmem:[%s1 + $0xc8] sm:$0xff]
      %v687 = vld [vmem:[%s1 + $0xd0] sm:$0xff]
      %v688 = vld [vmem:[%s1 + $0xd8] sm:$0xff]
      %v689 = vld [vmem:[%s1 + $0xe0] sm:$0xff]
      %v690 = vld [vmem:[%s1 + $0xe8] sm:$0xff]
      %v691 = vld [vmem:[%s1 + $0xf0] sm:$0xff]
      %v692 = vld [vmem:[%s1 + $0xf8] sm:$0xff]
      %v693 = vld [vmem:[%s1 + $0x100] sm:$0xff]
      %v694 = vld [vmem:[%s1 + $0x108] sm:$0xff]
      %v695 = vld [vmem:[%s1 + $0x110] sm:$0xff]
      %v696 = vld [vmem:[%s1 + $0x118] sm:$0xff]
      %v697 = vld [vmem:[%s1 + $0x120] sm:$0xff]
      %v698 = vld [vmem:[%s1 + $0x128] sm:$0xff]
      %v699 = vld [vmem:[%s1 + $0x130] sm:$0xff]
      %v700 = vld [vmem:[%s1 + $0x138] sm:$0xff]
      %v701 = vld [vmem:[%s1 + $0x140] sm:$0xff]
      %v702 = vld [vmem:[%s1 + $0x148] sm:$0xff]
      %v703 = vld [vmem:[%s1 + $0x150] sm:$0xff]
      %v704 = vld [vmem:[%s1 + $0x158] sm:$0xff]
      %v705 = vld [vmem:[%s1 + $0x160] sm:$0xff]
      %v706 = vld [vmem:[%s1 + $0x168] sm:$0xff]
      %v707 = vld [vmem:[%s1 + $0x170] sm:$0xff]
      %v708 = vld [vmem:[%s1 + $0x178] sm:$0xff]
      %v712 = vrot.slane %v381, 1
      %v713 = vrot.slane %v382, 1
      %v714 = vsel %vm435, %v712, %v713
      %v715 = vrot.slane %v383, 1
      %v716 = vsel %vm435, %v713, %v715
      %v719 = vrot.slane %v381, 2
      %v720 = vrot.slane %v382, 2
      %v721 = vsel %vm548, %v719, %v720
      %v722 = vrot.slane %v383, 2
      %v723 = vsel %vm548, %v720, %v722
      %s726 = scalar_lea.vmem %s1, 384
      %v727 = vld [vmem:[%s726] sm:$0xff]
      %v728 = vld [vmem:[%s726 + $0x8] sm:$0xff]
      %v729 = vld [vmem:[%s726 + $0x10] sm:$0xff]
      %v730 = vld [vmem:[%s726 + $0x18] sm:$0xff]
      %v731 = vld [vmem:[%s726 + $0x20] sm:$0xff]
      %v732 = vld [vmem:[%s726 + $0x28] sm:$0xff]
      %v733 = vld [vmem:[%s726 + $0x30] sm:$0xff]
      %v734 = vld [vmem:[%s726 + $0x38] sm:$0xff]
      %v735 = vld [vmem:[%s726 + $0x40] sm:$0xff]
      %v736 = vld [vmem:[%s726 + $0x48] sm:$0xff]
      %v737 = vld [vmem:[%s726 + $0x50] sm:$0xff]
      %v738 = vld [vmem:[%s726 + $0x58] sm:$0xff]
      %v739 = vld [vmem:[%s726 + $0x60] sm:$0xff]
      %v740 = vld [vmem:[%s726 + $0x68] sm:$0xff]
      %v741 = vld [vmem:[%s726 + $0x70] sm:$0xff]
      %v742 = vld [vmem:[%s726 + $0x78] sm:$0xff]
      %v743 = vld [vmem:[%s726 + $0x80] sm:$0xff]
      %v744 = vld [vmem:[%s726 + $0x88] sm:$0xff]
      %v745 = vld [vmem:[%s726 + $0x90] sm:$0xff]
      %v746 = vld [vmem:[%s726 + $0x98] sm:$0xff]
      %v747 = vld [vmem:[%s726 + $0xa0] sm:$0xff]
      %v748 = vld [vmem:[%s726 + $0xa8] sm:$0xff]
      %v749 = vld [vmem:[%s726 + $0xb0] sm:$0xff]
      %v750 = vld [vmem:[%s726 + $0xb8] sm:$0xff]
      %v751 = vld [vmem:[%s726 + $0xc0] sm:$0xff]
      %v752 = vld [vmem:[%s726 + $0xc8] sm:$0xff]
      %v753 = vld [vmem:[%s726 + $0xd0] sm:$0xff]
      %v754 = vld [vmem:[%s726 + $0xd8] sm:$0xff]
      %v755 = vld [vmem:[%s726 + $0xe0] sm:$0xff]
      %v756 = vld [vmem:[%s726 + $0xe8] sm:$0xff]
      %v757 = vld [vmem:[%s726 + $0xf0] sm:$0xff]
      %v758 = vld [vmem:[%s726 + $0xf8] sm:$0xff]
      %v759 = vld [vmem:[%s726 + $0x100] sm:$0xff]
      %v760 = vld [vmem:[%s726 + $0x108] sm:$0xff]
      %v761 = vld [vmem:[%s726 + $0x110] sm:$0xff]
      %v762 = vld [vmem:[%s726 + $0x118] sm:$0xff]
      %v763 = vld [vmem:[%s726 + $0x120] sm:$0xff]
      %v764 = vld [vmem:[%s726 + $0x128] sm:$0xff]
      %v765 = vld [vmem:[%s726 + $0x130] sm:$0xff]
      %v766 = vld [vmem:[%s726 + $0x138] sm:$0xff]
      %v767 = vld [vmem:[%s726 + $0x140] sm:$0xff]
      %v768 = vld [vmem:[%s726 + $0x148] sm:$0xff]
      %v769 = vld [vmem:[%s726 + $0x150] sm:$0xff]
      %v770 = vld [vmem:[%s726 + $0x158] sm:$0xff]
      %v771 = vld [vmem:[%s726 + $0x160] sm:$0xff]
      %v772 = vld [vmem:[%s726 + $0x168] sm:$0xff]
      %v773 = vld [vmem:[%s726 + $0x170] sm:$0xff]
      %v774 = vld [vmem:[%s726 + $0x178] sm:$0xff]
      %775 = vmatprep.subr.mxu0 0.0
      %776 = vmatpush1.msra.mxu0 %v727
      %777 = vmatprep.subr.mxu0 0.0
      %778 = vmatpush1.msra.mxu0 %v728
      %779 = vmatprep.subr.mxu0 0.0
      %780 = vmatpush1.msra.mxu0 %v729
      %781 = vmatprep.subr.mxu0 0.0
      %782 = vmatpush1.msra.mxu0 %v730
      %783 = vmatprep.subr.mxu0 0.0
      %784 = vmatpush1.msra.mxu0 %v731
      %785 = vmatprep.subr.mxu0 0.0
      %786 = vmatpush1.msra.mxu0 %v732
      %787 = vmatprep.subr.mxu0 0.0
      %788 = vmatpush1.msra.mxu0 %v733
      %789 = vmatprep.subr.mxu0 0.0
      %790 = vmatpush1.msra.mxu0 %v734
      %791 = vmatprep.subr.mxu0 0.0
      %792 = vmatpush1.msra.mxu0 %v735
      %793 = vmatprep.subr.mxu0 0.0
      %794 = vmatpush1.msra.mxu0 %v736
      %795 = vmatprep.subr.mxu0 0.0
      %796 = vmatpush1.msra.mxu0 %v737
      %797 = vmatprep.subr.mxu0 0.0
      %798 = vmatpush1.msra.mxu0 %v738
      %799 = vmatprep.subr.mxu0 0.0
      %800 = vmatpush1.msra.mxu0 %v739
      %801 = vmatprep.subr.mxu0 0.0
      %802 = vmatpush1.msra.mxu0 %v740
      %803 = vmatprep.subr.mxu0 0.0
      %804 = vmatpush1.msra.mxu0 %v741
      %805 = vmatprep.subr.mxu0 0.0
      %806 = vmatpush1.msra.mxu0 %v742
      %807 = vmatprep.subr.mxu0 0.0
      %808 = vmatpush1.msra.mxu0 %v743
      %809 = vmatprep.subr.mxu0 0.0
      %810 = vmatpush1.msra.mxu0 %v744
      %811 = vmatprep.subr.mxu0 0.0
      %812 = vmatpush1.msra.mxu0 %v745
      %813 = vmatprep.subr.mxu0 0.0
      %814 = vmatpush1.msra.mxu0 %v746
      %815 = vmatprep.subr.mxu0 0.0
      %816 = vmatpush1.msra.mxu0 %v747
      %817 = vmatprep.subr.mxu0 0.0
      %818 = vmatpush1.msra.mxu0 %v748
      %819 = vmatprep.subr.mxu0 0.0
      %820 = vmatpush1.msra.mxu0 %v749
      %821 = vmatprep.subr.mxu0 0.0
      %822 = vmatpush1.msra.mxu0 %v750
      %823 = vmatprep.subr.mxu0 0.0
      %824 = vmatpush1.msra.mxu0 %v751
      %825 = vmatprep.subr.mxu0 0.0
      %826 = vmatpush1.msra.mxu0 %v752
      %827 = vmatprep.subr.mxu0 0.0
      %828 = vmatpush1.msra.mxu0 %v753
      %829 = vmatprep.subr.mxu0 0.0
      %830 = vmatpush1.msra.mxu0 %v754
      %831 = vmatprep.subr.mxu0 0.0
      %832 = vmatpush1.msra.mxu0 %v755
      %833 = vmatprep.subr.mxu0 0.0
      %834 = vmatpush1.msra.mxu0 %v756
      %835 = vmatprep.subr.mxu0 0.0
      %836 = vmatpush1.msra.mxu0 %v757
      %837 = vmatprep.subr.mxu0 0.0
      %838 = vmatpush1.msra.mxu0 %v758
      %839 = vmatprep.mubr.f32.mxu0 %v443
      %840 = vmatmul.mubr.f32.gmra.mrb[0].mxu0 %v336
      %v841 = vpop.f32.mrb[0].mxu0
      %v842 = vadd.f32 0.0, %v841
      %v843 = vpop.f32.mrb[0].mxu0
      %844 = vmatprep.mubr.f32.mxu0 %v445
      %845 = vmatmul.mubr.f32.gmra.mrb[0].mxu0 %v337
      %v846 = vpop.f32.mrb[0].mxu0
      %v847 = vadd.f32 0.0, %v846
      %v848 = vpop.f32.mrb[0].mxu0
      %849 = vmatprep.mubr.f32.mxu0 %v448
      %850 = vmatmul.mubr.f32.gmra.mrb[0].mxu0 %v339
      %v851 = vpop.f32.mrb[0].mxu0
      %v852 = vadd.f32 0.0, %v851
      %v853 = vpop.f32.mrb[0].mxu0
      %854 = vmatprep.mubr.f32.mxu0 %v450
      %855 = vmatmul.mubr.f32.gmra.mrb[0].mxu0 %v340
      %v856 = vpop.f32.mrb[0].mxu0
      %v857 = vadd.f32 0.0, %v856
      %v858 = vpop.f32.mrb[0].mxu0
      %859 = vmatprep.mubr.f32.mxu0 %v453
      %860 = vmatmul.mubr.f32.gmra.mrb[0].mxu0 %v342
      %v861 = vpop.f32.mrb[0].mxu0
      %v862 = vadd.f32 0.0, %v861
      %v863 = vpop.f32.mrb[0].mxu0
      %864 = vmatprep.mubr.f32.mxu0 %v455
      %865 = vmatmul.mubr.f32.gmra.mrb[0].mxu0 %v343
      %v866 = vpop.f32.mrb[0].mxu0
      %v867 = vadd.f32 0.0, %v866
      %v868 = vpop.f32.mrb[0].mxu0
      %869 = vmatprep.mubr.f32.mxu0 %v458
      %870 = vmatmul.mubr.f32.gmra.mrb[0].mxu0 %v345
      %v871 = vpop.f32.mrb[0].mxu0
      %v872 = vadd.f32 0.0, %v871
      %v873 = vpop.f32.mrb[0].mxu0
      %874 = vmatprep.mubr.f32.mxu0 %v460
      %875 = vmatmul.mubr.f32.gmra.mrb[0].mxu0 %v346
      %v876 = vpop.f32.mrb[0].mxu0
      %v877 = vadd.f32 0.0, %v876
      %v878 = vpop.f32.mrb[0].mxu0
      %879 = vmatprep.mubr.f32.mxu0 %v463
      %880 = vmatmul.mubr.f32.gmra.mrb[0].mxu0 %v348
      %v881 = vpop.f32.mrb[0].mxu0
      %v882 = vadd.f32 0.0, %v881
      %v883 = vpop.f32.mrb[0].mxu0
      %884 = vmatprep.mubr.f32.mxu0 %v465
      %885 = vmatmul.mubr.f32.gmra.mrb[0].mxu0 %v349
      %v886 = vpop.f32.mrb[0].mxu0
      %v887 = vadd.f32 0.0, %v886
      %v888 = vpop.f32.mrb[0].mxu0
      %889 = vmatprep.mubr.f32.mxu0 %v468
      %890 = vmatmul.mubr.f32.gmra.mrb[0].mxu0 %v351
      %v891 = vpop.f32.mrb[0].mxu0
      %v892 = vadd.f32 0.0, %v891
      %v893 = vpop.f32.mrb[0].mxu0
      %894 = vmatprep.mubr.f32.mxu0 %v470
      %895 = vmatmul.mubr.f32.gmra.mrb[0].mxu0 %v352
      %v896 = vpop.f32.mrb[0].mxu0
      %v897 = vadd.f32 0.0, %v896
      %v898 = vpop.f32.mrb[0].mxu0
      %899 = vmatprep.mubr.f32.mxu0 %v473
      %900 = vmatmul.mubr.f32.gmra.mrb[0].mxu0 %v354
      %v901 = vpop.f32.mrb[0].mxu0
      %v902 = vadd.f32 0.0, %v901
      %v903 = vpop.f32.mrb[0].mxu0
      %904 = vmatprep.mubr.f32.mxu0 %v475
      %905 = vmatmul.mubr.f32.gmra.mrb[0].mxu0 %v355
      %v906 = vpop.f32.mrb[0].mxu0
      %v907 = vadd.f32 0.0, %v906
      %v908 = vpop.f32.mrb[0].mxu0
      %909 = vmatprep.mubr.f32.mxu0 %v478
      %910 = vmatmul.mubr.f32.gmra.mrb[0].mxu0 %v357
      %v911 = vpop.f32.mrb[0].mxu0
      %v912 = vadd.f32 0.0, %v911
      %v913 = vpop.f32.mrb[0].mxu0
      %914 = vmatprep.mubr.f32.mxu0 %v480
      %915 = vmatmul.mubr.f32.gmra.mrb[0].mxu0 %v358
      %v916 = vpop.f32.mrb[0].mxu0
      %v917 = vadd.f32 0.0, %v916
      %v918 = vpop.f32.mrb[0].mxu0
      %919 = vmatprep.mubr.f32.mxu0 %v483
      %920 = vmatmul.mubr.f32.gmra.mrb[0].mxu0 %v360
      %v921 = vpop.f32.mrb[0].mxu0
      %v922 = vadd.f32 0.0, %v921
      %v923 = vpop.f32.mrb[0].mxu0
      %924 = vmatprep.mubr.f32.mxu0 %v485
      %925 = vmatmul.mubr.f32.gmra.mrb[0].mxu0 %v361
      %v926 = vpop.f32.mrb[0].mxu0
      %v927 = vadd.f32 0.0, %v926
      %v928 = vpop.f32.mrb[0].mxu0
      %929 = vmatprep.mubr.f32.mxu0 %v488
      %930 = vmatmul.mubr.f32.gmra.mrb[0].mxu0 %v363
      %v931 = vpop.f32.mrb[0].mxu0
      %v932 = vadd.f32 0.0, %v931
      %v933 = vpop.f32.mrb[0].mxu0
      %934 = vmatprep.mubr.f32.mxu0 %v490
      %935 = vmatmul.mubr.f32.gmra.mrb[0].mxu0 %v364
      %v936 = vpop.f32.mrb[0].mxu0
      %v937 = vadd.f32 0.0, %v936
      %v938 = vpop.f32.mrb[0].mxu0
      %939 = vmatprep.mubr.f32.mxu0 %v493
      %940 = vmatmul.mubr.f32.gmra.mrb[0].mxu0 %v366
      %v941 = vpop.f32.mrb[0].mxu0
      %v942 = vadd.f32 0.0, %v941
      %v943 = vpop.f32.mrb[0].mxu0
      %944 = vmatprep.mubr.f32.mxu0 %v495
      %945 = vmatmul.mubr.f32.gmra.mrb[0].mxu0 %v367
      %v946 = vpop.f32.mrb[0].mxu0
      %v947 = vadd.f32 0.0, %v946
      %v948 = vpop.f32.mrb[0].mxu0
      %949 = vmatprep.mubr.f32.mxu0 %v498
      %950 = vmatmul.mubr.f32.gmra.mrb[0].mxu0 %v369
      %v951 = vpop.f32.mrb[0].mxu0
      %v952 = vadd.f32 0.0, %v951
      %v953 = vpop.f32.mrb[0].mxu0
      %954 = vmatprep.mubr.f32.mxu0 %v500
      %955 = vmatmul.mubr.f32.gmra.mrb[0].mxu0 %v370
      %v956 = vpop.f32.mrb[0].mxu0
      %v957 = vadd.f32 0.0, %v956
      %v958 = vpop.f32.mrb[0].mxu0
      %959 = vmatprep.mubr.f32.mxu0 %v503
      %960 = vmatmul.mubr.f32.gmra.mrb[0].mxu0 %v372
      %v961 = vpop.f32.mrb[0].mxu0
      %v962 = vadd.f32 0.0, %v961
      %v963 = vpop.f32.mrb[0].mxu0
      %964 = vmatprep.mubr.f32.mxu0 %v505
      %965 = vmatmul.mubr.f32.gmra.mrb[0].mxu0 %v373
      %v966 = vpop.f32.mrb[0].mxu0
      %v967 = vadd.f32 0.0, %v966
      %v968 = vpop.f32.mrb[0].mxu0
      %969 = vmatprep.mubr.f32.mxu0 %v508
      %970 = vmatmul.mubr.f32.gmra.mrb[0].mxu0 %v375
      %v971 = vpop.f32.mrb[0].mxu0
      %v972 = vadd.f32 0.0, %v971
      %v973 = vpop.f32.mrb[0].mxu0
      %974 = vmatprep.mubr.f32.mxu0 %v510
      %975 = vmatmul.mubr.f32.gmra.mrb[0].mxu0 %v376
      %v976 = vpop.f32.mrb[0].mxu0
      %v977 = vadd.f32 0.0, %v976
      %v978 = vpop.f32.mrb[0].mxu0
      %979 = vmatprep.mubr.f32.mxu0 %v513
      %980 = vmatmul.mubr.f32.gmra.mrb[0].mxu0 %v378
      %v981 = vpop.f32.mrb[0].mxu0
      %v982 = vadd.f32 0.0, %v981
      %v983 = vpop.f32.mrb[0].mxu0
      %984 = vmatprep.mubr.f32.mxu0 %v515
      %985 = vmatmul.mubr.f32.gmra.mrb[0].mxu0 %v379
      %v986 = vpop.f32.mrb[0].mxu0
      %v987 = vadd.f32 0.0, %v986
      %v988 = vpop.f32.mrb[0].mxu0
      %989 = vmatprep.mubr.f32.mxu0 %v714
      %990 = vmatmul.mubr.f32.gmra.mrb[0].mxu0 %v381
      %v991 = vpop.f32.mrb[0].mxu0
      %v992 = vadd.f32 0.0, %v991
      %v993 = vpop.f32.mrb[0].mxu0
      %994 = vmatprep.mubr.f32.mxu0 %v716
      %995 = vmatmul.mubr.f32.gmra.mrb[0].mxu0 %v382
      %v996 = vpop.f32.mrb[0].mxu0
      %v997 = vadd.f32 0.0, %v996
      %v998 = vpop.f32.mrb[0].mxu0
      %999 = vdwg.mxu0
      %1000 = vmatprep.subr.mxu0 0.0
      %1001 = vmatpush1.msra.mxu0 %v759
      %1002 = vmatprep.subr.mxu0 0.0
      %1003 = vmatpush1.msra.mxu0 %v760
      %1004 = vmatprep.subr.mxu0 0.0
      %1005 = vmatpush1.msra.mxu0 %v761
      %1006 = vmatprep.subr.mxu0 0.0
      %1007 = vmatpush1.msra.mxu0 %v762
      %1008 = vmatprep.subr.mxu0 0.0
      %1009 = vmatpush1.msra.mxu0 %v763
      %1010 = vmatprep.subr.mxu0 0.0
      %1011 = vmatpush1.msra.mxu0 %v764
      %1012 = vmatprep.subr.mxu0 0.0
      %1013 = vmatpush1.msra.mxu0 %v765
      %1014 = vmatprep.subr.mxu0 0.0
      %1015 = vmatpush1.msra.mxu0 %v766
      %1016 = vmatprep.subr.mxu0 0.0
      %1017 = vmatpush1.msra.mxu0 %v767
      %1018 = vmatprep.subr.mxu0 0.0
      %1019 = vmatpush1.msra.mxu0 %v768
      %1020 = vmatprep.subr.mxu0 0.0
      %1021 = vmatpush1.msra.mxu0 %v769
      %1022 = vmatprep.subr.mxu0 0.0
      %1023 = vmatpush1.msra.mxu0 %v770
      %1024 = vmatprep.subr.mxu0 0.0
      %1025 = vmatpush1.msra.mxu0 %v771
      %1026 = vmatprep.subr.mxu0 0.0
      %1027 = vmatpush1.msra.mxu0 %v772
      %1028 = vmatprep.subr.mxu0 0.0
      %1029 = vmatpush1.msra.mxu0 %v773
      %1030 = vmatprep.subr.mxu0 0.0
      %1031 = vmatpush1.msra.mxu0 %v774
      %1032 = vmatprep.subr.mxu0 0.0
      %1033 = vmatpush1.msra.mxu0 0.0
      %1034 = vmatprep.subr.mxu0 0.0
      %1035 = vmatpush1.msra.mxu0 0.0
      %1036 = vmatprep.subr.mxu0 0.0
      %1037 = vmatpush1.msra.mxu0 0.0
      %1038 = vmatprep.subr.mxu0 0.0
      %1039 = vmatpush1.msra.mxu0 0.0
      %1040 = vmatprep.subr.mxu0 0.0
      %1041 = vmatpush1.msra.mxu0 0.0
      %1042 = vmatprep.subr.mxu0 0.0
      %1043 = vmatpush1.msra.mxu0 0.0
      %1044 = vmatprep.subr.mxu0 0.0
      %1045 = vmatpush1.msra.mxu0 0.0
      %1046 = vmatprep.subr.mxu0 0.0
      %1047 = vmatpush1.msra.mxu0 0.0
      %1048 = vmatprep.subr.mxu0 0.0
      %1049 = vmatpush1.msra.mxu0 0.0
      %1050 = vmatprep.subr.mxu0 0.0
      %1051 = vmatpush1.msra.mxu0 0.0
      %1052 = vmatprep.subr.mxu0 0.0
      %1053 = vmatpush1.msra.mxu0 0.0
      %1054 = vmatprep.subr.mxu0 0.0
      %1055 = vmatpush1.msra.mxu0 0.0
      %1056 = vmatprep.subr.mxu0 0.0
      %1057 = vmatpush1.msra.mxu0 0.0
      %1058 = vmatprep.subr.mxu0 0.0
      %1059 = vmatpush1.msra.mxu0 0.0
      %1060 = vmatprep.subr.mxu0 0.0
      %1061 = vmatpush1.msra.mxu0 0.0
      %1062 = vmatprep.subr.mxu0 0.0
      %1063 = vmatpush1.msra.mxu0 0.0
      %1064 = vmatprep.mubr.f32.mxu0 0.0
      %1065 = vmatmul.mubr.f32.gmra.mrb[0].mxu0 %v556
      %v1066 = vpop.f32.mrb[0].mxu0
      %v1067 = vadd.f32 %v842, %v1066
      %v1068 = vpop.f32.mrb[0].mxu0
      %1069 = vmatprep.mubr.f32.mxu0 0.0
      %1070 = vmatmul.mubr.f32.gmra.mrb[0].mxu0 %v558
      %v1071 = vpop.f32.mrb[0].mxu0
      %v1072 = vadd.f32 %v847, %v1071
      %v1073 = vpop.f32.mrb[0].mxu0
      %1074 = vmatprep.mubr.f32.mxu0 0.0
      %1075 = vmatmul.mubr.f32.gmra.mrb[0].mxu0 %v561
      %v1076 = vpop.f32.mrb[0].mxu0
      %v1077 = vadd.f32 %v852, %v1076
      %v1078 = vpop.f32.mrb[0].mxu0
      %1079 = vmatprep.mubr.f32.mxu0 0.0
      %1080 = vmatmul.mubr.f32.gmra.mrb[0].mxu0 %v563
      %v1081 = vpop.f32.mrb[0].mxu0
      %v1082 = vadd.f32 %v857, %v1081
      %v1083 = vpop.f32.mrb[0].mxu0
      %1084 = vmatprep.mubr.f32.mxu0 0.0
      %1085 = vmatmul.mubr.f32.gmra.mrb[0].mxu0 %v566
      %v1086 = vpop.f32.mrb[0].mxu0
      %v1087 = vadd.f32 %v862, %v1086
      %v1088 = vpop.f32.mrb[0].mxu0
      %1089 = vmatprep.mubr.f32.mxu0 0.0
      %1090 = vmatmul.mubr.f32.gmra.mrb[0].mxu0 %v568
      %v1091 = vpop.f32.mrb[0].mxu0
      %v1092 = vadd.f32 %v867, %v1091
      %v1093 = vpop.f32.mrb[0].mxu0
      %1094 = vmatprep.mubr.f32.mxu0 0.0
      %1095 = vmatmul.mubr.f32.gmra.mrb[0].mxu0 %v571
      %v1096 = vpop.f32.mrb[0].mxu0
      %v1097 = vadd.f32 %v872, %v1096
      %v1098 = vpop.f32.mrb[0].mxu0
      %1099 = vmatprep.mubr.f32.mxu0 0.0
      %1100 = vmatmul.mubr.f32.gmra.mrb[0].mxu0 %v573
      %v1101 = vpop.f32.mrb[0].mxu0
      %v1102 = vadd.f32 %v877, %v1101
      %v1103 = vpop.f32.mrb[0].mxu0
      %1104 = vmatprep.mubr.f32.mxu0 0.0
      %1105 = vmatmul.mubr.f32.gmra.mrb[0].mxu0 %v576
      %v1106 = vpop.f32.mrb[0].mxu0
      %v1107 = vadd.f32 %v882, %v1106
      %v1108 = vpop.f32.mrb[0].mxu0
      %1109 = vmatprep.mubr.f32.mxu0 0.0
      %1110 = vmatmul.mubr.f32.gmra.mrb[0].mxu0 %v578
      %v1111 = vpop.f32.mrb[0].mxu0
      %v1112 = vadd.f32 %v887, %v1111
      %v1113 = vpop.f32.mrb[0].mxu0
      %1114 = vmatprep.mubr.f32.mxu0 0.0
      %1115 = vmatmul.mubr.f32.gmra.mrb[0].mxu0 %v581
      %v1116 = vpop.f32.mrb[0].mxu0
      %v1117 = vadd.f32 %v892, %v1116
      %v1118 = vpop.f32.mrb[0].mxu0
      %1119 = vmatprep.mubr.f32.mxu0 0.0
      %1120 = vmatmul.mubr.f32.gmra.mrb[0].mxu0 %v583
      %v1121 = vpop.f32.mrb[0].mxu0
      %v1122 = vadd.f32 %v897, %v1121
      %v1123 = vpop.f32.mrb[0].mxu0
      %1124 = vmatprep.mubr.f32.mxu0 0.0
      %1125 = vmatmul.mubr.f32.gmra.mrb[0].mxu0 %v586
      %v1126 = vpop.f32.mrb[0].mxu0
      %v1127 = vadd.f32 %v902, %v1126
      %v1128 = vpop.f32.mrb[0].mxu0
      %1129 = vmatprep.mubr.f32.mxu0 0.0
      %1130 = vmatmul.mubr.f32.gmra.mrb[0].mxu0 %v588
      %v1131 = vpop.f32.mrb[0].mxu0
      %v1132 = vadd.f32 %v907, %v1131
      %v1133 = vpop.f32.mrb[0].mxu0
      %1134 = vmatprep.mubr.f32.mxu0 0.0
      %1135 = vmatmul.mubr.f32.gmra.mrb[0].mxu0 %v591
      %v1136 = vpop.f32.mrb[0].mxu0
      %v1137 = vadd.f32 %v912, %v1136
      %v1138 = vpop.f32.mrb[0].mxu0
      %1139 = vmatprep.mubr.f32.mxu0 0.0
      %1140 = vmatmul.mubr.f32.gmra.mrb[0].mxu0 %v593
      %v1141 = vpop.f32.mrb[0].mxu0
      %v1142 = vadd.f32 %v917, %v1141
      %v1143 = vpop.f32.mrb[0].mxu0
      %1144 = vmatprep.mubr.f32.mxu0 0.0
      %1145 = vmatmul.mubr.f32.gmra.mrb[0].mxu0 %v596
      %v1146 = vpop.f32.mrb[0].mxu0
      %v1147 = vadd.f32 %v922, %v1146
      %v1148 = vpop.f32.mrb[0].mxu0
      %1149 = vmatprep.mubr.f32.mxu0 0.0
      %1150 = vmatmul.mubr.f32.gmra.mrb[0].mxu0 %v598
      %v1151 = vpop.f32.mrb[0].mxu0
      %v1152 = vadd.f32 %v927, %v1151
      %v1153 = vpop.f32.mrb[0].mxu0
      %1154 = vmatprep.mubr.f32.mxu0 0.0
      %1155 = vmatmul.mubr.f32.gmra.mrb[0].mxu0 %v601
      %v1156 = vpop.f32.mrb[0].mxu0
      %v1157 = vadd.f32 %v932, %v1156
      %v1158 = vpop.f32.mrb[0].mxu0
      %1159 = vmatprep.mubr.f32.mxu0 0.0
      %1160 = vmatmul.mubr.f32.gmra.mrb[0].mxu0 %v603
      %v1161 = vpop.f32.mrb[0].mxu0
      %v1162 = vadd.f32 %v937, %v1161
      %v1163 = vpop.f32.mrb[0].mxu0
      %1164 = vmatprep.mubr.f32.mxu0 0.0
      %1165 = vmatmul.mubr.f32.gmra.mrb[0].mxu0 %v606
      %v1166 = vpop.f32.mrb[0].mxu0
      %v1167 = vadd.f32 %v942, %v1166
      %v1168 = vpop.f32.mrb[0].mxu0
      %1169 = vmatprep.mubr.f32.mxu0 0.0
      %1170 = vmatmul.mubr.f32.gmra.mrb[0].mxu0 %v608
      %v1171 = vpop.f32.mrb[0].mxu0
      %v1172 = vadd.f32 %v947, %v1171
      %v1173 = vpop.f32.mrb[0].mxu0
      %1174 = vmatprep.mubr.f32.mxu0 0.0
      %1175 = vmatmul.mubr.f32.gmra.mrb[0].mxu0 %v611
      %v1176 = vpop.f32.mrb[0].mxu0
      %v1177 = vadd.f32 %v952, %v1176
      %v1178 = vpop.f32.mrb[0].mxu0
      %1179 = vmatprep.mubr.f32.mxu0 0.0
      %1180 = vmatmul.mubr.f32.gmra.mrb[0].mxu0 %v613
      %v1181 = vpop.f32.mrb[0].mxu0
      %v1182 = vadd.f32 %v957, %v1181
      %v1183 = vpop.f32.mrb[0].mxu0
      %1184 = vmatprep.mubr.f32.mxu0 0.0
      %1185 = vmatmul.mubr.f32.gmra.mrb[0].mxu0 %v616
      %v1186 = vpop.f32.mrb[0].mxu0
      %v1187 = vadd.f32 %v962, %v1186
      %v1188 = vpop.f32.mrb[0].mxu0
      %1189 = vmatprep.mubr.f32.mxu0 0.0
      %1190 = vmatmul.mubr.f32.gmra.mrb[0].mxu0 %v618
      %v1191 = vpop.f32.mrb[0].mxu0
      %v1192 = vadd.f32 %v967, %v1191
      %v1193 = vpop.f32.mrb[0].mxu0
      %1194 = vmatprep.mubr.f32.mxu0 0.0
      %1195 = vmatmul.mubr.f32.gmra.mrb[0].mxu0 %v621
      %v1196 = vpop.f32.mrb[0].mxu0
      %v1197 = vadd.f32 %v972, %v1196
      %v1198 = vpop.f32.mrb[0].mxu0
      %1199 = vmatprep.mubr.f32.mxu0 0.0
      %1200 = vmatmul.mubr.f32.gmra.mrb[0].mxu0 %v623
      %v1201 = vpop.f32.mrb[0].mxu0
      %v1202 = vadd.f32 %v977, %v1201
      %v1203 = vpop.f32.mrb[0].mxu0
      %1204 = vmatprep.mubr.f32.mxu0 0.0
      %1205 = vmatmul.mubr.f32.gmra.mrb[0].mxu0 %v626
      %v1206 = vpop.f32.mrb[0].mxu0
      %v1207 = vadd.f32 %v982, %v1206
      %v1208 = vpop.f32.mrb[0].mxu0
      %1209 = vmatprep.mubr.f32.mxu0 0.0
      %1210 = vmatmul.mubr.f32.gmra.mrb[0].mxu0 %v628
      %v1211 = vpop.f32.mrb[0].mxu0
      %v1212 = vadd.f32 %v987, %v1211
      %v1213 = vpop.f32.mrb[0].mxu0
      %1214 = vmatprep.mubr.f32.mxu0 0.0
      %1215 = vmatmul.mubr.f32.gmra.mrb[0].mxu0 %v721
      %v1216 = vpop.f32.mrb[0].mxu0
      %v1217 = vadd.f32 %v992, %v1216
      %v1218 = vpop.f32.mrb[0].mxu0
      %1219 = vmatprep.mubr.f32.mxu0 0.0
      %1220 = vmatmul.mubr.f32.gmra.mrb[0].mxu0 %v723
      %v1221 = vpop.f32.mrb[0].mxu0
      %v1222 = vadd.f32 %v997, %v1221
      %v1223 = vpop.f32.mrb[0].mxu0
      %1224 = vdwg.mxu0
      %v1228 = vrot.slane %v384, 1
      %v1229 = vrot.slane %v385, 1
      %v1230 = vsel %vm435, %v1228, %v1229
      %v1231 = vrot.slane %v386, 1
      %v1232 = vsel %vm435, %v1229, %v1231
      %v1235 = vrot.slane %v384, 2
      %v1236 = vrot.slane %v385, 2
      %v1237 = vsel %vm548, %v1235, %v1236
      %v1238 = vrot.slane %v386, 2
      %v1239 = vsel %vm548, %v1236, %v1238
      %s1242 = scalar_lea.vmem %s1, 768
      %v1243 = vld [vmem:[%s1242] sm:$0xff]
      %v1244 = vld [vmem:[%s1242 + $0x8] sm:$0xff]
      %v1245 = vld [vmem:[%s1242 + $0x10] sm:$0xff]
      %v1246 = vld [vmem:[%s1242 + $0x18] sm:$0xff]
      %v1247 = vld [vmem:[%s1242 + $0x20] sm:$0xff]
      %v1248 = vld [vmem:[%s1242 + $0x28] sm:$0xff]
      %v1249 = vld [vmem:[%s1242 + $0x30] sm:$0xff]
      %v1250 = vld [vmem:[%s1242 + $0x38] sm:$0xff]
      %v1251 = vld [vmem:[%s1242 + $0x40] sm:$0xff]
      %v1252 = vld [vmem:[%s1242 + $0x48] sm:$0xff]
      %v1253 = vld [vmem:[%s1242 + $0x50] sm:$0xff]
      %v1254 = vld [vmem:[%s1242 + $0x58] sm:$0xff]
      %v1255 = vld [vmem:[%s1242 + $0x60] sm:$0xff]
      %v1256 = vld [vmem:[%s1242 + $0x68] sm:$0xff]
      %v1257 = vld [vmem:[%s1242 + $0x70] sm:$0xff]
      %v1258 = vld [vmem:[%s1242 + $0x78] sm:$0xff]
      %v1259 = vld [vmem:[%s1242 + $0x80] sm:$0xff]
      %v1260 = vld [vmem:[%s1242 + $0x88] sm:$0xff]
      %v1261 = vld [vmem:[%s1242 + $0x90] sm:$0xff]
      %v1262 = vld [vmem:[%s1242 + $0x98] sm:$0xff]
      %v1263 = vld [vmem:[%s1242 + $0xa0] sm:$0xff]
      %v1264 = vld [vmem:[%s1242 + $0xa8] sm:$0xff]
      %v1265 = vld [vmem:[%s1242 + $0xb0] sm:$0xff]
      %v1266 = vld [vmem:[%s1242 + $0xb8] sm:$0xff]
      %v1267 = vld [vmem:[%s1242 + $0xc0] sm:$0xff]
      %v1268 = vld [vmem:[%s1242 + $0xc8] sm:$0xff]
      %v1269 = vld [vmem:[%s1242 + $0xd0] sm:$0xff]
      %v1270 = vld [vmem:[%s1242 + $0xd8] sm:$0xff]
      %v1271 = vld [vmem:[%s1242 + $0xe0] sm:$0xff]
      %v1272 = vld [vmem:[%s1242 + $0xe8] sm:$0xff]
      %v1273 = vld [vmem:[%s1242 + $0xf0] sm:$0xff]
      %v1274 = vld [vmem:[%s1242 + $0xf8] sm:$0xff]
      %v1275 = vld [vmem:[%s1242 + $0x100] sm:$0xff]
      %v1276 = vld [vmem:[%s1242 + $0x108] sm:$0xff]
      %v1277 = vld [vmem:[%s1242 + $0x110] sm:$0xff]
      %v1278 = vld [vmem:[%s1242 + $0x118] sm:$0xff]
      %v1279 = vld [vmem:[%s1242 + $0x120] sm:$0xff]
      %v1280 = vld [vmem:[%s1242 + $0x128] sm:$0xff]
      %v1281 = vld [vmem:[%s1242 + $0x130] sm:$0xff]
      %v1282 = vld [vmem:[%s1242 + $0x138] sm:$0xff]
      %v1283 = vld [vmem:[%s1242 + $0x140] sm:$0xff]
      %v1284 = vld [vmem:[%s1242 + $0x148] sm:$0xff]
      %v1285 = vld [vmem:[%s1242 + $0x150] sm:$0xff]
      %v1286 = vld [vmem:[%s1242 + $0x158] sm:$0xff]
      %v1287 = vld [vmem:[%s1242 + $0x160] sm:$0xff]
      %v1288 = vld [vmem:[%s1242 + $0x168] sm:$0xff]
      %v1289 = vld [vmem:[%s1242 + $0x170] sm:$0xff]
      %v1290 = vld [vmem:[%s1242 + $0x178] sm:$0xff]
      %1291 = vmatprep.subr.mxu0 0.0
      %1292 = vmatpush1.msra.mxu0 %v1243
      %1293 = vmatprep.subr.mxu0 0.0
      %1294 = vmatpush1.msra.mxu0 %v1244
      %1295 = vmatprep.subr.mxu0 0.0
      %1296 = vmatpush1.msra.mxu0 %v1245
      %1297 = vmatprep.subr.mxu0 0.0
      %1298 = vmatpush1.msra.mxu0 %v1246
      %1299 = vmatprep.subr.mxu0 0.0
      %1300 = vmatpush1.msra.mxu0 %v1247
      %1301 = vmatprep.subr.mxu0 0.0
      %1302 = vmatpush1.msra.mxu0 %v1248
      %1303 = vmatprep.subr.mxu0 0.0
      %1304 = vmatpush1.msra.mxu0 %v1249
      %1305 = vmatprep.subr.mxu0 0.0
      %1306 = vmatpush1.msra.mxu0 %v1250
      %1307 = vmatprep.subr.mxu0 0.0
      %1308 = vmatpush1.msra.mxu0 %v1251
      %1309 = vmatprep.subr.mxu0 0.0
      %1310 = vmatpush1.msra.mxu0 %v1252
      %1311 = vmatprep.subr.mxu0 0.0
      %1312 = vmatpush1.msra.mxu0 %v1253
      %1313 = vmatprep.subr.mxu0 0.0
      %1314 = vmatpush1.msra.mxu0 %v1254
      %1315 = vmatprep.subr.mxu0 0.0
      %1316 = vmatpush1.msra.mxu0 %v1255
      %1317 = vmatprep.subr.mxu0 0.0
      %1318 = vmatpush1.msra.mxu0 %v1256
      %1319 = vmatprep.subr.mxu0 0.0
      %1320 = vmatpush1.msra.mxu0 %v1257
      %1321 = vmatprep.subr.mxu0 0.0
      %1322 = vmatpush1.msra.mxu0 %v1258
      %1323 = vmatprep.subr.mxu0 0.0
      %1324 = vmatpush1.msra.mxu0 %v1259
      %1325 = vmatprep.subr.mxu0 0.0
      %1326 = vmatpush1.msra.mxu0 %v1260
      %1327 = vmatprep.subr.mxu0 0.0
      %1328 = vmatpush1.msra.mxu0 %v1261
      %1329 = vmatprep.subr.mxu0 0.0
      %1330 = vmatpush1.msra.mxu0 %v1262
      %1331 = vmatprep.subr.mxu0 0.0
      %1332 = vmatpush1.msra.mxu0 %v1263
      %1333 = vmatprep.subr.mxu0 0.0
      %1334 = vmatpush1.msra.mxu0 %v1264
      %1335 = vmatprep.subr.mxu0 0.0
      %1336 = vmatpush1.msra.mxu0 %v1265
      %1337 = vmatprep.subr.mxu0 0.0
      %1338 = vmatpush1.msra.mxu0 %v1266
      %1339 = vmatprep.subr.mxu0 0.0
      %1340 = vmatpush1.msra.mxu0 %v1267
      %1341 = vmatprep.subr.mxu0 0.0
      %1342 = vmatpush1.msra.mxu0 %v1268
      %1343 = vmatprep.subr.mxu0 0.0
      %1344 = vmatpush1.msra.mxu0 %v1269
      %1345 = vmatprep.subr.mxu0 0.0
      %1346 = vmatpush1.msra.mxu0 %v1270
      %1347 = vmatprep.subr.mxu0 0.0
      %1348 = vmatpush1.msra.mxu0 %v1271
      %1349 = vmatprep.subr.mxu0 0.0
      %1350 = vmatpush1.msra.mxu0 %v1272
      %1351 = vmatprep.subr.mxu0 0.0
      %1352 = vmatpush1.msra.mxu0 %v1273
      %1353 = vmatprep.subr.mxu0 0.0
      %1354 = vmatpush1.msra.mxu0 %v1274
      %1355 = vmatprep.mubr.f32.mxu0 %v448
      %1356 = vmatmul.mubr.f32.gmra.mrb[0].mxu0 %v339
      %v1357 = vpop.f32.mrb[0].mxu0
      %v1358 = vadd.f32 0.0, %v1357
      %v1359 = vpop.f32.mrb[0].mxu0
      %1360 = vmatprep.mubr.f32.mxu0 %v450
      %1361 = vmatmul.mubr.f32.gmra.mrb[0].mxu0 %v340
      %v1362 = vpop.f32.mrb[0].mxu0
      %v1363 = vadd.f32 0.0, %v1362
      %v1364 = vpop.f32.mrb[0].mxu0
      %1365 = vmatprep.mubr.f32.mxu0 %v453
      %1366 = vmatmul.mubr.f32.gmra.mrb[0].mxu0 %v342
      %v1367 = vpop.f32.mrb[0].mxu0
      %v1368 = vadd.f32 0.0, %v1367
      %v1369 = vpop.f32.mrb[0].mxu0
      %1370 = vmatprep.mubr.f32.mxu0 %v455
      %1371 = vmatmul.mubr.f32.gmra.mrb[0].mxu0 %v343
      %v1372 = vpop.f32.mrb[0].mxu0
      %v1373 = vadd.f32 0.0, %v1372
      %v1374 = vpop.f32.mrb[0].mxu0
      %1375 = vmatprep.mubr.f32.mxu0 %v458
      %1376 = vmatmul.mubr.f32.gmra.mrb[0].mxu0 %v345
      %v1377 = vpop.f32.mrb[0].mxu0
      %v1378 = vadd.f32 0.0, %v1377
      %v1379 = vpop.f32.mrb[0].mxu0
      %1380 = vmatprep.mubr.f32.mxu0 %v460
      %1381 = vmatmul.mubr.f32.gmra.mrb[0].mxu0 %v346
      %v1382 = vpop.f32.mrb[0].mxu0
      %v1383 = vadd.f32 0.0, %v1382
      %v1384 = vpop.f32.mrb[0].mxu0
      %1385 = vmatprep.mubr.f32.mxu0 %v463
      %1386 = vmatmul.mubr.f32.gmra.mrb[0].mxu0 %v348
      %v1387 = vpop.f32.mrb[0].mxu0
      %v1388 = vadd.f32 0.0, %v1387
      %v1389 = vpop.f32.mrb[0].mxu0
      %1390 = vmatprep.mubr.f32.mxu0 %v465
      %1391 = vmatmul.mubr.f32.gmra.mrb[0].mxu0 %v349
      %v1392 = vpop.f32.mrb[0].mxu0
      %v1393 = vadd.f32 0.0, %v1392
      %v1394 = vpop.f32.mrb[0].mxu0
      %1395 = vmatprep.mubr.f32.mxu0 %v468
      %1396 = vmatmul.mubr.f32.gmra.mrb[0].mxu0 %v351
      %v1397 = vpop.f32.mrb[0].mxu0
      %v1398 = vadd.f32 0.0, %v1397
      %v1399 = vpop.f32.mrb[0].mxu0
      %1400 = vmatprep.mubr.f32.mxu0 %v470
      %1401 = vmatmul.mubr.f32.gmra.mrb[0].mxu0 %v352
      %v1402 = vpop.f32.mrb[0].mxu0
      %v1403 = vadd.f32 0.0, %v1402
      %v1404 = vpop.f32.mrb[0].mxu0
      %1405 = vmatprep.mubr.f32.mxu0 %v473
      %1406 = vmatmul.mubr.f32.gmra.mrb[0].mxu0 %v354
      %v1407 = vpop.f32.mrb[0].mxu0
      %v1408 = vadd.f32 0.0, %v1407
      %v1409 = vpop.f32.mrb[0].mxu0
      %1410 = vmatprep.mubr.f32.mxu0 %v475
      %1411 = vmatmul.mubr.f32.gmra.mrb[0].mxu0 %v355
      %v1412 = vpop.f32.mrb[0].mxu0
      %v1413 = vadd.f32 0.0, %v1412
      %v1414 = vpop.f32.mrb[0].mxu0
      %1415 = vmatprep.mubr.f32.mxu0 %v478
      %1416 = vmatmul.mubr.f32.gmra.mrb[0].mxu0 %v357
      %v1417 = vpop.f32.mrb[0].mxu0
      %v1418 = vadd.f32 0.0, %v1417
      %v1419 = vpop.f32.mrb[0].mxu0
      %1420 = vmatprep.mubr.f32.mxu0 %v480
      %1421 = vmatmul.mubr.f32.gmra.mrb[0].mxu0 %v358
      %v1422 = vpop.f32.mrb[0].mxu0
      %v1423 = vadd.f32 0.0, %v1422
      %v1424 = vpop.f32.mrb[0].mxu0
      %1425 = vmatprep.mubr.f32.mxu0 %v483
      %1426 = vmatmul.mubr.f32.gmra.mrb[0].mxu0 %v360
      %v1427 = vpop.f32.mrb[0].mxu0
      %v1428 = vadd.f32 0.0, %v1427
      %v1429 = vpop.f32.mrb[0].mxu0
      %1430 = vmatprep.mubr.f32.mxu0 %v485
      %1431 = vmatmul.mubr.f32.gmra.mrb[0].mxu0 %v361
      %v1432 = vpop.f32.mrb[0].mxu0
      %v1433 = vadd.f32 0.0, %v1432
      %v1434 = vpop.f32.mrb[0].mxu0
      %1435 = vmatprep.mubr.f32.mxu0 %v488
      %1436 = vmatmul.mubr.f32.gmra.mrb[0].mxu0 %v363
      %v1437 = vpop.f32.mrb[0].mxu0
      %v1438 = vadd.f32 0.0, %v1437
      %v1439 = vpop.f32.mrb[0].mxu0
      %1440 = vmatprep.mubr.f32.mxu0 %v490
      %1441 = vmatmul.mubr.f32.gmra.mrb[0].mxu0 %v364
      %v1442 = vpop.f32.mrb[0].mxu0
      %v1443 = vadd.f32 0.0, %v1442
      %v1444 = vpop.f32.mrb[0].mxu0
      %1445 = vmatprep.mubr.f32.mxu0 %v493
      %1446 = vmatmul.mubr.f32.gmra.mrb[0].mxu0 %v366
      %v1447 = vpop.f32.mrb[0].mxu0
      %v1448 = vadd.f32 0.0, %v1447
      %v1449 = vpop.f32.mrb[0].mxu0
      %1450 = vmatprep.mubr.f32.mxu0 %v495
      %1451 = vmatmul.mubr.f32.gmra.mrb[0].mxu0 %v367
      %v1452 = vpop.f32.mrb[0].mxu0
      %v1453 = vadd.f32 0.0, %v1452
      %v1454 = vpop.f32.mrb[0].mxu0
      %1455 = vmatprep.mubr.f32.mxu0 %v498
      %1456 = vmatmul.mubr.f32.gmra.mrb[0].mxu0 %v369
      %v1457 = vpop.f32.mrb[0].mxu0
      %v1458 = vadd.f32 0.0, %v1457
      %v1459 = vpop.f32.mrb[0].mxu0
      %1460 = vmatprep.mubr.f32.mxu0 %v500
      %1461 = vmatmul.mubr.f32.gmra.mrb[0].mxu0 %v370
      %v1462 = vpop.f32.mrb[0].mxu0
      %v1463 = vadd.f32 0.0, %v1462
      %v1464 = vpop.f32.mrb[0].mxu0
      %1465 = vmatprep.mubr.f32.mxu0 %v503
      %1466 = vmatmul.mubr.f32.gmra.mrb[0].mxu0 %v372
      %v1467 = vpop.f32.mrb[0].mxu0
      %v1468 = vadd.f32 0.0, %v1467
      %v1469 = vpop.f32.mrb[0].mxu0
      %1470 = vmatprep.mubr.f32.mxu0 %v505
      %1471 = vmatmul.mubr.f32.gmra.mrb[0].mxu0 %v373
      %v1472 = vpop.f32.mrb[0].mxu0
      %v1473 = vadd.f32 0.0, %v1472
      %v1474 = vpop.f32.mrb[0].mxu0
      %1475 = vmatprep.mubr.f32.mxu0 %v508
      %1476 = vmatmul.mubr.f32.gmra.mrb[0].mxu0 %v375
      %v1477 = vpop.f32.mrb[0].mxu0
      %v1478 = vadd.f32 0.0, %v1477
      %v1479 = vpop.f32.mrb[0].mxu0
      %1480 = vmatprep.mubr.f32.mxu0 %v510
      %1481 = vmatmul.mubr.f32.gmra.mrb[0].mxu0 %v376
      %v1482 = vpop.f32.mrb[0].mxu0
      %v1483 = vadd.f32 0.0, %v1482
      %v1484 = vpop.f32.mrb[0].mxu0
      %1485 = vmatprep.mubr.f32.mxu0 %v513
      %1486 = vmatmul.mubr.f32.gmra.mrb[0].mxu0 %v378
      %v1487 = vpop.f32.mrb[0].mxu0
      %v1488 = vadd.f32 0.0, %v1487
      %v1489 = vpop.f32.mrb[0].mxu0
      %1490 = vmatprep.mubr.f32.mxu0 %v515
      %1491 = vmatmul.mubr.f32.gmra.mrb[0].mxu0 %v379
      %v1492 = vpop.f32.mrb[0].mxu0
      %v1493 = vadd.f32 0.0, %v1492
      %v1494 = vpop.f32.mrb[0].mxu0
      %1495 = vmatprep.mubr.f32.mxu0 %v714
      %1496 = vmatmul.mubr.f32.gmra.mrb[0].mxu0 %v381
      %v1497 = vpop.f32.mrb[0].mxu0
      %v1498 = vadd.f32 0.0, %v1497
      %v1499 = vpop.f32.mrb[0].mxu0
      %1500 = vmatprep.mubr.f32.mxu0 %v716
      %1501 = vmatmul.mubr.f32.gmra.mrb[0].mxu0 %v382
      %v1502 = vpop.f32.mrb[0].mxu0
      %v1503 = vadd.f32 0.0, %v1502
      %v1504 = vpop.f32.mrb[0].mxu0
      %1505 = vmatprep.mubr.f32.mxu0 %v1230
      %1506 = vmatmul.mubr.f32.gmra.mrb[0].mxu0 %v384
      %v1507 = vpop.f32.mrb[0].mxu0
      %v1508 = vadd.f32 0.0, %v1507
      %v1509 = vpop.f32.mrb[0].mxu0
      %1510 = vmatprep.mubr.f32.mxu0 %v1232
      %1511 = vmatmul.mubr.f32.gmra.mrb[0].mxu0 %v385
      %v1512 = vpop.f32.mrb[0].mxu0
      %v1513 = vadd.f32 0.0, %v1512
      %v1514 = vpop.f32.mrb[0].mxu0
      %1515 = vdwg.mxu0
      %1516 = vmatprep.subr.mxu0 0.0
      %1517 = vmatpush1.msra.mxu0 %v1275
      %1518 = vmatprep.subr.mxu0 0.0
      %1519 = vmatpush1.msra.mxu0 %v1276
      %1520 = vmatprep.subr.mxu0 0.0
      %1521 = vmatpush1.msra.mxu0 %v1277
      %1522 = vmatprep.subr.mxu0 0.0
      %1523 = vmatpush1.msra.mxu0 %v1278
      %1524 = vmatprep.subr.mxu0 0.0
      %1525 = vmatpush1.msra.mxu0 %v1279
      %1526 = vmatprep.subr.mxu0 0.0
      %1527 = vmatpush1.msra.mxu0 %v1280
      %1528 = vmatprep.subr.mxu0 0.0
      %1529 = vmatpush1.msra.mxu0 %v1281
      %1530 = vmatprep.subr.mxu0 0.0
      %1531 = vmatpush1.msra.mxu0 %v1282
      %1532 = vmatprep.subr.mxu0 0.0
      %1533 = vmatpush1.msra.mxu0 %v1283
      %1534 = vmatprep.subr.mxu0 0.0
      %1535 = vmatpush1.msra.mxu0 %v1284
      %1536 = vmatprep.subr.mxu0 0.0
      %1537 = vmatpush1.msra.mxu0 %v1285
      %1538 = vmatprep.subr.mxu0 0.0
      %1539 = vmatpush1.msra.mxu0 %v1286
      %1540 = vmatprep.subr.mxu0 0.0
      %1541 = vmatpush1.msra.mxu0 %v1287
      %1542 = vmatprep.subr.mxu0 0.0
      %1543 = vmatpush1.msra.mxu0 %v1288
      %1544 = vmatprep.subr.mxu0 0.0
      %1545 = vmatpush1.msra.mxu0 %v1289
      %1546 = vmatprep.subr.mxu0 0.0
      %1547 = vmatpush1.msra.mxu0 %v1290
      %1548 = vmatprep.subr.mxu0 0.0
      %1549 = vmatpush1.msra.mxu0 0.0
      %1550 = vmatprep.subr.mxu0 0.0
      %1551 = vmatpush1.msra.mxu0 0.0
      %1552 = vmatprep.subr.mxu0 0.0
      %1553 = vmatpush1.msra.mxu0 0.0
      %1554 = vmatprep.subr.mxu0 0.0
      %1555 = vmatpush1.msra.mxu0 0.0
      %1556 = vmatprep.subr.mxu0 0.0
      %1557 = vmatpush1.msra.mxu0 0.0
      %1558 = vmatprep.subr.mxu0 0.0
      %1559 = vmatpush1.msra.mxu0 0.0
      %1560 = vmatprep.subr.mxu0 0.0
      %1561 = vmatpush1.msra.mxu0 0.0
      %1562 = vmatprep.subr.mxu0 0.0
      %1563 = vmatpush1.msra.mxu0 0.0
      %1564 = vmatprep.subr.mxu0 0.0
      %1565 = vmatpush1.msra.mxu0 0.0
      %1566 = vmatprep.subr.mxu0 0.0
      %1567 = vmatpush1.msra.mxu0 0.0
      %1568 = vmatprep.subr.mxu0 0.0
      %1569 = vmatpush1.msra.mxu0 0.0
      %1570 = vmatprep.subr.mxu0 0.0
      %1571 = vmatpush1.msra.mxu0 0.0
      %1572 = vmatprep.subr.mxu0 0.0
      %1573 = vmatpush1.msra.mxu0 0.0
      %1574 = vmatprep.subr.mxu0 0.0
      %1575 = vmatpush1.msra.mxu0 0.0
      %1576 = vmatprep.subr.mxu0 0.0
      %1577 = vmatpush1.msra.mxu0 0.0
      %1578 = vmatprep.subr.mxu0 0.0
      %1579 = vmatpush1.msra.mxu0 0.0
      %1580 = vmatprep.mubr.f32.mxu0 0.0
      %1581 = vmatmul.mubr.f32.gmra.mrb[0].mxu0 %v561
      %v1582 = vpop.f32.mrb[0].mxu0
      %v1583 = vadd.f32 %v1358, %v1582
      %v1584 = vpop.f32.mrb[0].mxu0
      %1585 = vmatprep.mubr.f32.mxu0 0.0
      %1586 = vmatmul.mubr.f32.gmra.mrb[0].mxu0 %v563
      %v1587 = vpop.f32.mrb[0].mxu0
      %v1588 = vadd.f32 %v1363, %v1587
      %v1589 = vpop.f32.mrb[0].mxu0
      %1590 = vmatprep.mubr.f32.mxu0 0.0
      %1591 = vmatmul.mubr.f32.gmra.mrb[0].mxu0 %v566
      %v1592 = vpop.f32.mrb[0].mxu0
      %v1593 = vadd.f32 %v1368, %v1592
      %v1594 = vpop.f32.mrb[0].mxu0
      %1595 = vmatprep.mubr.f32.mxu0 0.0
      %1596 = vmatmul.mubr.f32.gmra.mrb[0].mxu0 %v568
      %v1597 = vpop.f32.mrb[0].mxu0
      %v1598 = vadd.f32 %v1373, %v1597
      %v1599 = vpop.f32.mrb[0].mxu0
      %1600 = vmatprep.mubr.f32.mxu0 0.0
      %1601 = vmatmul.mubr.f32.gmra.mrb[0].mxu0 %v571
      %v1602 = vpop.f32.mrb[0].mxu0
      %v1603 = vadd.f32 %v1378, %v1602
      %v1604 = vpop.f32.mrb[0].mxu0
      %1605 = vmatprep.mubr.f32.mxu0 0.0
      %1606 = vmatmul.mubr.f32.gmra.mrb[0].mxu0 %v573
      %v1607 = vpop.f32.mrb[0].mxu0
      %v1608 = vadd.f32 %v1383, %v1607
      %v1609 = vpop.f32.mrb[0].mxu0
      %1610 = vmatprep.mubr.f32.mxu0 0.0
      %1611 = vmatmul.mubr.f32.gmra.mrb[0].mxu0 %v576
      %v1612 = vpop.f32.mrb[0].mxu0
      %v1613 = vadd.f32 %v1388, %v1612
      %v1614 = vpop.f32.mrb[0].mxu0
      %1615 = vmatprep.mubr.f32.mxu0 0.0
      %1616 = vmatmul.mubr.f32.gmra.mrb[0].mxu0 %v578
      %v1617 = vpop.f32.mrb[0].mxu0
      %v1618 = vadd.f32 %v1393, %v1617
      %v1619 = vpop.f32.mrb[0].mxu0
      %1620 = vmatprep.mubr.f32.mxu0 0.0
      %1621 = vmatmul.mubr.f32.gmra.mrb[0].mxu0 %v581
      %v1622 = vpop.f32.mrb[0].mxu0
      %v1623 = vadd.f32 %v1398, %v1622
      %v1624 = vpop.f32.mrb[0].mxu0
      %1625 = vmatprep.mubr.f32.mxu0 0.0
      %1626 = vmatmul.mubr.f32.gmra.mrb[0].mxu0 %v583
      %v1627 = vpop.f32.mrb[0].mxu0
      %v1628 = vadd.f32 %v1403, %v1627
      %v1629 = vpop.f32.mrb[0].mxu0
      %1630 = vmatprep.mubr.f32.mxu0 0.0
      %1631 = vmatmul.mubr.f32.gmra.mrb[0].mxu0 %v586
      %v1632 = vpop.f32.mrb[0].mxu0
      %v1633 = vadd.f32 %v1408, %v1632
      %v1634 = vpop.f32.mrb[0].mxu0
      %1635 = vmatprep.mubr.f32.mxu0 0.0
      %1636 = vmatmul.mubr.f32.gmra.mrb[0].mxu0 %v588
      %v1637 = vpop.f32.mrb[0].mxu0
      %v1638 = vadd.f32 %v1413, %v1637
      %v1639 = vpop.f32.mrb[0].mxu0
      %1640 = vmatprep.mubr.f32.mxu0 0.0
      %1641 = vmatmul.mubr.f32.gmra.mrb[0].mxu0 %v591
      %v1642 = vpop.f32.mrb[0].mxu0
      %v1643 = vadd.f32 %v1418, %v1642
      %v1644 = vpop.f32.mrb[0].mxu0
      %1645 = vmatprep.mubr.f32.mxu0 0.0
      %1646 = vmatmul.mubr.f32.gmra.mrb[0].mxu0 %v593
      %v1647 = vpop.f32.mrb[0].mxu0
      %v1648 = vadd.f32 %v1423, %v1647
      %v1649 = vpop.f32.mrb[0].mxu0
      %1650 = vmatprep.mubr.f32.mxu0 0.0
      %1651 = vmatmul.mubr.f32.gmra.mrb[0].mxu0 %v596
      %v1652 = vpop.f32.mrb[0].mxu0
      %v1653 = vadd.f32 %v1428, %v1652
      %v1654 = vpop.f32.mrb[0].mxu0
      %1655 = vmatprep.mubr.f32.mxu0 0.0
      %1656 = vmatmul.mubr.f32.gmra.mrb[0].mxu0 %v598
      %v1657 = vpop.f32.mrb[0].mxu0
      %v1658 = vadd.f32 %v1433, %v1657
      %v1659 = vpop.f32.mrb[0].mxu0
      %1660 = vmatprep.mubr.f32.mxu0 0.0
      %1661 = vmatmul.mubr.f32.gmra.mrb[0].mxu0 %v601
      %v1662 = vpop.f32.mrb[0].mxu0
      %v1663 = vadd.f32 %v1438, %v1662
      %v1664 = vpop.f32.mrb[0].mxu0
      %1665 = vmatprep.mubr.f32.mxu0 0.0
      %1666 = vmatmul.mubr.f32.gmra.mrb[0].mxu0 %v603
      %v1667 = vpop.f32.mrb[0].mxu0
      %v1668 = vadd.f32 %v1443, %v1667
      %v1669 = vpop.f32.mrb[0].mxu0
      %1670 = vmatprep.mubr.f32.mxu0 0.0
      %1671 = vmatmul.mubr.f32.gmra.mrb[0].mxu0 %v606
      %v1672 = vpop.f32.mrb[0].mxu0
      %v1673 = vadd.f32 %v1448, %v1672
      %v1674 = vpop.f32.mrb[0].mxu0
      %1675 = vmatprep.mubr.f32.mxu0 0.0
      %1676 = vmatmul.mubr.f32.gmra.mrb[0].mxu0 %v608
      %v1677 = vpop.f32.mrb[0].mxu0
      %v1678 = vadd.f32 %v1453, %v1677
      %v1679 = vpop.f32.mrb[0].mxu0
      %1680 = vmatprep.mubr.f32.mxu0 0.0
      %1681 = vmatmul.mubr.f32.gmra.mrb[0].mxu0 %v611
      %v1682 = vpop.f32.mrb[0].mxu0
      %v1683 = vadd.f32 %v1458, %v1682
      %v1684 = vpop.f32.mrb[0].mxu0
      %1685 = vmatprep.mubr.f32.mxu0 0.0
      %1686 = vmatmul.mubr.f32.gmra.mrb[0].mxu0 %v613
      %v1687 = vpop.f32.mrb[0].mxu0
      %v1688 = vadd.f32 %v1463, %v1687
      %v1689 = vpop.f32.mrb[0].mxu0
      %1690 = vmatprep.mubr.f32.mxu0 0.0
      %1691 = vmatmul.mubr.f32.gmra.mrb[0].mxu0 %v616
      %v1692 = vpop.f32.mrb[0].mxu0
      %v1693 = vadd.f32 %v1468, %v1692
      %v1694 = vpop.f32.mrb[0].mxu0
      %1695 = vmatprep.mubr.f32.mxu0 0.0
      %1696 = vmatmul.mubr.f32.gmra.mrb[0].mxu0 %v618
      %v1697 = vpop.f32.mrb[0].mxu0
      %v1698 = vadd.f32 %v1473, %v1697
      %v1699 = vpop.f32.mrb[0].mxu0
      %1700 = vmatprep.mubr.f32.mxu0 0.0
      %1701 = vmatmul.mubr.f32.gmra.mrb[0].mxu0 %v621
      %v1702 = vpop.f32.mrb[0].mxu0
      %v1703 = vadd.f32 %v1478, %v1702
      %v1704 = vpop.f32.mrb[0].mxu0
      %1705 = vmatprep.mubr.f32.mxu0 0.0
      %1706 = vmatmul.mubr.f32.gmra.mrb[0].mxu0 %v623
      %v1707 = vpop.f32.mrb[0].mxu0
      %v1708 = vadd.f32 %v1483, %v1707
      %v1709 = vpop.f32.mrb[0].mxu0
      %1710 = vmatprep.mubr.f32.mxu0 0.0
      %1711 = vmatmul.mubr.f32.gmra.mrb[0].mxu0 %v626
      %v1712 = vpop.f32.mrb[0].mxu0
      %v1713 = vadd.f32 %v1488, %v1712
      %v1714 = vpop.f32.mrb[0].mxu0
      %1715 = vmatprep.mubr.f32.mxu0 0.0
      %1716 = vmatmul.mubr.f32.gmra.mrb[0].mxu0 %v628
      %v1717 = vpop.f32.mrb[0].mxu0
      %v1718 = vadd.f32 %v1493, %v1717
      %v1719 = vpop.f32.mrb[0].mxu0
      %1720 = vmatprep.mubr.f32.mxu0 0.0
      %1721 = vmatmul.mubr.f32.gmra.mrb[0].mxu0 %v721
      %v1722 = vpop.f32.mrb[0].mxu0
      %v1723 = vadd.f32 %v1498, %v1722
      %v1724 = vpop.f32.mrb[0].mxu0
      %1725 = vmatprep.mubr.f32.mxu0 0.0
      %1726 = vmatmul.mubr.f32.gmra.mrb[0].mxu0 %v723
      %v1727 = vpop.f32.mrb[0].mxu0
      %v1728 = vadd.f32 %v1503, %v1727
      %v1729 = vpop.f32.mrb[0].mxu0
      %1730 = vmatprep.mubr.f32.mxu0 0.0
      %1731 = vmatmul.mubr.f32.gmra.mrb[0].mxu0 %v1237
      %v1732 = vpop.f32.mrb[0].mxu0
      %v1733 = vadd.f32 %v1508, %v1732
      %v1734 = vpop.f32.mrb[0].mxu0
      %1735 = vmatprep.mubr.f32.mxu0 0.0
      %1736 = vmatmul.mubr.f32.gmra.mrb[0].mxu0 %v1239
      %v1737 = vpop.f32.mrb[0].mxu0
      %v1738 = vadd.f32 %v1513, %v1737
      %v1739 = vpop.f32.mrb[0].mxu0
      %1740 = vdwg.mxu0
      %1741 = vmatprep.subr.mxu0 0.0
      %1742 = vmatpush1.msra.mxu0 %v661
      %1743 = vmatprep.subr.mxu0 0.0
      %1744 = vmatpush1.msra.mxu0 %v662
      %1745 = vmatprep.subr.mxu0 0.0
      %1746 = vmatpush1.msra.mxu0 %v663
      %1747 = vmatprep.subr.mxu0 0.0
      %1748 = vmatpush1.msra.mxu0 %v664
      %1749 = vmatprep.subr.mxu0 0.0
      %1750 = vmatpush1.msra.mxu0 %v665
      %1751 = vmatprep.subr.mxu0 0.0
      %1752 = vmatpush1.msra.mxu0 %v666
      %1753 = vmatprep.subr.mxu0 0.0
      %1754 = vmatpush1.msra.mxu0 %v667
      %1755 = vmatprep.subr.mxu0 0.0
      %1756 = vmatpush1.msra.mxu0 %v668
      %1757 = vmatprep.subr.mxu0 0.0
      %1758 = vmatpush1.msra.mxu0 %v669
      %1759 = vmatprep.subr.mxu0 0.0
      %1760 = vmatpush1.msra.mxu0 %v670
      %1761 = vmatprep.subr.mxu0 0.0
      %1762 = vmatpush1.msra.mxu0 %v671
      %1763 = vmatprep.subr.mxu0 0.0
      %1764 = vmatpush1.msra.mxu0 %v672
      %1765 = vmatprep.subr.mxu0 0.0
      %1766 = vmatpush1.msra.mxu0 %v673
      %1767 = vmatprep.subr.mxu0 0.0
      %1768 = vmatpush1.msra.mxu0 %v674
      %1769 = vmatprep.subr.mxu0 0.0
      %1770 = vmatpush1.msra.mxu0 %v675
      %1771 = vmatprep.subr.mxu0 0.0
      %1772 = vmatpush1.msra.mxu0 %v676
      %1773 = vmatprep.subr.mxu0 0.0
      %1774 = vmatpush1.msra.mxu0 %v677
      %1775 = vmatprep.subr.mxu0 0.0
      %1776 = vmatpush1.msra.mxu0 %v678
      %1777 = vmatprep.subr.mxu0 0.0
      %1778 = vmatpush1.msra.mxu0 %v679
      %1779 = vmatprep.subr.mxu0 0.0
      %1780 = vmatpush1.msra.mxu0 %v680
      %1781 = vmatprep.subr.mxu0 0.0
      %1782 = vmatpush1.msra.mxu0 %v681
      %1783 = vmatprep.subr.mxu0 0.0
      %1784 = vmatpush1.msra.mxu0 %v682
      %1785 = vmatprep.subr.mxu0 0.0
      %1786 = vmatpush1.msra.mxu0 %v683
      %1787 = vmatprep.subr.mxu0 0.0
      %1788 = vmatpush1.msra.mxu0 %v684
      %1789 = vmatprep.subr.mxu0 0.0
      %1790 = vmatpush1.msra.mxu0 %v685
      %1791 = vmatprep.subr.mxu0 0.0
      %1792 = vmatpush1.msra.mxu0 %v686
      %1793 = vmatprep.subr.mxu0 0.0
      %1794 = vmatpush1.msra.mxu0 %v687
      %1795 = vmatprep.subr.mxu0 0.0
      %1796 = vmatpush1.msra.mxu0 %v688
      %1797 = vmatprep.subr.mxu0 0.0
      %1798 = vmatpush1.msra.mxu0 %v689
      %1799 = vmatprep.subr.mxu0 0.0
      %1800 = vmatpush1.msra.mxu0 %v690
      %1801 = vmatprep.subr.mxu0 0.0
      %1802 = vmatpush1.msra.mxu0 %v691
      %1803 = vmatprep.subr.mxu0 0.0
      %1804 = vmatpush1.msra.mxu0 %v692
      %1805 = vmatprep.mubr.f32.mxu0 %v438
      %1806 = vmatmul.mubr.f32.gmra.mrb[0].mxu0 %v333
      %v1807 = vpop.f32.mrb[0].mxu0
      %v1808 = vadd.f32 %v1067, %v1807
      %v1809 = vpop.f32.mrb[0].mxu0
      %1810 = vmatprep.mubr.f32.mxu0 %v440
      %1811 = vmatmul.mubr.f32.gmra.mrb[0].mxu0 %v334
      %v1812 = vpop.f32.mrb[0].mxu0
      %v1813 = vadd.f32 %v1072, %v1812
      %v1814 = vpop.f32.mrb[0].mxu0
      %1815 = vmatprep.mubr.f32.mxu0 %v443
      %1816 = vmatmul.mubr.f32.gmra.mrb[0].mxu0 %v336
      %v1817 = vpop.f32.mrb[0].mxu0
      %v1818 = vadd.f32 %v1077, %v1817
      %v1819 = vpop.f32.mrb[0].mxu0
      %1820 = vmatprep.mubr.f32.mxu0 %v445
      %1821 = vmatmul.mubr.f32.gmra.mrb[0].mxu0 %v337
      %v1822 = vpop.f32.mrb[0].mxu0
      %v1823 = vadd.f32 %v1082, %v1822
      %v1824 = vpop.f32.mrb[0].mxu0
      %1825 = vmatprep.mubr.f32.mxu0 %v448
      %1826 = vmatmul.mubr.f32.gmra.mrb[0].mxu0 %v339
      %v1827 = vpop.f32.mrb[0].mxu0
      %v1828 = vadd.f32 %v1087, %v1827
      %v1829 = vpop.f32.mrb[0].mxu0
      %1830 = vmatprep.mubr.f32.mxu0 %v450
      %1831 = vmatmul.mubr.f32.gmra.mrb[0].mxu0 %v340
      %v1832 = vpop.f32.mrb[0].mxu0
      %v1833 = vadd.f32 %v1092, %v1832
      %v1834 = vpop.f32.mrb[0].mxu0
      %1835 = vmatprep.mubr.f32.mxu0 %v453
      %1836 = vmatmul.mubr.f32.gmra.mrb[0].mxu0 %v342
      %v1837 = vpop.f32.mrb[0].mxu0
      %v1838 = vadd.f32 %v1097, %v1837
      %v1839 = vpop.f32.mrb[0].mxu0
      %1840 = vmatprep.mubr.f32.mxu0 %v455
      %1841 = vmatmul.mubr.f32.gmra.mrb[0].mxu0 %v343
      %v1842 = vpop.f32.mrb[0].mxu0
      %v1843 = vadd.f32 %v1102, %v1842
      %v1844 = vpop.f32.mrb[0].mxu0
      %1845 = vmatprep.mubr.f32.mxu0 %v458
      %1846 = vmatmul.mubr.f32.gmra.mrb[0].mxu0 %v345
      %v1847 = vpop.f32.mrb[0].mxu0
      %v1848 = vadd.f32 %v1107, %v1847
      %v1849 = vpop.f32.mrb[0].mxu0
      %1850 = vmatprep.mubr.f32.mxu0 %v460
      %1851 = vmatmul.mubr.f32.gmra.mrb[0].mxu0 %v346
      %v1852 = vpop.f32.mrb[0].mxu0
      %v1853 = vadd.f32 %v1112, %v1852
      %v1854 = vpop.f32.mrb[0].mxu0
      %1855 = vmatprep.mubr.f32.mxu0 %v463
      %1856 = vmatmul.mubr.f32.gmra.mrb[0].mxu0 %v348
      %v1857 = vpop.f32.mrb[0].mxu0
      %v1858 = vadd.f32 %v1117, %v1857
      %v1859 = vpop.f32.mrb[0].mxu0
      %1860 = vmatprep.mubr.f32.mxu0 %v465
      %1861 = vmatmul.mubr.f32.gmra.mrb[0].mxu0 %v349
      %v1862 = vpop.f32.mrb[0].mxu0
      %v1863 = vadd.f32 %v1122, %v1862
      %v1864 = vpop.f32.mrb[0].mxu0
      %1865 = vmatprep.mubr.f32.mxu0 %v468
      %1866 = vmatmul.mubr.f32.gmra.mrb[0].mxu0 %v351
      %v1867 = vpop.f32.mrb[0].mxu0
      %v1868 = vadd.f32 %v1127, %v1867
      %v1869 = vpop.f32.mrb[0].mxu0
      %1870 = vmatprep.mubr.f32.mxu0 %v470
      %1871 = vmatmul.mubr.f32.gmra.mrb[0].mxu0 %v352
      %v1872 = vpop.f32.mrb[0].mxu0
      %v1873 = vadd.f32 %v1132, %v1872
      %v1874 = vpop.f32.mrb[0].mxu0
      %1875 = vmatprep.mubr.f32.mxu0 %v473
      %1876 = vmatmul.mubr.f32.gmra.mrb[0].mxu0 %v354
      %v1877 = vpop.f32.mrb[0].mxu0
      %v1878 = vadd.f32 %v1137, %v1877
      %v1879 = vpop.f32.mrb[0].mxu0
      %1880 = vmatprep.mubr.f32.mxu0 %v475
      %1881 = vmatmul.mubr.f32.gmra.mrb[0].mxu0 %v355
      %v1882 = vpop.f32.mrb[0].mxu0
      %v1883 = vadd.f32 %v1142, %v1882
      %v1884 = vpop.f32.mrb[0].mxu0
      %1885 = vmatprep.mubr.f32.mxu0 %v478
      %1886 = vmatmul.mubr.f32.gmra.mrb[0].mxu0 %v357
      %v1887 = vpop.f32.mrb[0].mxu0
      %v1888 = vadd.f32 %v1147, %v1887
      %v1889 = vpop.f32.mrb[0].mxu0
      %1890 = vmatprep.mubr.f32.mxu0 %v480
      %1891 = vmatmul.mubr.f32.gmra.mrb[0].mxu0 %v358
      %v1892 = vpop.f32.mrb[0].mxu0
      %v1893 = vadd.f32 %v1152, %v1892
      %v1894 = vpop.f32.mrb[0].mxu0
      %1895 = vmatprep.mubr.f32.mxu0 %v483
      %1896 = vmatmul.mubr.f32.gmra.mrb[0].mxu0 %v360
      %v1897 = vpop.f32.mrb[0].mxu0
      %v1898 = vadd.f32 %v1157, %v1897
      %v1899 = vpop.f32.mrb[0].mxu0
      %1900 = vmatprep.mubr.f32.mxu0 %v485
      %1901 = vmatmul.mubr.f32.gmra.mrb[0].mxu0 %v361
      %v1902 = vpop.f32.mrb[0].mxu0
      %v1903 = vadd.f32 %v1162, %v1902
      %v1904 = vpop.f32.mrb[0].mxu0
      %1905 = vmatprep.mubr.f32.mxu0 %v488
      %1906 = vmatmul.mubr.f32.gmra.mrb[0].mxu0 %v363
      %v1907 = vpop.f32.mrb[0].mxu0
      %v1908 = vadd.f32 %v1167, %v1907
      %v1909 = vpop.f32.mrb[0].mxu0
      %1910 = vmatprep.mubr.f32.mxu0 %v490
      %1911 = vmatmul.mubr.f32.gmra.mrb[0].mxu0 %v364
      %v1912 = vpop.f32.mrb[0].mxu0
      %v1913 = vadd.f32 %v1172, %v1912
      %v1914 = vpop.f32.mrb[0].mxu0
      %1915 = vmatprep.mubr.f32.mxu0 %v493
      %1916 = vmatmul.mubr.f32.gmra.mrb[0].mxu0 %v366
      %v1917 = vpop.f32.mrb[0].mxu0
      %v1918 = vadd.f32 %v1177, %v1917
      %v1919 = vpop.f32.mrb[0].mxu0
      %1920 = vmatprep.mubr.f32.mxu0 %v495
      %1921 = vmatmul.mubr.f32.gmra.mrb[0].mxu0 %v367
      %v1922 = vpop.f32.mrb[0].mxu0
      %v1923 = vadd.f32 %v1182, %v1922
      %v1924 = vpop.f32.mrb[0].mxu0
      %1925 = vmatprep.mubr.f32.mxu0 %v498
      %1926 = vmatmul.mubr.f32.gmra.mrb[0].mxu0 %v369
      %v1927 = vpop.f32.mrb[0].mxu0
      %v1928 = vadd.f32 %v1187, %v1927
      %v1929 = vpop.f32.mrb[0].mxu0
      %1930 = vmatprep.mubr.f32.mxu0 %v500
      %1931 = vmatmul.mubr.f32.gmra.mrb[0].mxu0 %v370
      %v1932 = vpop.f32.mrb[0].mxu0
      %v1933 = vadd.f32 %v1192, %v1932
      %v1934 = vpop.f32.mrb[0].mxu0
      %1935 = vmatprep.mubr.f32.mxu0 %v503
      %1936 = vmatmul.mubr.f32.gmra.mrb[0].mxu0 %v372
      %v1937 = vpop.f32.mrb[0].mxu0
      %v1938 = vadd.f32 %v1197, %v1937
      %v1939 = vpop.f32.mrb[0].mxu0
      %1940 = vmatprep.mubr.f32.mxu0 %v505
      %1941 = vmatmul.mubr.f32.gmra.mrb[0].mxu0 %v373
      %v1942 = vpop.f32.mrb[0].mxu0
      %v1943 = vadd.f32 %v1202, %v1942
      %v1944 = vpop.f32.mrb[0].mxu0
      %1945 = vmatprep.mubr.f32.mxu0 %v508
      %1946 = vmatmul.mubr.f32.gmra.mrb[0].mxu0 %v375
      %v1947 = vpop.f32.mrb[0].mxu0
      %v1948 = vadd.f32 %v1207, %v1947
      %v1949 = vpop.f32.mrb[0].mxu0
      %1950 = vmatprep.mubr.f32.mxu0 %v510
      %1951 = vmatmul.mubr.f32.gmra.mrb[0].mxu0 %v376
      %v1952 = vpop.f32.mrb[0].mxu0
      %v1953 = vadd.f32 %v1212, %v1952
      %v1954 = vpop.f32.mrb[0].mxu0
      %1955 = vmatprep.mubr.f32.mxu0 %v513
      %1956 = vmatmul.mubr.f32.gmra.mrb[0].mxu0 %v378
      %v1957 = vpop.f32.mrb[0].mxu0
      %v1958 = vadd.f32 %v1217, %v1957
      %v1959 = vpop.f32.mrb[0].mxu0
      %1960 = vmatprep.mubr.f32.mxu0 %v515
      %1961 = vmatmul.mubr.f32.gmra.mrb[0].mxu0 %v379
      %v1962 = vpop.f32.mrb[0].mxu0
      %v1963 = vadd.f32 %v1222, %v1962
      %v1964 = vpop.f32.mrb[0].mxu0
      %1965 = vdwg.mxu0
      %1966 = vmatprep.subr.mxu0 0.0
      %1967 = vmatpush1.msra.mxu0 %v693
      %1968 = vmatprep.subr.mxu0 0.0
      %1969 = vmatpush1.msra.mxu0 %v694
      %1970 = vmatprep.subr.mxu0 0.0
      %1971 = vmatpush1.msra.mxu0 %v695
      %1972 = vmatprep.subr.mxu0 0.0
      %1973 = vmatpush1.msra.mxu0 %v696
      %1974 = vmatprep.subr.mxu0 0.0
      %1975 = vmatpush1.msra.mxu0 %v697
      %1976 = vmatprep.subr.mxu0 0.0
      %1977 = vmatpush1.msra.mxu0 %v698
      %1978 = vmatprep.subr.mxu0 0.0
      %1979 = vmatpush1.msra.mxu0 %v699
      %1980 = vmatprep.subr.mxu0 0.0
      %1981 = vmatpush1.msra.mxu0 %v700
      %1982 = vmatprep.subr.mxu0 0.0
      %1983 = vmatpush1.msra.mxu0 %v701
      %1984 = vmatprep.subr.mxu0 0.0
      %1985 = vmatpush1.msra.mxu0 %v702
      %1986 = vmatprep.subr.mxu0 0.0
      %1987 = vmatpush1.msra.mxu0 %v703
      %1988 = vmatprep.subr.mxu0 0.0
      %1989 = vmatpush1.msra.mxu0 %v704
      %1990 = vmatprep.subr.mxu0 0.0
      %1991 = vmatpush1.msra.mxu0 %v705
      %1992 = vmatprep.subr.mxu0 0.0
      %1993 = vmatpush1.msra.mxu0 %v706
      %1994 = vmatprep.subr.mxu0 0.0
      %1995 = vmatpush1.msra.mxu0 %v707
      %1996 = vmatprep.subr.mxu0 0.0
      %1997 = vmatpush1.msra.mxu0 %v708
      %1998 = vmatprep.subr.mxu0 0.0
      %1999 = vmatpush1.msra.mxu0 0.0
      %2000 = vmatprep.subr.mxu0 0.0
      %2001 = vmatpush1.msra.mxu0 0.0
      %2002 = vmatprep.subr.mxu0 0.0
      %2003 = vmatpush1.msra.mxu0 0.0
      %2004 = vmatprep.subr.mxu0 0.0
      %2005 = vmatpush1.msra.mxu0 0.0
      %2006 = vmatprep.subr.mxu0 0.0
      %2007 = vmatpush1.msra.mxu0 0.0
      %2008 = vmatprep.subr.mxu0 0.0
      %2009 = vmatpush1.msra.mxu0 0.0
      %2010 = vmatprep.subr.mxu0 0.0
      %2011 = vmatpush1.msra.mxu0 0.0
      %2012 = vmatprep.subr.mxu0 0.0
      %2013 = vmatpush1.msra.mxu0 0.0
      %2014 = vmatprep.subr.mxu0 0.0
      %2015 = vmatpush1.msra.mxu0 0.0
      %2016 = vmatprep.subr.mxu0 0.0
      %2017 = vmatpush1.msra.mxu0 0.0
      %2018 = vmatprep.subr.mxu0 0.0
      %2019 = vmatpush1.msra.mxu0 0.0
      %2020 = vmatprep.subr.mxu0 0.0
      %2021 = vmatpush1.msra.mxu0 0.0
      %2022 = vmatprep.subr.mxu0 0.0
      %2023 = vmatpush1.msra.mxu0 0.0
      %2024 = vmatprep.subr.mxu0 0.0
      %2025 = vmatpush1.msra.mxu0 0.0
      %2026 = vmatprep.subr.mxu0 0.0
      %2027 = vmatpush1.msra.mxu0 0.0
      %2028 = vmatprep.subr.mxu0 0.0
      %2029 = vmatpush1.msra.mxu0 0.0
      %2030 = vmatprep.mubr.f32.mxu0 0.0
      %2031 = vmatmul.mubr.f32.gmra.mrb[0].mxu0 %v551
      %v2032 = vpop.f32.mrb[0].mxu0
      %v2033 = vadd.f32 %v1808, %v2032
      %v2034 = vpop.f32.mrb[0].mxu0
      %2035 = vmatprep.mubr.f32.mxu0 0.0
      %2036 = vmatmul.mubr.f32.gmra.mrb[0].mxu0 %v553
      %v2037 = vpop.f32.mrb[0].mxu0
      %v2038 = vadd.f32 %v1813, %v2037
      %v2039 = vpop.f32.mrb[0].mxu0
      %2040 = vmatprep.mubr.f32.mxu0 0.0
      %2041 = vmatmul.mubr.f32.gmra.mrb[0].mxu0 %v556
      %v2042 = vpop.f32.mrb[0].mxu0
      %v2043 = vadd.f32 %v1818, %v2042
      %v2044 = vpop.f32.mrb[0].mxu0
      %2045 = vmatprep.mubr.f32.mxu0 0.0
      %2046 = vmatmul.mubr.f32.gmra.mrb[0].mxu0 %v558
      %v2047 = vpop.f32.mrb[0].mxu0
      %v2048 = vadd.f32 %v1823, %v2047
      %v2049 = vpop.f32.mrb[0].mxu0
      %2050 = vmatprep.mubr.f32.mxu0 0.0
      %2051 = vmatmul.mubr.f32.gmra.mrb[0].mxu0 %v561
      %v2052 = vpop.f32.mrb[0].mxu0
      %v2053 = vadd.f32 %v1828, %v2052
      %v2054 = vpop.f32.mrb[0].mxu0
      %2055 = vmatprep.mubr.f32.mxu0 0.0
      %2056 = vmatmul.mubr.f32.gmra.mrb[0].mxu0 %v563
      %v2057 = vpop.f32.mrb[0].mxu0
      %v2058 = vadd.f32 %v1833, %v2057
      %v2059 = vpop.f32.mrb[0].mxu0
      %2060 = vmatprep.mubr.f32.mxu0 0.0
      %2061 = vmatmul.mubr.f32.gmra.mrb[0].mxu0 %v566
      %v2062 = vpop.f32.mrb[0].mxu0
      %v2063 = vadd.f32 %v1838, %v2062
      %v2064 = vpop.f32.mrb[0].mxu0
      %2065 = vmatprep.mubr.f32.mxu0 0.0
      %2066 = vmatmul.mubr.f32.gmra.mrb[0].mxu0 %v568
      %v2067 = vpop.f32.mrb[0].mxu0
      %v2068 = vadd.f32 %v1843, %v2067
      %v2069 = vpop.f32.mrb[0].mxu0
      %2070 = vmatprep.mubr.f32.mxu0 0.0
      %2071 = vmatmul.mubr.f32.gmra.mrb[0].mxu0 %v571
      %v2072 = vpop.f32.mrb[0].mxu0
      %v2073 = vadd.f32 %v1848, %v2072
      %v2074 = vpop.f32.mrb[0].mxu0
      %2075 = vmatprep.mubr.f32.mxu0 0.0
      %2076 = vmatmul.mubr.f32.gmra.mrb[0].mxu0 %v573
      %v2077 = vpop.f32.mrb[0].mxu0
      %v2078 = vadd.f32 %v1853, %v2077
      %v2079 = vpop.f32.mrb[0].mxu0
      %2080 = vmatprep.mubr.f32.mxu0 0.0
      %2081 = vmatmul.mubr.f32.gmra.mrb[0].mxu0 %v576
      %v2082 = vpop.f32.mrb[0].mxu0
      %v2083 = vadd.f32 %v1858, %v2082
      %v2084 = vpop.f32.mrb[0].mxu0
      %2085 = vmatprep.mubr.f32.mxu0 0.0
      %2086 = vmatmul.mubr.f32.gmra.mrb[0].mxu0 %v578
      %v2087 = vpop.f32.mrb[0].mxu0
      %v2088 = vadd.f32 %v1863, %v2087
      %v2089 = vpop.f32.mrb[0].mxu0
      %2090 = vmatprep.mubr.f32.mxu0 0.0
      %2091 = vmatmul.mubr.f32.gmra.mrb[0].mxu0 %v581
      %v2092 = vpop.f32.mrb[0].mxu0
      %v2093 = vadd.f32 %v1868, %v2092
      %v2094 = vpop.f32.mrb[0].mxu0
      %2095 = vmatprep.mubr.f32.mxu0 0.0
      %2096 = vmatmul.mubr.f32.gmra.mrb[0].mxu0 %v583
      %v2097 = vpop.f32.mrb[0].mxu0
      %v2098 = vadd.f32 %v1873, %v2097
      %v2099 = vpop.f32.mrb[0].mxu0
      %2100 = vmatprep.mubr.f32.mxu0 0.0
      %2101 = vmatmul.mubr.f32.gmra.mrb[0].mxu0 %v586
      %v2102 = vpop.f32.mrb[0].mxu0
      %v2103 = vadd.f32 %v1878, %v2102
      %v2104 = vpop.f32.mrb[0].mxu0
      %2105 = vmatprep.mubr.f32.mxu0 0.0
      %2106 = vmatmul.mubr.f32.gmra.mrb[0].mxu0 %v588
      %v2107 = vpop.f32.mrb[0].mxu0
      %v2108 = vadd.f32 %v1883, %v2107
      %v2109 = vpop.f32.mrb[0].mxu0
      %2110 = vmatprep.mubr.f32.mxu0 0.0
      %2111 = vmatmul.mubr.f32.gmra.mrb[0].mxu0 %v591
      %v2112 = vpop.f32.mrb[0].mxu0
      %v2113 = vadd.f32 %v1888, %v2112
      %v2114 = vpop.f32.mrb[0].mxu0
      %2115 = vmatprep.mubr.f32.mxu0 0.0
      %2116 = vmatmul.mubr.f32.gmra.mrb[0].mxu0 %v593
      %v2117 = vpop.f32.mrb[0].mxu0
      %v2118 = vadd.f32 %v1893, %v2117
      %v2119 = vpop.f32.mrb[0].mxu0
      %2120 = vmatprep.mubr.f32.mxu0 0.0
      %2121 = vmatmul.mubr.f32.gmra.mrb[0].mxu0 %v596
      %v2122 = vpop.f32.mrb[0].mxu0
      %v2123 = vadd.f32 %v1898, %v2122
      %v2124 = vpop.f32.mrb[0].mxu0
      %2125 = vmatprep.mubr.f32.mxu0 0.0
      %2126 = vmatmul.mubr.f32.gmra.mrb[0].mxu0 %v598
      %v2127 = vpop.f32.mrb[0].mxu0
      %v2128 = vadd.f32 %v1903, %v2127
      %v2129 = vpop.f32.mrb[0].mxu0
      %2130 = vmatprep.mubr.f32.mxu0 0.0
      %2131 = vmatmul.mubr.f32.gmra.mrb[0].mxu0 %v601
      %v2132 = vpop.f32.mrb[0].mxu0
      %v2133 = vadd.f32 %v1908, %v2132
      %v2134 = vpop.f32.mrb[0].mxu0
      %2135 = vmatprep.mubr.f32.mxu0 0.0
      %2136 = vmatmul.mubr.f32.gmra.mrb[0].mxu0 %v603
      %v2137 = vpop.f32.mrb[0].mxu0
      %v2138 = vadd.f32 %v1913, %v2137
      %v2139 = vpop.f32.mrb[0].mxu0
      %2140 = vmatprep.mubr.f32.mxu0 0.0
      %2141 = vmatmul.mubr.f32.gmra.mrb[0].mxu0 %v606
      %v2142 = vpop.f32.mrb[0].mxu0
      %v2143 = vadd.f32 %v1918, %v2142
      %v2144 = vpop.f32.mrb[0].mxu0
      %2145 = vmatprep.mubr.f32.mxu0 0.0
      %2146 = vmatmul.mubr.f32.gmra.mrb[0].mxu0 %v608
      %v2147 = vpop.f32.mrb[0].mxu0
      %v2148 = vadd.f32 %v1923, %v2147
      %v2149 = vpop.f32.mrb[0].mxu0
      %2150 = vmatprep.mubr.f32.mxu0 0.0
      %2151 = vmatmul.mubr.f32.gmra.mrb[0].mxu0 %v611
      %v2152 = vpop.f32.mrb[0].mxu0
      %v2153 = vadd.f32 %v1928, %v2152
      %v2154 = vpop.f32.mrb[0].mxu0
      %2155 = vmatprep.mubr.f32.mxu0 0.0
      %2156 = vmatmul.mubr.f32.gmra.mrb[0].mxu0 %v613
      %v2157 = vpop.f32.mrb[0].mxu0
      %v2158 = vadd.f32 %v1933, %v2157
      %v2159 = vpop.f32.mrb[0].mxu0
      %2160 = vmatprep.mubr.f32.mxu0 0.0
      %2161 = vmatmul.mubr.f32.gmra.mrb[0].mxu0 %v616
      %v2162 = vpop.f32.mrb[0].mxu0
      %v2163 = vadd.f32 %v1938, %v2162
      %v2164 = vpop.f32.mrb[0].mxu0
      %2165 = vmatprep.mubr.f32.mxu0 0.0
      %2166 = vmatmul.mubr.f32.gmra.mrb[0].mxu0 %v618
      %v2167 = vpop.f32.mrb[0].mxu0
      %v2168 = vadd.f32 %v1943, %v2167
      %v2169 = vpop.f32.mrb[0].mxu0
      %2170 = vmatprep.mubr.f32.mxu0 0.0
      %2171 = vmatmul.mubr.f32.gmra.mrb[0].mxu0 %v621
      %v2172 = vpop.f32.mrb[0].mxu0
      %v2173 = vadd.f32 %v1948, %v2172
      %v2174 = vpop.f32.mrb[0].mxu0
      %2175 = vmatprep.mubr.f32.mxu0 0.0
      %2176 = vmatmul.mubr.f32.gmra.mrb[0].mxu0 %v623
      %v2177 = vpop.f32.mrb[0].mxu0
      %v2178 = vadd.f32 %v1953, %v2177
      %v2179 = vpop.f32.mrb[0].mxu0
      %2180 = vmatprep.mubr.f32.mxu0 0.0
      %2181 = vmatmul.mubr.f32.gmra.mrb[0].mxu0 %v626
      %v2182 = vpop.f32.mrb[0].mxu0
      %v2183 = vadd.f32 %v1958, %v2182
      %v2184 = vpop.f32.mrb[0].mxu0
      %2185 = vmatprep.mubr.f32.mxu0 0.0
      %2186 = vmatmul.mubr.f32.gmra.mrb[0].mxu0 %v628
      %v2187 = vpop.f32.mrb[0].mxu0
      %v2188 = vadd.f32 %v1963, %v2187
      %v2189 = vpop.f32.mrb[0].mxu0
      %2190 = vdwg.mxu0
      %v2191 = vadd.f32 %v2033, %v1583
      %v2192 = vadd.f32 %v2038, %v1588
      %v2193 = vadd.f32 %v2043, %v1593
      %v2194 = vadd.f32 %v2048, %v1598
      %v2195 = vadd.f32 %v2053, %v1603
      %v2196 = vadd.f32 %v2058, %v1608
      %v2197 = vadd.f32 %v2063, %v1613
      %v2198 = vadd.f32 %v2068, %v1618
      %v2199 = vadd.f32 %v2073, %v1623
      %v2200 = vadd.f32 %v2078, %v1628
      %v2201 = vadd.f32 %v2083, %v1633
      %v2202 = vadd.f32 %v2088, %v1638
      %v2203 = vadd.f32 %v2093, %v1643
      %v2204 = vadd.f32 %v2098, %v1648
      %v2205 = vadd.f32 %v2103, %v1653
      %v2206 = vadd.f32 %v2108, %v1658
      %v2207 = vadd.f32 %v2113, %v1663
      %v2208 = vadd.f32 %v2118, %v1668
      %v2209 = vadd.f32 %v2123, %v1673
      %v2210 = vadd.f32 %v2128, %v1678
      %v2211 = vadd.f32 %v2133, %v1683
      %v2212 = vadd.f32 %v2138, %v1688
      %v2213 = vadd.f32 %v2143, %v1693
      %v2214 = vadd.f32 %v2148, %v1698
      %v2215 = vadd.f32 %v2153, %v1703
      %v2216 = vadd.f32 %v2158, %v1708
      %v2217 = vadd.f32 %v2163, %v1713
      %v2218 = vadd.f32 %v2168, %v1718
      %v2219 = vadd.f32 %v2173, %v1723
      %v2220 = vadd.f32 %v2178, %v1728
      %v2221 = vadd.f32 %v2183, %v1733
      %v2222 = vadd.f32 %v2188, %v1738
      %v2223 = vld [vmem:[%s2] sm:$0x1]
      %v2225 = vlaneseq
      %v2226 = vshrl.u32 %v2225, 7
      %v2227 = vsub.s32 0, %v2226
      %v2228 = vrot.slane %v2223, %v2227
      %v2230 = vadd.f32 %v2191, %v2228
      %v2231 = vadd.f32 %v2192, %v2228
      %v2232 = vadd.f32 %v2193, %v2228
      %v2233 = vadd.f32 %v2194, %v2228
      %v2234 = vadd.f32 %v2195, %v2228
      %v2235 = vadd.f32 %v2196, %v2228
      %v2236 = vadd.f32 %v2197, %v2228
      %v2237 = vadd.f32 %v2198, %v2228
      %v2238 = vadd.f32 %v2199, %v2228
      %v2239 = vadd.f32 %v2200, %v2228
      %v2240 = vadd.f32 %v2201, %v2228
      %v2241 = vadd.f32 %v2202, %v2228
      %v2242 = vadd.f32 %v2203, %v2228
      %v2243 = vadd.f32 %v2204, %v2228
      %v2244 = vadd.f32 %v2205, %v2228
      %v2245 = vadd.f32 %v2206, %v2228
      %v2246 = vadd.f32 %v2207, %v2228
      %v2247 = vadd.f32 %v2208, %v2228
      %v2248 = vadd.f32 %v2209, %v2228
      %v2249 = vadd.f32 %v2210, %v2228
      %v2250 = vadd.f32 %v2211, %v2228
      %v2251 = vadd.f32 %v2212, %v2228
      %v2252 = vadd.f32 %v2213, %v2228
      %v2253 = vadd.f32 %v2214, %v2228
      %v2254 = vadd.f32 %v2215, %v2228
      %v2255 = vadd.f32 %v2216, %v2228
      %v2256 = vadd.f32 %v2217, %v2228
      %v2257 = vadd.f32 %v2218, %v2228
      %v2258 = vadd.f32 %v2219, %v2228
      %v2259 = vadd.f32 %v2220, %v2228
      %v2260 = vadd.f32 %v2221, %v2228
      %v2261 = vadd.f32 %v2222, %v2228
      %v2262 = vmax.f32 %v2230, 0.0
      %v2263 = vmax.f32 %v2231, 0.0
      %v2264 = vmax.f32 %v2232, 0.0
      %v2265 = vmax.f32 %v2233, 0.0
      %v2266 = vmax.f32 %v2234, 0.0
      %v2267 = vmax.f32 %v2235, 0.0
      %v2268 = vmax.f32 %v2236, 0.0
      %v2269 = vmax.f32 %v2237, 0.0
      %v2270 = vmax.f32 %v2238, 0.0
      %v2271 = vmax.f32 %v2239, 0.0
      %v2272 = vmax.f32 %v2240, 0.0
      %v2273 = vmax.f32 %v2241, 0.0
      %v2274 = vmax.f32 %v2242, 0.0
      %v2275 = vmax.f32 %v2243, 0.0
      %v2276 = vmax.f32 %v2244, 0.0
      %v2277 = vmax.f32 %v2245, 0.0
      %v2278 = vmax.f32 %v2246, 0.0
      %v2279 = vmax.f32 %v2247, 0.0
      %v2280 = vmax.f32 %v2248, 0.0
      %v2281 = vmax.f32 %v2249, 0.0
      %v2282 = vmax.f32 %v2250, 0.0
      %v2283 = vmax.f32 %v2251, 0.0
      %v2284 = vmax.f32 %v2252, 0.0
      %v2285 = vmax.f32 %v2253, 0.0
      %v2286 = vmax.f32 %v2254, 0.0
      %v2287 = vmax.f32 %v2255, 0.0
      %v2288 = vmax.f32 %v2256, 0.0
      %v2289 = vmax.f32 %v2257, 0.0
      %v2290 = vmax.f32 %v2258, 0.0
      %v2291 = vmax.f32 %v2259, 0.0
      %v2292 = vmax.f32 %v2260, 0.0
      %v2293 = vmax.f32 %v2261, 0.0
      %2294 = vst [vmem:[%s300 + $0x1] sm:$0xff] %v2262
      %2295 = vst [vmem:[%s300 + $0x9] sm:$0xff] %v2263
      %2296 = vst [vmem:[%s300 + $0x19] sm:$0xff] %v2264
      %2297 = vst [vmem:[%s300 + $0x21] sm:$0xff] %v2265
      %2298 = vst [vmem:[%s300 + $0x31] sm:$0xff] %v2266
      %2299 = vst [vmem:[%s300 + $0x39] sm:$0xff] %v2267
      %2300 = vst [vmem:[%s300 + $0x49] sm:$0xff] %v2268
      %2301 = vst [vmem:[%s300 + $0x51] sm:$0xff] %v2269
      %2302 = vst [vmem:[%s300 + $0x61] sm:$0xff] %v2270
      %2303 = vst [vmem:[%s300 + $0x69] sm:$0xff] %v2271
      %2304 = vst [vmem:[%s300 + $0x79] sm:$0xff] %v2272
      %2305 = vst [vmem:[%s300 + $0x81] sm:$0xff] %v2273
      %2306 = vst [vmem:[%s300 + $0x91] sm:$0xff] %v2274
      %2307 = vst [vmem:[%s300 + $0x99] sm:$0xff] %v2275
      %2308 = vst [vmem:[%s300 + $0xa9] sm:$0xff] %v2276
      %2309 = vst [vmem:[%s300 + $0xb1] sm:$0xff] %v2277
      %2310 = vst [vmem:[%s300 + $0xc1] sm:$0xff] %v2278
      %2311 = vst [vmem:[%s300 + $0xc9] sm:$0xff] %v2279
      %2312 = vst [vmem:[%s300 + $0xd9] sm:$0xff] %v2280
      %2313 = vst [vmem:[%s300 + $0xe1] sm:$0xff] %v2281
      %2314 = vst [vmem:[%s300 + $0xf1] sm:$0xff] %v2282
      %2315 = vst [vmem:[%s300 + $0xf9] sm:$0xff] %v2283
      %2316 = vst [vmem:[%s300 + $0x109] sm:$0xff] %v2284
      %2317 = vst [vmem:[%s300 + $0x111] sm:$0xff] %v2285
      %2318 = vst [vmem:[%s300 + $0x121] sm:$0xff] %v2286
      %2319 = vst [vmem:[%s300 + $0x129] sm:$0xff] %v2287
      %2320 = vst [vmem:[%s300 + $0x139] sm:$0xff] %v2288
      %2321 = vst [vmem:[%s300 + $0x141] sm:$0xff] %v2289
      %2322 = vst [vmem:[%s300 + $0x151] sm:$0xff] %v2290
      %2323 = vst [vmem:[%s300 + $0x159] sm:$0xff] %v2291
      %2324 = vst [vmem:[%s300 + $0x169] sm:$0xff] %v2292
      %2325 = vst [vmem:[%s300 + $0x171] sm:$0xff] %v2293
      %v2326 = vld [vmem:[#allocation2] sm:$0xff]
      %v2327 = vld [vmem:[#allocation2 + $0x8] sm:$0xff]
      %v2328 = vld [vmem:[#allocation2 + $0x10] sm:$0x3]
      %v2329 = vld [vmem:[#allocation2 + $0x18] sm:$0xff]
      %v2330 = vld [vmem:[#allocation2 + $0x20] sm:$0xff]
      %v2331 = vld [vmem:[#allocation2 + $0x28] sm:$0x3]
      %v2332 = vld [vmem:[#allocation2 + $0x30] sm:$0xff]
      %v2333 = vld [vmem:[#allocation2 + $0x38] sm:$0xff]
      %v2334 = vld [vmem:[#allocation2 + $0x40] sm:$0x3]
      %v2335 = vld [vmem:[#allocation2 + $0x48] sm:$0xff]
      %v2336 = vld [vmem:[#allocation2 + $0x50] sm:$0xff]
      %v2337 = vld [vmem:[#allocation2 + $0x58] sm:$0x3]
      %v2338 = vld [vmem:[#allocation2 + $0x60] sm:$0xff]
      %v2339 = vld [vmem:[#allocation2 + $0x68] sm:$0xff]
      %v2340 = vld [vmem:[#allocation2 + $0x70] sm:$0x3]
      %v2341 = vld [vmem:[#allocation2 + $0x78] sm:$0xff]
      %v2342 = vld [vmem:[#allocation2 + $0x80] sm:$0xff]
      %v2343 = vld [vmem:[#allocation2 + $0x88] sm:$0x3]
      %v2344 = vld [vmem:[#allocation2 + $0x90] sm:$0xff]
      %v2345 = vld [vmem:[#allocation2 + $0x98] sm:$0xff]
      %v2346 = vld [vmem:[#allocation2 + $0xa0] sm:$0x3]
      %v2347 = vld [vmem:[#allocation2 + $0xa8] sm:$0xff]
      %v2348 = vld [vmem:[#allocation2 + $0xb0] sm:$0xff]
      %v2349 = vld [vmem:[#allocation2 + $0xb8] sm:$0x3]
      %v2350 = vld [vmem:[#allocation2 + $0xc0] sm:$0xff]
      %v2351 = vld [vmem:[#allocation2 + $0xc8] sm:$0xff]
      %v2352 = vld [vmem:[#allocation2 + $0xd0] sm:$0x3]
      %v2353 = vld [vmem:[#allocation2 + $0xd8] sm:$0xff]
      %v2354 = vld [vmem:[#allocation2 + $0xe0] sm:$0xff]
      %v2355 = vld [vmem:[#allocation2 + $0xe8] sm:$0x3]
      %v2356 = vld [vmem:[#allocation2 + $0xf0] sm:$0xff]
      %v2357 = vld [vmem:[#allocation2 + $0xf8] sm:$0xff]
      %v2358 = vld [vmem:[#allocation2 + $0x100] sm:$0x3]
      %v2359 = vld [vmem:[#allocation2 + $0x108] sm:$0xff]
      %v2360 = vld [vmem:[#allocation2 + $0x110] sm:$0xff]
      %v2361 = vld [vmem:[#allocation2 + $0x118] sm:$0x3]
      %v2362 = vld [vmem:[#allocation2 + $0x120] sm:$0xff]
      %v2363 = vld [vmem:[#allocation2 + $0x128] sm:$0xff]
      %v2364 = vld [vmem:[#allocation2 + $0x130] sm:$0x3]
      %v2365 = vld [vmem:[#allocation2 + $0x138] sm:$0xff]
      %v2366 = vld [vmem:[#allocation2 + $0x140] sm:$0xff]
      %v2367 = vld [vmem:[#allocation2 + $0x148] sm:$0x3]
      %v2368 = vld [vmem:[#allocation2 + $0x150] sm:$0xff]
      %v2369 = vld [vmem:[#allocation2 + $0x158] sm:$0xff]
      %v2370 = vld [vmem:[#allocation2 + $0x160] sm:$0x3]
      %v2371 = vld [vmem:[#allocation2 + $0x168] sm:$0xff]
      %v2372 = vld [vmem:[#allocation2 + $0x170] sm:$0xff]
      %v2373 = vld [vmem:[#allocation2 + $0x178] sm:$0x3]
      %v2374 = vld [vmem:[#allocation2 + $0x180] sm:$0xff]
      %v2375 = vld [vmem:[#allocation2 + $0x188] sm:$0xff]
      %v2376 = vld [vmem:[#allocation2 + $0x190] sm:$0x3]
      %v2377 = vld [vmem:[#allocation2 + $0x198] sm:$0xff]
      %v2378 = vld [vmem:[#allocation2 + $0x1a0] sm:$0xff]
      %v2379 = vld [vmem:[#allocation2 + $0x1a8] sm:$0x3]
      %v2428 = vrot.slane %v2326, 1
      %v2429 = vrot.slane %v2327, 1
      %v2430 = vsel %vm435, %v2428, %v2429
      %v2431 = vrot.slane %v2328, 1
      %v2432 = vsel %vm435, %v2429, %v2431
      %v2433 = vrot.slane %v2329, 1
      %v2434 = vrot.slane %v2330, 1
      %v2435 = vsel %vm435, %v2433, %v2434
      %v2436 = vrot.slane %v2331, 1
      %v2437 = vsel %vm435, %v2434, %v2436
      %v2438 = vrot.slane %v2332, 1
      %v2439 = vrot.slane %v2333, 1
      %v2440 = vsel %vm435, %v2438, %v2439
      %v2441 = vrot.slane %v2334, 1
      %v2442 = vsel %vm435, %v2439, %v2441
      %v2443 = vrot.slane %v2335, 1
      %v2444 = vrot.slane %v2336, 1
      %v2445 = vsel %vm435, %v2443, %v2444
      %v2446 = vrot.slane %v2337, 1
      %v2447 = vsel %vm435, %v2444, %v2446
      %v2448 = vrot.slane %v2338, 1
      %v2449 = vrot.slane %v2339, 1
      %v2450 = vsel %vm435, %v2448, %v2449
      %v2451 = vrot.slane %v2340, 1
      %v2452 = vsel %vm435, %v2449, %v2451
      %v2453 = vrot.slane %v2341, 1
      %v2454 = vrot.slane %v2342, 1
      %v2455 = vsel %vm435, %v2453, %v2454
      %v2456 = vrot.slane %v2343, 1
      %v2457 = vsel %vm435, %v2454, %v2456
      %v2458 = vrot.slane %v2344, 1
      %v2459 = vrot.slane %v2345, 1
      %v2460 = vsel %vm435, %v2458, %v2459
      %v2461 = vrot.slane %v2346, 1
      %v2462 = vsel %vm435, %v2459, %v2461
      %v2463 = vrot.slane %v2347, 1
      %v2464 = vrot.slane %v2348, 1
      %v2465 = vsel %vm435, %v2463, %v2464
      %v2466 = vrot.slane %v2349, 1
      %v2467 = vsel %vm435, %v2464, %v2466
      %v2468 = vrot.slane %v2350, 1
      %v2469 = vrot.slane %v2351, 1
      %v2470 = vsel %vm435, %v2468, %v2469
      %v2471 = vrot.slane %v2352, 1
      %v2472 = vsel %vm435, %v2469, %v2471
      %v2473 = vrot.slane %v2353, 1
      %v2474 = vrot.slane %v2354, 1
      %v2475 = vsel %vm435, %v2473, %v2474
      %v2476 = vrot.slane %v2355, 1
      %v2477 = vsel %vm435, %v2474, %v2476
      %v2478 = vrot.slane %v2356, 1
      %v2479 = vrot.slane %v2357, 1
      %v2480 = vsel %vm435, %v2478, %v2479
      %v2481 = vrot.slane %v2358, 1
      %v2482 = vsel %vm435, %v2479, %v2481
      %v2483 = vrot.slane %v2359, 1
      %v2484 = vrot.slane %v2360, 1
      %v2485 = vsel %vm435, %v2483, %v2484
      %v2486 = vrot.slane %v2361, 1
      %v2487 = vsel %vm435, %v2484, %v2486
      %v2488 = vrot.slane %v2362, 1
      %v2489 = vrot.slane %v2363, 1
      %v2490 = vsel %vm435, %v2488, %v2489
      %v2491 = vrot.slane %v2364, 1
      %v2492 = vsel %vm435, %v2489, %v2491
      %v2493 = vrot.slane %v2365, 1
      %v2494 = vrot.slane %v2366, 1
      %v2495 = vsel %vm435, %v2493, %v2494
      %v2496 = vrot.slane %v2367, 1
      %v2497 = vsel %vm435, %v2494, %v2496
      %v2498 = vrot.slane %v2368, 1
      %v2499 = vrot.slane %v2369, 1
      %v2500 = vsel %vm435, %v2498, %v2499
      %v2501 = vrot.slane %v2370, 1
      %v2502 = vsel %vm435, %v2499, %v2501
      %v2503 = vrot.slane %v2371, 1
      %v2504 = vrot.slane %v2372, 1
      %v2505 = vsel %vm435, %v2503, %v2504
      %v2506 = vrot.slane %v2373, 1
      %v2507 = vsel %vm435, %v2504, %v2506
      %v2540 = vrot.slane %v2326, 2
      %v2541 = vrot.slane %v2327, 2
      %v2542 = vsel %vm548, %v2540, %v2541
      %v2543 = vrot.slane %v2328, 2
      %v2544 = vsel %vm548, %v2541, %v2543
      %v2545 = vrot.slane %v2329, 2
      %v2546 = vrot.slane %v2330, 2
      %v2547 = vsel %vm548, %v2545, %v2546
      %v2548 = vrot.slane %v2331, 2
      %v2549 = vsel %vm548, %v2546, %v2548
      %v2550 = vrot.slane %v2332, 2
      %v2551 = vrot.slane %v2333, 2
      %v2552 = vsel %vm548, %v2550, %v2551
      %v2553 = vrot.slane %v2334, 2
      %v2554 = vsel %vm548, %v2551, %v2553
      %v2555 = vrot.slane %v2335, 2
      %v2556 = vrot.slane %v2336, 2
      %v2557 = vsel %vm548, %v2555, %v2556
      %v2558 = vrot.slane %v2337, 2
      %v2559 = vsel %vm548, %v2556, %v2558
      %v2560 = vrot.slane %v2338, 2
      %v2561 = vrot.slane %v2339, 2
      %v2562 = vsel %vm548, %v2560, %v2561
      %v2563 = vrot.slane %v2340, 2
      %v2564 = vsel %vm548, %v2561, %v2563
      %v2565 = vrot.slane %v2341, 2
      %v2566 = vrot.slane %v2342, 2
      %v2567 = vsel %vm548, %v2565, %v2566
      %v2568 = vrot.slane %v2343, 2
      %v2569 = vsel %vm548, %v2566, %v2568
      %v2570 = vrot.slane %v2344, 2
      %v2571 = vrot.slane %v2345, 2
      %v2572 = vsel %vm548, %v2570, %v2571
      %v2573 = vrot.slane %v2346, 2
      %v2574 = vsel %vm548, %v2571, %v2573
      %v2575 = vrot.slane %v2347, 2
      %v2576 = vrot.slane %v2348, 2
      %v2577 = vsel %vm548, %v2575, %v2576
      %v2578 = vrot.slane %v2349, 2
      %v2579 = vsel %vm548, %v2576, %v2578
      %v2580 = vrot.slane %v2350, 2
      %v2581 = vrot.slane %v2351, 2
      %v2582 = vsel %vm548, %v2580, %v2581
      %v2583 = vrot.slane %v2352, 2
      %v2584 = vsel %vm548, %v2581, %v2583
      %v2585 = vrot.slane %v2353, 2
      %v2586 = vrot.slane %v2354, 2
      %v2587 = vsel %vm548, %v2585, %v2586
      %v2588 = vrot.slane %v2355, 2
      %v2589 = vsel %vm548, %v2586, %v2588
      %v2590 = vrot.slane %v2356, 2
      %v2591 = vrot.slane %v2357, 2
      %v2592 = vsel %vm548, %v2590, %v2591
      %v2593 = vrot.slane %v2358, 2
      %v2594 = vsel %vm548, %v2591, %v2593
      %v2595 = vrot.slane %v2359, 2
      %v2596 = vrot.slane %v2360, 2
      %v2597 = vsel %vm548, %v2595, %v2596
      %v2598 = vrot.slane %v2361, 2
      %v2599 = vsel %vm548, %v2596, %v2598
      %v2600 = vrot.slane %v2362, 2
      %v2601 = vrot.slane %v2363, 2
      %v2602 = vsel %vm548, %v2600, %v2601
      %v2603 = vrot.slane %v2364, 2
      %v2604 = vsel %vm548, %v2601, %v2603
      %v2605 = vrot.slane %v2365, 2
      %v2606 = vrot.slane %v2366, 2
      %v2607 = vsel %vm548, %v2605, %v2606
      %v2608 = vrot.slane %v2367, 2
      %v2609 = vsel %vm548, %v2606, %v2608
      %v2610 = vrot.slane %v2368, 2
      %v2611 = vrot.slane %v2369, 2
      %v2612 = vsel %vm548, %v2610, %v2611
      %v2613 = vrot.slane %v2370, 2
      %v2614 = vsel %vm548, %v2611, %v2613
      %v2615 = vrot.slane %v2371, 2
      %v2616 = vrot.slane %v2372, 2
      %v2617 = vsel %vm548, %v2615, %v2616
      %v2618 = vrot.slane %v2373, 2
      %v2619 = vsel %vm548, %v2616, %v2618
      %v2652 = vld [vmem:[%s3] sm:$0xff]
      %v2653 = vld [vmem:[%s3 + $0x8] sm:$0xff]
      %v2654 = vld [vmem:[%s3 + $0x10] sm:$0xff]
      %v2655 = vld [vmem:[%s3 + $0x18] sm:$0xff]
      %v2656 = vld [vmem:[%s3 + $0x20] sm:$0xff]
      %v2657 = vld [vmem:[%s3 + $0x28] sm:$0xff]
      %v2658 = vld [vmem:[%s3 + $0x30] sm:$0xff]
      %v2659 = vld [vmem:[%s3 + $0x38] sm:$0xff]
      %v2660 = vld [vmem:[%s3 + $0x40] sm:$0xff]
      %v2661 = vld [vmem:[%s3 + $0x48] sm:$0xff]
      %v2662 = vld [vmem:[%s3 + $0x50] sm:$0xff]
      %v2663 = vld [vmem:[%s3 + $0x58] sm:$0xff]
      %v2664 = vld [vmem:[%s3 + $0x60] sm:$0xff]
      %v2665 = vld [vmem:[%s3 + $0x68] sm:$0xff]
      %v2666 = vld [vmem:[%s3 + $0x70] sm:$0xff]
      %v2667 = vld [vmem:[%s3 + $0x78] sm:$0xff]
      %v2668 = vld [vmem:[%s3 + $0x80] sm:$0xff]
      %v2669 = vld [vmem:[%s3 + $0x88] sm:$0xff]
      %v2670 = vld [vmem:[%s3 + $0x90] sm:$0xff]
      %v2671 = vld [vmem:[%s3 + $0x98] sm:$0xff]
      %v2672 = vld [vmem:[%s3 + $0xa0] sm:$0xff]
      %v2673 = vld [vmem:[%s3 + $0xa8] sm:$0xff]
      %v2674 = vld [vmem:[%s3 + $0xb0] sm:$0xff]
      %v2675 = vld [vmem:[%s3 + $0xb8] sm:$0xff]
      %v2676 = vld [vmem:[%s3 + $0xc0] sm:$0xff]
      %v2677 = vld [vmem:[%s3 + $0xc8] sm:$0xff]
      %v2678 = vld [vmem:[%s3 + $0xd0] sm:$0xff]
      %v2679 = vld [vmem:[%s3 + $0xd8] sm:$0xff]
      %v2680 = vld [vmem:[%s3 + $0xe0] sm:$0xff]
      %v2681 = vld [vmem:[%s3 + $0xe8] sm:$0xff]
      %v2682 = vld [vmem:[%s3 + $0xf0] sm:$0xff]
      %v2683 = vld [vmem:[%s3 + $0xf8] sm:$0xff]
      %v2684 = vld [vmem:[%s3 + $0x100] sm:$0xff]
      %v2685 = vld [vmem:[%s3 + $0x108] sm:$0xff]
      %v2686 = vld [vmem:[%s3 + $0x110] sm:$0xff]
      %v2687 = vld [vmem:[%s3 + $0x118] sm:$0xff]
      %v2688 = vld [vmem:[%s3 + $0x120] sm:$0xff]
      %v2689 = vld [vmem:[%s3 + $0x128] sm:$0xff]
      %v2690 = vld [vmem:[%s3 + $0x130] sm:$0xff]
      %v2691 = vld [vmem:[%s3 + $0x138] sm:$0xff]
      %v2692 = vld [vmem:[%s3 + $0x140] sm:$0xff]
      %v2693 = vld [vmem:[%s3 + $0x148] sm:$0xff]
      %v2694 = vld [vmem:[%s3 + $0x150] sm:$0xff]
      %v2695 = vld [vmem:[%s3 + $0x158] sm:$0xff]
      %v2696 = vld [vmem:[%s3 + $0x160] sm:$0xff]
      %v2697 = vld [vmem:[%s3 + $0x168] sm:$0xff]
      %v2698 = vld [vmem:[%s3 + $0x170] sm:$0xff]
      %v2699 = vld [vmem:[%s3 + $0x178] sm:$0xff]
      %v2703 = vrot.slane %v2374, 1
      %v2704 = vrot.slane %v2375, 1
      %v2705 = vsel %vm435, %v2703, %v2704
      %v2706 = vrot.slane %v2376, 1
      %v2707 = vsel %vm435, %v2704, %v2706
      %v2710 = vrot.slane %v2374, 2
      %v2711 = vrot.slane %v2375, 2
      %v2712 = vsel %vm548, %v2710, %v2711
      %v2713 = vrot.slane %v2376, 2
      %v2714 = vsel %vm548, %v2711, %v2713
      %s2717 = scalar_lea.vmem %s3, 384
      %v2718 = vld [vmem:[%s2717] sm:$0xff]
      %v2719 = vld [vmem:[%s2717 + $0x8] sm:$0xff]
      %v2720 = vld [vmem:[%s2717 + $0x10] sm:$0xff]
      %v2721 = vld [vmem:[%s2717 + $0x18] sm:$0xff]
      %v2722 = vld [vmem:[%s2717 + $0x20] sm:$0xff]
      %v2723 = vld [vmem:[%s2717 + $0x28] sm:$0xff]
      %v2724 = vld [vmem:[%s2717 + $0x30] sm:$0xff]
      %v2725 = vld [vmem:[%s2717 + $0x38] sm:$0xff]
      %v2726 = vld [vmem:[%s2717 + $0x40] sm:$0xff]
      %v2727 = vld [vmem:[%s2717 + $0x48] sm:$0xff]
      %v2728 = vld [vmem:[%s2717 + $0x50] sm:$0xff]
      %v2729 = vld [vmem:[%s2717 + $0x58] sm:$0xff]
      %v2730 = vld [vmem:[%s2717 + $0x60] sm:$0xff]
      %v2731 = vld [vmem:[%s2717 + $0x68] sm:$0xff]
      %v2732 = vld [vmem:[%s2717 + $0x70] sm:$0xff]
      %v2733 = vld [vmem:[%s2717 + $0x78] sm:$0xff]
      %v2734 = vld [vmem:[%s2717 + $0x80] sm:$0xff]
      %v2735 = vld [vmem:[%s2717 + $0x88] sm:$0xff]
      %v2736 = vld [vmem:[%s2717 + $0x90] sm:$0xff]
      %v2737 = vld [vmem:[%s2717 + $0x98] sm:$0xff]
      %v2738 = vld [vmem:[%s2717 + $0xa0] sm:$0xff]
      %v2739 = vld [vmem:[%s2717 + $0xa8] sm:$0xff]
      %v2740 = vld [vmem:[%s2717 + $0xb0] sm:$0xff]
      %v2741 = vld [vmem:[%s2717 + $0xb8] sm:$0xff]
      %v2742 = vld [vmem:[%s2717 + $0xc0] sm:$0xff]
      %v2743 = vld [vmem:[%s2717 + $0xc8] sm:$0xff]
      %v2744 = vld [vmem:[%s2717 + $0xd0] sm:$0xff]
      %v2745 = vld [vmem:[%s2717 + $0xd8] sm:$0xff]
      %v2746 = vld [vmem:[%s2717 + $0xe0] sm:$0xff]
      %v2747 = vld [vmem:[%s2717 + $0xe8] sm:$0xff]
      %v2748 = vld [vmem:[%s2717 + $0xf0] sm:$0xff]
      %v2749 = vld [vmem:[%s2717 + $0xf8] sm:$0xff]
      %v2750 = vld [vmem:[%s2717 + $0x100] sm:$0xff]
      %v2751 = vld [vmem:[%s2717 + $0x108] sm:$0xff]
      %v2752 = vld [vmem:[%s2717 + $0x110] sm:$0xff]
      %v2753 = vld [vmem:[%s2717 + $0x118] sm:$0xff]
      %v2754 = vld [vmem:[%s2717 + $0x120] sm:$0xff]
      %v2755 = vld [vmem:[%s2717 + $0x128] sm:$0xff]
      %v2756 = vld [vmem:[%s2717 + $0x130] sm:$0xff]
      %v2757 = vld [vmem:[%s2717 + $0x138] sm:$0xff]
      %v2758 = vld [vmem:[%s2717 + $0x140] sm:$0xff]
      %v2759 = vld [vmem:[%s2717 + $0x148] sm:$0xff]
      %v2760 = vld [vmem:[%s2717 + $0x150] sm:$0xff]
      %v2761 = vld [vmem:[%s2717 + $0x158] sm:$0xff]
      %v2762 = vld [vmem:[%s2717 + $0x160] sm:$0xff]
      %v2763 = vld [vmem:[%s2717 + $0x168] sm:$0xff]
      %v2764 = vld [vmem:[%s2717 + $0x170] sm:$0xff]
      %v2765 = vld [vmem:[%s2717 + $0x178] sm:$0xff]
      %2766 = vmatprep.subr.mxu0 0.0
      %2767 = vmatpush1.msra.mxu0 %v2718
      %2768 = vmatprep.subr.mxu0 0.0
      %2769 = vmatpush1.msra.mxu0 %v2719
      %2770 = vmatprep.subr.mxu0 0.0
      %2771 = vmatpush1.msra.mxu0 %v2720
      %2772 = vmatprep.subr.mxu0 0.0
      %2773 = vmatpush1.msra.mxu0 %v2721
      %2774 = vmatprep.subr.mxu0 0.0
      %2775 = vmatpush1.msra.mxu0 %v2722
      %2776 = vmatprep.subr.mxu0 0.0
      %2777 = vmatpush1.msra.mxu0 %v2723
      %2778 = vmatprep.subr.mxu0 0.0
      %2779 = vmatpush1.msra.mxu0 %v2724
      %2780 = vmatprep.subr.mxu0 0.0
      %2781 = vmatpush1.msra.mxu0 %v2725
      %2782 = vmatprep.subr.mxu0 0.0
      %2783 = vmatpush1.msra.mxu0 %v2726
      %2784 = vmatprep.subr.mxu0 0.0
      %2785 = vmatpush1.msra.mxu0 %v2727
      %2786 = vmatprep.subr.mxu0 0.0
      %2787 = vmatpush1.msra.mxu0 %v2728
      %2788 = vmatprep.subr.mxu0 0.0
      %2789 = vmatpush1.msra.mxu0 %v2729
      %2790 = vmatprep.subr.mxu0 0.0
      %2791 = vmatpush1.msra.mxu0 %v2730
      %2792 = vmatprep.subr.mxu0 0.0
      %2793 = vmatpush1.msra.mxu0 %v2731
      %2794 = vmatprep.subr.mxu0 0.0
      %2795 = vmatpush1.msra.mxu0 %v2732
      %2796 = vmatprep.subr.mxu0 0.0
      %2797 = vmatpush1.msra.mxu0 %v2733
      %2798 = vmatprep.subr.mxu0 0.0
      %2799 = vmatpush1.msra.mxu0 %v2734
      %2800 = vmatprep.subr.mxu0 0.0
      %2801 = vmatpush1.msra.mxu0 %v2735
      %2802 = vmatprep.subr.mxu0 0.0
      %2803 = vmatpush1.msra.mxu0 %v2736
      %2804 = vmatprep.subr.mxu0 0.0
      %2805 = vmatpush1.msra.mxu0 %v2737
      %2806 = vmatprep.subr.mxu0 0.0
      %2807 = vmatpush1.msra.mxu0 %v2738
      %2808 = vmatprep.subr.mxu0 0.0
      %2809 = vmatpush1.msra.mxu0 %v2739
      %2810 = vmatprep.subr.mxu0 0.0
      %2811 = vmatpush1.msra.mxu0 %v2740
      %2812 = vmatprep.subr.mxu0 0.0
      %2813 = vmatpush1.msra.mxu0 %v2741
      %2814 = vmatprep.subr.mxu0 0.0
      %2815 = vmatpush1.msra.mxu0 %v2742
      %2816 = vmatprep.subr.mxu0 0.0
      %2817 = vmatpush1.msra.mxu0 %v2743
      %2818 = vmatprep.subr.mxu0 0.0
      %2819 = vmatpush1.msra.mxu0 %v2744
      %2820 = vmatprep.subr.mxu0 0.0
      %2821 = vmatpush1.msra.mxu0 %v2745
      %2822 = vmatprep.subr.mxu0 0.0
      %2823 = vmatpush1.msra.mxu0 %v2746
      %2824 = vmatprep.subr.mxu0 0.0
      %2825 = vmatpush1.msra.mxu0 %v2747
      %2826 = vmatprep.subr.mxu0 0.0
      %2827 = vmatpush1.msra.mxu0 %v2748
      %2828 = vmatprep.subr.mxu0 0.0
      %2829 = vmatpush1.msra.mxu0 %v2749
      %2830 = vmatprep.mubr.f32.mxu0 %v2435
      %2831 = vmatmul.mubr.f32.gmra.mrb[0].mxu0 %v2329
      %v2832 = vpop.f32.mrb[0].mxu0
      %v2833 = vadd.f32 0.0, %v2832
      %v2834 = vpop.f32.mrb[0].mxu0
      %2835 = vmatprep.mubr.f32.mxu0 %v2437
      %2836 = vmatmul.mubr.f32.gmra.mrb[0].mxu0 %v2330
      %v2837 = vpop.f32.mrb[0].mxu0
      %v2838 = vadd.f32 0.0, %v2837
      %v2839 = vpop.f32.mrb[0].mxu0
      %2840 = vmatprep.mubr.f32.mxu0 %v2440
      %2841 = vmatmul.mubr.f32.gmra.mrb[0].mxu0 %v2332
      %v2842 = vpop.f32.mrb[0].mxu0
      %v2843 = vadd.f32 0.0, %v2842
      %v2844 = vpop.f32.mrb[0].mxu0
      %2845 = vmatprep.mubr.f32.mxu0 %v2442
      %2846 = vmatmul.mubr.f32.gmra.mrb[0].mxu0 %v2333
      %v2847 = vpop.f32.mrb[0].mxu0
      %v2848 = vadd.f32 0.0, %v2847
      %v2849 = vpop.f32.mrb[0].mxu0
      %2850 = vmatprep.mubr.f32.mxu0 %v2445
      %2851 = vmatmul.mubr.f32.gmra.mrb[0].mxu0 %v2335
      %v2852 = vpop.f32.mrb[0].mxu0
      %v2853 = vadd.f32 0.0, %v2852
      %v2854 = vpop.f32.mrb[0].mxu0
      %2855 = vmatprep.mubr.f32.mxu0 %v2447
      %2856 = vmatmul.mubr.f32.gmra.mrb[0].mxu0 %v2336
      %v2857 = vpop.f32.mrb[0].mxu0
      %v2858 = vadd.f32 0.0, %v2857
      %v2859 = vpop.f32.mrb[0].mxu0
      %2860 = vmatprep.mubr.f32.mxu0 %v2450
      %2861 = vmatmul.mubr.f32.gmra.mrb[0].mxu0 %v2338
      %v2862 = vpop.f32.mrb[0].mxu0
      %v2863 = vadd.f32 0.0, %v2862
      %v2864 = vpop.f32.mrb[0].mxu0
      %2865 = vmatprep.mubr.f32.mxu0 %v2452
      %2866 = vmatmul.mubr.f32.gmra.mrb[0].mxu0 %v2339
      %v2867 = vpop.f32.mrb[0].mxu0
      %v2868 = vadd.f32 0.0, %v2867
      %v2869 = vpop.f32.mrb[0].mxu0
      %2870 = vmatprep.mubr.f32.mxu0 %v2455
      %2871 = vmatmul.mubr.f32.gmra.mrb[0].mxu0 %v2341
      %v2872 = vpop.f32.mrb[0].mxu0
      %v2873 = vadd.f32 0.0, %v2872
      %v2874 = vpop.f32.mrb[0].mxu0
      %2875 = vmatprep.mubr.f32.mxu0 %v2457
      %2876 = vmatmul.mubr.f32.gmra.mrb[0].mxu0 %v2342
      %v2877 = vpop.f32.mrb[0].mxu0
      %v2878 = vadd.f32 0.0, %v2877
      %v2879 = vpop.f32.mrb[0].mxu0
      %2880 = vmatprep.mubr.f32.mxu0 %v2460
      %2881 = vmatmul.mubr.f32.gmra.mrb[0].mxu0 %v2344
      %v2882 = vpop.f32.mrb[0].mxu0
      %v2883 = vadd.f32 0.0, %v2882
      %v2884 = vpop.f32.mrb[0].mxu0
      %2885 = vmatprep.mubr.f32.mxu0 %v2462
      %2886 = vmatmul.mubr.f32.gmra.mrb[0].mxu0 %v2345
      %v2887 = vpop.f32.mrb[0].mxu0
      %v2888 = vadd.f32 0.0, %v2887
      %v2889 = vpop.f32.mrb[0].mxu0
      %2890 = vmatprep.mubr.f32.mxu0 %v2465
      %2891 = vmatmul.mubr.f32.gmra.mrb[0].mxu0 %v2347
      %v2892 = vpop.f32.mrb[0].mxu0
      %v2893 = vadd.f32 0.0, %v2892
      %v2894 = vpop.f32.mrb[0].mxu0
      %2895 = vmatprep.mubr.f32.mxu0 %v2467
      %2896 = vmatmul.mubr.f32.gmra.mrb[0].mxu0 %v2348
      %v2897 = vpop.f32.mrb[0].mxu0
      %v2898 = vadd.f32 0.0, %v2897
      %v2899 = vpop.f32.mrb[0].mxu0
      %2900 = vmatprep.mubr.f32.mxu0 %v2470
      %2901 = vmatmul.mubr.f32.gmra.mrb[0].mxu0 %v2350
      %v2902 = vpop.f32.mrb[0].mxu0
      %v2903 = vadd.f32 0.0, %v2902
      %v2904 = vpop.f32.mrb[0].mxu0
      %2905 = vmatprep.mubr.f32.mxu0 %v2472
      %2906 = vmatmul.mubr.f32.gmra.mrb[0].mxu0 %v2351
      %v2907 = vpop.f32.mrb[0].mxu0
      %v2908 = vadd.f32 0.0, %v2907
      %v2909 = vpop.f32.mrb[0].mxu0
      %2910 = vmatprep.mubr.f32.mxu0 %v2475
      %2911 = vmatmul.mubr.f32.gmra.mrb[0].mxu0 %v2353
      %v2912 = vpop.f32.mrb[0].mxu0
      %v2913 = vadd.f32 0.0, %v2912
      %v2914 = vpop.f32.mrb[0].mxu0
      %2915 = vmatprep.mubr.f32.mxu0 %v2477
      %2916 = vmatmul.mubr.f32.gmra.mrb[0].mxu0 %v2354
      %v2917 = vpop.f32.mrb[0].mxu0
      %v2918 = vadd.f32 0.0, %v2917
      %v2919 = vpop.f32.mrb[0].mxu0
      %2920 = vmatprep.mubr.f32.mxu0 %v2480
      %2921 = vmatmul.mubr.f32.gmra.mrb[0].mxu0 %v2356
      %v2922 = vpop.f32.mrb[0].mxu0
      %v2923 = vadd.f32 0.0, %v2922
      %v2924 = vpop.f32.mrb[0].mxu0
      %2925 = vmatprep.mubr.f32.mxu0 %v2482
      %2926 = vmatmul.mubr.f32.gmra.mrb[0].mxu0 %v2357
      %v2927 = vpop.f32.mrb[0].mxu0
      %v2928 = vadd.f32 0.0, %v2927
      %v2929 = vpop.f32.mrb[0].mxu0
      %2930 = vmatprep.mubr.f32.mxu0 %v2485
      %2931 = vmatmul.mubr.f32.gmra.mrb[0].mxu0 %v2359
      %v2932 = vpop.f32.mrb[0].mxu0
      %v2933 = vadd.f32 0.0, %v2932
      %v2934 = vpop.f32.mrb[0].mxu0
      %2935 = vmatprep.mubr.f32.mxu0 %v2487
      %2936 = vmatmul.mubr.f32.gmra.mrb[0].mxu0 %v2360
      %v2937 = vpop.f32.mrb[0].mxu0
      %v2938 = vadd.f32 0.0, %v2937
      %v2939 = vpop.f32.mrb[0].mxu0
      %2940 = vmatprep.mubr.f32.mxu0 %v2490
      %2941 = vmatmul.mubr.f32.gmra.mrb[0].mxu0 %v2362
      %v2942 = vpop.f32.mrb[0].mxu0
      %v2943 = vadd.f32 0.0, %v2942
      %v2944 = vpop.f32.mrb[0].mxu0
      %2945 = vmatprep.mubr.f32.mxu0 %v2492
      %2946 = vmatmul.mubr.f32.gmra.mrb[0].mxu0 %v2363
      %v2947 = vpop.f32.mrb[0].mxu0
      %v2948 = vadd.f32 0.0, %v2947
      %v2949 = vpop.f32.mrb[0].mxu0
      %2950 = vmatprep.mubr.f32.mxu0 %v2495
      %2951 = vmatmul.mubr.f32.gmra.mrb[0].mxu0 %v2365
      %v2952 = vpop.f32.mrb[0].mxu0
      %v2953 = vadd.f32 0.0, %v2952
      %v2954 = vpop.f32.mrb[0].mxu0
      %2955 = vmatprep.mubr.f32.mxu0 %v2497
      %2956 = vmatmul.mubr.f32.gmra.mrb[0].mxu0 %v2366
      %v2957 = vpop.f32.mrb[0].mxu0
      %v2958 = vadd.f32 0.0, %v2957
      %v2959 = vpop.f32.mrb[0].mxu0
      %2960 = vmatprep.mubr.f32.mxu0 %v2500
      %2961 = vmatmul.mubr.f32.gmra.mrb[0].mxu0 %v2368
      %v2962 = vpop.f32.mrb[0].mxu0
      %v2963 = vadd.f32 0.0, %v2962
      %v2964 = vpop.f32.mrb[0].mxu0
      %2965 = vmatprep.mubr.f32.mxu0 %v2502
      %2966 = vmatmul.mubr.f32.gmra.mrb[0].mxu0 %v2369
      %v2967 = vpop.f32.mrb[0].mxu0
      %v2968 = vadd.f32 0.0, %v2967
      %v2969 = vpop.f32.mrb[0].mxu0
      %2970 = vmatprep.mubr.f32.mxu0 %v2505
      %2971 = vmatmul.mubr.f32.gmra.mrb[0].mxu0 %v2371
      %v2972 = vpop.f32.mrb[0].mxu0
      %v2973 = vadd.f32 0.0, %v2972
      %v2974 = vpop.f32.mrb[0].mxu0
      %2975 = vmatprep.mubr.f32.mxu0 %v2507
      %2976 = vmatmul.mubr.f32.gmra.mrb[0].mxu0 %v2372
      %v2977 = vpop.f32.mrb[0].mxu0
      %v2978 = vadd.f32 0.0, %v2977
      %v2979 = vpop.f32.mrb[0].mxu0
      %2980 = vmatprep.mubr.f32.mxu0 %v2705
      %2981 = vmatmul.mubr.f32.gmra.mrb[0].mxu0 %v2374
      %v2982 = vpop.f32.mrb[0].mxu0
      %v2983 = vadd.f32 0.0, %v2982
      %v2984 = vpop.f32.mrb[0].mxu0
      %2985 = vmatprep.mubr.f32.mxu0 %v2707
      %2986 = vmatmul.mubr.f32.gmra.mrb[0].mxu0 %v2375
      %v2987 = vpop.f32.mrb[0].mxu0
      %v2988 = vadd.f32 0.0, %v2987
      %v2989 = vpop.f32.mrb[0].mxu0
      %2990 = vdwg.mxu0
      %2991 = vmatprep.subr.mxu0 0.0
      %2992 = vmatpush1.msra.mxu0 %v2750
      %2993 = vmatprep.subr.mxu0 0.0
      %2994 = vmatpush1.msra.mxu0 %v2751
      %2995 = vmatprep.subr.mxu0 0.0
      %2996 = vmatpush1.msra.mxu0 %v2752
      %2997 = vmatprep.subr.mxu0 0.0
      %2998 = vmatpush1.msra.mxu0 %v2753
      %2999 = vmatprep.subr.mxu0 0.0
      %3000 = vmatpush1.msra.mxu0 %v2754
      %3001 = vmatprep.subr.mxu0 0.0
      %3002 = vmatpush1.msra.mxu0 %v2755
      %3003 = vmatprep.subr.mxu0 0.0
      %3004 = vmatpush1.msra.mxu0 %v2756
      %3005 = vmatprep.subr.mxu0 0.0
      %3006 = vmatpush1.msra.mxu0 %v2757
      %3007 = vmatprep.subr.mxu0 0.0
      %3008 = vmatpush1.msra.mxu0 %v2758
      %3009 = vmatprep.subr.mxu0 0.0
      %3010 = vmatpush1.msra.mxu0 %v2759
      %3011 = vmatprep.subr.mxu0 0.0
      %3012 = vmatpush1.msra.mxu0 %v2760
      %3013 = vmatprep.subr.mxu0 0.0
      %3014 = vmatpush1.msra.mxu0 %v2761
      %3015 = vmatprep.subr.mxu0 0.0
      %3016 = vmatpush1.msra.mxu0 %v2762
      %3017 = vmatprep.subr.mxu0 0.0
      %3018 = vmatpush1.msra.mxu0 %v2763
      %3019 = vmatprep.subr.mxu0 0.0
      %3020 = vmatpush1.msra.mxu0 %v2764
      %3021 = vmatprep.subr.mxu0 0.0
      %3022 = vmatpush1.msra.mxu0 %v2765
      %3023 = vmatprep.subr.mxu0 0.0
      %3024 = vmatpush1.msra.mxu0 0.0
      %3025 = vmatprep.subr.mxu0 0.0
      %3026 = vmatpush1.msra.mxu0 0.0
      %3027 = vmatprep.subr.mxu0 0.0
      %3028 = vmatpush1.msra.mxu0 0.0
      %3029 = vmatprep.subr.mxu0 0.0
      %3030 = vmatpush1.msra.mxu0 0.0
      %3031 = vmatprep.subr.mxu0 0.0
      %3032 = vmatpush1.msra.mxu0 0.0
      %3033 = vmatprep.subr.mxu0 0.0
      %3034 = vmatpush1.msra.mxu0 0.0
      %3035 = vmatprep.subr.mxu0 0.0
      %3036 = vmatpush1.msra.mxu0 0.0
      %3037 = vmatprep.subr.mxu0 0.0
      %3038 = vmatpush1.msra.mxu0 0.0
      %3039 = vmatprep.subr.mxu0 0.0
      %3040 = vmatpush1.msra.mxu0 0.0
      %3041 = vmatprep.subr.mxu0 0.0
      %3042 = vmatpush1.msra.mxu0 0.0
      %3043 = vmatprep.subr.mxu0 0.0
      %3044 = vmatpush1.msra.mxu0 0.0
      %3045 = vmatprep.subr.mxu0 0.0
      %3046 = vmatpush1.msra.mxu0 0.0
      %3047 = vmatprep.subr.mxu0 0.0
      %3048 = vmatpush1.msra.mxu0 0.0
      %3049 = vmatprep.subr.mxu0 0.0
      %3050 = vmatpush1.msra.mxu0 0.0
      %3051 = vmatprep.subr.mxu0 0.0
      %3052 = vmatpush1.msra.mxu0 0.0
      %3053 = vmatprep.subr.mxu0 0.0
      %3054 = vmatpush1.msra.mxu0 0.0
      %3055 = vmatprep.mubr.f32.mxu0 0.0
      %3056 = vmatmul.mubr.f32.gmra.mrb[0].mxu0 %v2547
      %v3057 = vpop.f32.mrb[0].mxu0
      %v3058 = vadd.f32 %v2833, %v3057
      %v3059 = vpop.f32.mrb[0].mxu0
      %3060 = vmatprep.mubr.f32.mxu0 0.0
      %3061 = vmatmul.mubr.f32.gmra.mrb[0].mxu0 %v2549
      %v3062 = vpop.f32.mrb[0].mxu0
      %v3063 = vadd.f32 %v2838, %v3062
      %v3064 = vpop.f32.mrb[0].mxu0
      %3065 = vmatprep.mubr.f32.mxu0 0.0
      %3066 = vmatmul.mubr.f32.gmra.mrb[0].mxu0 %v2552
      %v3067 = vpop.f32.mrb[0].mxu0
      %v3068 = vadd.f32 %v2843, %v3067
      %v3069 = vpop.f32.mrb[0].mxu0
      %3070 = vmatprep.mubr.f32.mxu0 0.0
      %3071 = vmatmul.mubr.f32.gmra.mrb[0].mxu0 %v2554
      %v3072 = vpop.f32.mrb[0].mxu0
      %v3073 = vadd.f32 %v2848, %v3072
      %v3074 = vpop.f32.mrb[0].mxu0
      %3075 = vmatprep.mubr.f32.mxu0 0.0
      %3076 = vmatmul.mubr.f32.gmra.mrb[0].mxu0 %v2557
      %v3077 = vpop.f32.mrb[0].mxu0
      %v3078 = vadd.f32 %v2853, %v3077
      %v3079 = vpop.f32.mrb[0].mxu0
      %3080 = vmatprep.mubr.f32.mxu0 0.0
      %3081 = vmatmul.mubr.f32.gmra.mrb[0].mxu0 %v2559
      %v3082 = vpop.f32.mrb[0].mxu0
      %v3083 = vadd.f32 %v2858, %v3082
      %v3084 = vpop.f32.mrb[0].mxu0
      %3085 = vmatprep.mubr.f32.mxu0 0.0
      %3086 = vmatmul.mubr.f32.gmra.mrb[0].mxu0 %v2562
      %v3087 = vpop.f32.mrb[0].mxu0
      %v3088 = vadd.f32 %v2863, %v3087
      %v3089 = vpop.f32.mrb[0].mxu0
      %3090 = vmatprep.mubr.f32.mxu0 0.0
      %3091 = vmatmul.mubr.f32.gmra.mrb[0].mxu0 %v2564
      %v3092 = vpop.f32.mrb[0].mxu0
      %v3093 = vadd.f32 %v2868, %v3092
      %v3094 = vpop.f32.mrb[0].mxu0
      %3095 = vmatprep.mubr.f32.mxu0 0.0
      %3096 = vmatmul.mubr.f32.gmra.mrb[0].mxu0 %v2567
      %v3097 = vpop.f32.mrb[0].mxu0
      %v3098 = vadd.f32 %v2873, %v3097
      %v3099 = vpop.f32.mrb[0].mxu0
      %3100 = vmatprep.mubr.f32.mxu0 0.0
      %3101 = vmatmul.mubr.f32.gmra.mrb[0].mxu0 %v2569
      %v3102 = vpop.f32.mrb[0].mxu0
      %v3103 = vadd.f32 %v2878, %v3102
      %v3104 = vpop.f32.mrb[0].mxu0
      %3105 = vmatprep.mubr.f32.mxu0 0.0
      %3106 = vmatmul.mubr.f32.gmra.mrb[0].mxu0 %v2572
      %v3107 = vpop.f32.mrb[0].mxu0
      %v3108 = vadd.f32 %v2883, %v3107
      %v3109 = vpop.f32.mrb[0].mxu0
      %3110 = vmatprep.mubr.f32.mxu0 0.0
      %3111 = vmatmul.mubr.f32.gmra.mrb[0].mxu0 %v2574
      %v3112 = vpop.f32.mrb[0].mxu0
      %v3113 = vadd.f32 %v2888, %v3112
      %v3114 = vpop.f32.mrb[0].mxu0
      %3115 = vmatprep.mubr.f32.mxu0 0.0
      %3116 = vmatmul.mubr.f32.gmra.mrb[0].mxu0 %v2577
      %v3117 = vpop.f32.mrb[0].mxu0
      %v3118 = vadd.f32 %v2893, %v3117
      %v3119 = vpop.f32.mrb[0].mxu0
      %3120 = vmatprep.mubr.f32.mxu0 0.0
      %3121 = vmatmul.mubr.f32.gmra.mrb[0].mxu0 %v2579
      %v3122 = vpop.f32.mrb[0].mxu0
      %v3123 = vadd.f32 %v2898, %v3122
      %v3124 = vpop.f32.mrb[0].mxu0
      %3125 = vmatprep.mubr.f32.mxu0 0.0
      %3126 = vmatmul.mubr.f32.gmra.mrb[0].mxu0 %v2582
      %v3127 = vpop.f32.mrb[0].mxu0
      %v3128 = vadd.f32 %v2903, %v3127
      %v3129 = vpop.f32.mrb[0].mxu0
      %3130 = vmatprep.mubr.f32.mxu0 0.0
      %3131 = vmatmul.mubr.f32.gmra.mrb[0].mxu0 %v2584
      %v3132 = vpop.f32.mrb[0].mxu0
      %v3133 = vadd.f32 %v2908, %v3132
      %v3134 = vpop.f32.mrb[0].mxu0
      %3135 = vmatprep.mubr.f32.mxu0 0.0
      %3136 = vmatmul.mubr.f32.gmra.mrb[0].mxu0 %v2587
      %v3137 = vpop.f32.mrb[0].mxu0
      %v3138 = vadd.f32 %v2913, %v3137
      %v3139 = vpop.f32.mrb[0].mxu0
      %3140 = vmatprep.mubr.f32.mxu0 0.0
      %3141 = vmatmul.mubr.f32.gmra.mrb[0].mxu0 %v2589
      %v3142 = vpop.f32.mrb[0].mxu0
      %v3143 = vadd.f32 %v2918, %v3142
      %v3144 = vpop.f32.mrb[0].mxu0
      %3145 = vmatprep.mubr.f32.mxu0 0.0
      %3146 = vmatmul.mubr.f32.gmra.mrb[0].mxu0 %v2592
      %v3147 = vpop.f32.mrb[0].mxu0
      %v3148 = vadd.f32 %v2923, %v3147
      %v3149 = vpop.f32.mrb[0].mxu0
      %3150 = vmatprep.mubr.f32.mxu0 0.0
      %3151 = vmatmul.mubr.f32.gmra.mrb[0].mxu0 %v2594
      %v3152 = vpop.f32.mrb[0].mxu0
      %v3153 = vadd.f32 %v2928, %v3152
      %v3154 = vpop.f32.mrb[0].mxu0
      %3155 = vmatprep.mubr.f32.mxu0 0.0
      %3156 = vmatmul.mubr.f32.gmra.mrb[0].mxu0 %v2597
      %v3157 = vpop.f32.mrb[0].mxu0
      %v3158 = vadd.f32 %v2933, %v3157
      %v3159 = vpop.f32.mrb[0].mxu0
      %3160 = vmatprep.mubr.f32.mxu0 0.0
      %3161 = vmatmul.mubr.f32.gmra.mrb[0].mxu0 %v2599
      %v3162 = vpop.f32.mrb[0].mxu0
      %v3163 = vadd.f32 %v2938, %v3162
      %v3164 = vpop.f32.mrb[0].mxu0
      %3165 = vmatprep.mubr.f32.mxu0 0.0
      %3166 = vmatmul.mubr.f32.gmra.mrb[0].mxu0 %v2602
      %v3167 = vpop.f32.mrb[0].mxu0
      %v3168 = vadd.f32 %v2943, %v3167
      %v3169 = vpop.f32.mrb[0].mxu0
      %3170 = vmatprep.mubr.f32.mxu0 0.0
      %3171 = vmatmul.mubr.f32.gmra.mrb[0].mxu0 %v2604
      %v3172 = vpop.f32.mrb[0].mxu0
      %v3173 = vadd.f32 %v2948, %v3172
      %v3174 = vpop.f32.mrb[0].mxu0
      %3175 = vmatprep.mubr.f32.mxu0 0.0
      %3176 = vmatmul.mubr.f32.gmra.mrb[0].mxu0 %v2607
      %v3177 = vpop.f32.mrb[0].mxu0
      %v3178 = vadd.f32 %v2953, %v3177
      %v3179 = vpop.f32.mrb[0].mxu0
      %3180 = vmatprep.mubr.f32.mxu0 0.0
      %3181 = vmatmul.mubr.f32.gmra.mrb[0].mxu0 %v2609
      %v3182 = vpop.f32.mrb[0].mxu0
      %v3183 = vadd.f32 %v2958, %v3182
      %v3184 = vpop.f32.mrb[0].mxu0
      %3185 = vmatprep.mubr.f32.mxu0 0.0
      %3186 = vmatmul.mubr.f32.gmra.mrb[0].mxu0 %v2612
      %v3187 = vpop.f32.mrb[0].mxu0
      %v3188 = vadd.f32 %v2963, %v3187
      %v3189 = vpop.f32.mrb[0].mxu0
      %3190 = vmatprep.mubr.f32.mxu0 0.0
      %3191 = vmatmul.mubr.f32.gmra.mrb[0].mxu0 %v2614
      %v3192 = vpop.f32.mrb[0].mxu0
      %v3193 = vadd.f32 %v2968, %v3192
      %v3194 = vpop.f32.mrb[0].mxu0
      %3195 = vmatprep.mubr.f32.mxu0 0.0
      %3196 = vmatmul.mubr.f32.gmra.mrb[0].mxu0 %v2617
      %v3197 = vpop.f32.mrb[0].mxu0
      %v3198 = vadd.f32 %v2973, %v3197
      %v3199 = vpop.f32.mrb[0].mxu0
      %3200 = vmatprep.mubr.f32.mxu0 0.0
      %3201 = vmatmul.mubr.f32.gmra.mrb[0].mxu0 %v2619
      %v3202 = vpop.f32.mrb[0].mxu0
      %v3203 = vadd.f32 %v2978, %v3202
      %v3204 = vpop.f32.mrb[0].mxu0
      %3205 = vmatprep.mubr.f32.mxu0 0.0
      %3206 = vmatmul.mubr.f32.gmra.mrb[0].mxu0 %v2712
      %v3207 = vpop.f32.mrb[0].mxu0
      %v3208 = vadd.f32 %v2983, %v3207
      %v3209 = vpop.f32.mrb[0].mxu0
      %3210 = vmatprep.mubr.f32.mxu0 0.0
      %3211 = vmatmul.mubr.f32.gmra.mrb[0].mxu0 %v2714
      %v3212 = vpop.f32.mrb[0].mxu0
      %v3213 = vadd.f32 %v2988, %v3212
      %v3214 = vpop.f32.mrb[0].mxu0
      %3215 = vdwg.mxu0
      %v3219 = vrot.slane %v2377, 1
      %v3220 = vrot.slane %v2378, 1
      %v3221 = vsel %vm435, %v3219, %v3220
      %v3222 = vrot.slane %v2379, 1
      %v3223 = vsel %vm435, %v3220, %v3222
      %v3226 = vrot.slane %v2377, 2
      %v3227 = vrot.slane %v2378, 2
      %v3228 = vsel %vm548, %v3226, %v3227
      %v3229 = vrot.slane %v2379, 2
      %v3230 = vsel %vm548, %v3227, %v3229
      %s3233 = scalar_lea.vmem %s3, 768
      %v3234 = vld [vmem:[%s3233] sm:$0xff]
      %v3235 = vld [vmem:[%s3233 + $0x8] sm:$0xff]
      %v3236 = vld [vmem:[%s3233 + $0x10] sm:$0xff]
      %v3237 = vld [vmem:[%s3233 + $0x18] sm:$0xff]
      %v3238 = vld [vmem:[%s3233 + $0x20] sm:$0xff]
      %v3239 = vld [vmem:[%s3233 + $0x28] sm:$0xff]
      %v3240 = vld [vmem:[%s3233 + $0x30] sm:$0xff]
      %v3241 = vld [vmem:[%s3233 + $0x38] sm:$0xff]
      %v3242 = vld [vmem:[%s3233 + $0x40] sm:$0xff]
      %v3243 = vld [vmem:[%s3233 + $0x48] sm:$0xff]
      %v3244 = vld [vmem:[%s3233 + $0x50] sm:$0xff]
      %v3245 = vld [vmem:[%s3233 + $0x58] sm:$0xff]
      %v3246 = vld [vmem:[%s3233 + $0x60] sm:$0xff]
      %v3247 = vld [vmem:[%s3233 + $0x68] sm:$0xff]
      %v3248 = vld [vmem:[%s3233 + $0x70] sm:$0xff]
      %v3249 = vld [vmem:[%s3233 + $0x78] sm:$0xff]
      %v3250 = vld [vmem:[%s3233 + $0x80] sm:$0xff]
      %v3251 = vld [vmem:[%s3233 + $0x88] sm:$0xff]
      %v3252 = vld [vmem:[%s3233 + $0x90] sm:$0xff]
      %v3253 = vld [vmem:[%s3233 + $0x98] sm:$0xff]
      %v3254 = vld [vmem:[%s3233 + $0xa0] sm:$0xff]
      %v3255 = vld [vmem:[%s3233 + $0xa8] sm:$0xff]
      %v3256 = vld [vmem:[%s3233 + $0xb0] sm:$0xff]
      %v3257 = vld [vmem:[%s3233 + $0xb8] sm:$0xff]
      %v3258 = vld [vmem:[%s3233 + $0xc0] sm:$0xff]
      %v3259 = vld [vmem:[%s3233 + $0xc8] sm:$0xff]
      %v3260 = vld [vmem:[%s3233 + $0xd0] sm:$0xff]
      %v3261 = vld [vmem:[%s3233 + $0xd8] sm:$0xff]
      %v3262 = vld [vmem:[%s3233 + $0xe0] sm:$0xff]
      %v3263 = vld [vmem:[%s3233 + $0xe8] sm:$0xff]
      %v3264 = vld [vmem:[%s3233 + $0xf0] sm:$0xff]
      %v3265 = vld [vmem:[%s3233 + $0xf8] sm:$0xff]
      %v3266 = vld [vmem:[%s3233 + $0x100] sm:$0xff]
      %v3267 = vld [vmem:[%s3233 + $0x108] sm:$0xff]
      %v3268 = vld [vmem:[%s3233 + $0x110] sm:$0xff]
      %v3269 = vld [vmem:[%s3233 + $0x118] sm:$0xff]
      %v3270 = vld [vmem:[%s3233 + $0x120] sm:$0xff]
      %v3271 = vld [vmem:[%s3233 + $0x128] sm:$0xff]
      %v3272 = vld [vmem:[%s3233 + $0x130] sm:$0xff]
      %v3273 = vld [vmem:[%s3233 + $0x138] sm:$0xff]
      %v3274 = vld [vmem:[%s3233 + $0x140] sm:$0xff]
      %v3275 = vld [vmem:[%s3233 + $0x148] sm:$0xff]
      %v3276 = vld [vmem:[%s3233 + $0x150] sm:$0xff]
      %v3277 = vld [vmem:[%s3233 + $0x158] sm:$0xff]
      %v3278 = vld [vmem:[%s3233 + $0x160] sm:$0xff]
      %v3279 = vld [vmem:[%s3233 + $0x168] sm:$0xff]
      %v3280 = vld [vmem:[%s3233 + $0x170] sm:$0xff]
      %v3281 = vld [vmem:[%s3233 + $0x178] sm:$0xff]
      %3282 = vmatprep.subr.mxu0 0.0
      %3283 = vmatpush1.msra.mxu0 %v3234
      %3284 = vmatprep.subr.mxu0 0.0
      %3285 = vmatpush1.msra.mxu0 %v3235
      %3286 = vmatprep.subr.mxu0 0.0
      %3287 = vmatpush1.msra.mxu0 %v3236
      %3288 = vmatprep.subr.mxu0 0.0
      %3289 = vmatpush1.msra.mxu0 %v3237
      %3290 = vmatprep.subr.mxu0 0.0
      %3291 = vmatpush1.msra.mxu0 %v3238
      %3292 = vmatprep.subr.mxu0 0.0
      %3293 = vmatpush1.msra.mxu0 %v3239
      %3294 = vmatprep.subr.mxu0 0.0
      %3295 = vmatpush1.msra.mxu0 %v3240
      %3296 = vmatprep.subr.mxu0 0.0
      %3297 = vmatpush1.msra.mxu0 %v3241
      %3298 = vmatprep.subr.mxu0 0.0
      %3299 = vmatpush1.msra.mxu0 %v3242
      %3300 = vmatprep.subr.mxu0 0.0
      %3301 = vmatpush1.msra.mxu0 %v3243
      %3302 = vmatprep.subr.mxu0 0.0
      %3303 = vmatpush1.msra.mxu0 %v3244
      %3304 = vmatprep.subr.mxu0 0.0
      %3305 = vmatpush1.msra.mxu0 %v3245
      %3306 = vmatprep.subr.mxu0 0.0
      %3307 = vmatpush1.msra.mxu0 %v3246
      %3308 = vmatprep.subr.mxu0 0.0
      %3309 = vmatpush1.msra.mxu0 %v3247
      %3310 = vmatprep.subr.mxu0 0.0
      %3311 = vmatpush1.msra.mxu0 %v3248
      %3312 = vmatprep.subr.mxu0 0.0
      %3313 = vmatpush1.msra.mxu0 %v3249
      %3314 = vmatprep.subr.mxu0 0.0
      %3315 = vmatpush1.msra.mxu0 %v3250
      %3316 = vmatprep.subr.mxu0 0.0
      %3317 = vmatpush1.msra.mxu0 %v3251
      %3318 = vmatprep.subr.mxu0 0.0
      %3319 = vmatpush1.msra.mxu0 %v3252
      %3320 = vmatprep.subr.mxu0 0.0
      %3321 = vmatpush1.msra.mxu0 %v3253
      %3322 = vmatprep.subr.mxu0 0.0
      %3323 = vmatpush1.msra.mxu0 %v3254
      %3324 = vmatprep.subr.mxu0 0.0
      %3325 = vmatpush1.msra.mxu0 %v3255
      %3326 = vmatprep.subr.mxu0 0.0
      %3327 = vmatpush1.msra.mxu0 %v3256
      %3328 = vmatprep.subr.mxu0 0.0
      %3329 = vmatpush1.msra.mxu0 %v3257
      %3330 = vmatprep.subr.mxu0 0.0
      %3331 = vmatpush1.msra.mxu0 %v3258
      %3332 = vmatprep.subr.mxu0 0.0
      %3333 = vmatpush1.msra.mxu0 %v3259
      %3334 = vmatprep.subr.mxu0 0.0
      %3335 = vmatpush1.msra.mxu0 %v3260
      %3336 = vmatprep.subr.mxu0 0.0
      %3337 = vmatpush1.msra.mxu0 %v3261
      %3338 = vmatprep.subr.mxu0 0.0
      %3339 = vmatpush1.msra.mxu0 %v3262
      %3340 = vmatprep.subr.mxu0 0.0
      %3341 = vmatpush1.msra.mxu0 %v3263
      %3342 = vmatprep.subr.mxu0 0.0
      %3343 = vmatpush1.msra.mxu0 %v3264
      %3344 = vmatprep.subr.mxu0 0.0
      %3345 = vmatpush1.msra.mxu0 %v3265
      %3346 = vmatprep.mubr.f32.mxu0 %v2440
      %3347 = vmatmul.mubr.f32.gmra.mrb[0].mxu0 %v2332
      %v3348 = vpop.f32.mrb[0].mxu0
      %v3349 = vadd.f32 0.0, %v3348
      %v3350 = vpop.f32.mrb[0].mxu0
      %3351 = vmatprep.mubr.f32.mxu0 %v2442
      %3352 = vmatmul.mubr.f32.gmra.mrb[0].mxu0 %v2333
      %v3353 = vpop.f32.mrb[0].mxu0
      %v3354 = vadd.f32 0.0, %v3353
      %v3355 = vpop.f32.mrb[0].mxu0
      %3356 = vmatprep.mubr.f32.mxu0 %v2445
      %3357 = vmatmul.mubr.f32.gmra.mrb[0].mxu0 %v2335
      %v3358 = vpop.f32.mrb[0].mxu0
      %v3359 = vadd.f32 0.0, %v3358
      %v3360 = vpop.f32.mrb[0].mxu0
      %3361 = vmatprep.mubr.f32.mxu0 %v2447
      %3362 = vmatmul.mubr.f32.gmra.mrb[0].mxu0 %v2336
      %v3363 = vpop.f32.mrb[0].mxu0
      %v3364 = vadd.f32 0.0, %v3363
      %v3365 = vpop.f32.mrb[0].mxu0
      %3366 = vmatprep.mubr.f32.mxu0 %v2450
      %3367 = vmatmul.mubr.f32.gmra.mrb[0].mxu0 %v2338
      %v3368 = vpop.f32.mrb[0].mxu0
      %v3369 = vadd.f32 0.0, %v3368
      %v3370 = vpop.f32.mrb[0].mxu0
      %3371 = vmatprep.mubr.f32.mxu0 %v2452
      %3372 = vmatmul.mubr.f32.gmra.mrb[0].mxu0 %v2339
      %v3373 = vpop.f32.mrb[0].mxu0
      %v3374 = vadd.f32 0.0, %v3373
      %v3375 = vpop.f32.mrb[0].mxu0
      %3376 = vmatprep.mubr.f32.mxu0 %v2455
      %3377 = vmatmul.mubr.f32.gmra.mrb[0].mxu0 %v2341
      %v3378 = vpop.f32.mrb[0].mxu0
      %v3379 = vadd.f32 0.0, %v3378
      %v3380 = vpop.f32.mrb[0].mxu0
      %3381 = vmatprep.mubr.f32.mxu0 %v2457
      %3382 = vmatmul.mubr.f32.gmra.mrb[0].mxu0 %v2342
      %v3383 = vpop.f32.mrb[0].mxu0
      %v3384 = vadd.f32 0.0, %v3383
      %v3385 = vpop.f32.mrb[0].mxu0
      %3386 = vmatprep.mubr.f32.mxu0 %v2460
      %3387 = vmatmul.mubr.f32.gmra.mrb[0].mxu0 %v2344
      %v3388 = vpop.f32.mrb[0].mxu0
      %v3389 = vadd.f32 0.0, %v3388
      %v3390 = vpop.f32.mrb[0].mxu0
      %3391 = vmatprep.mubr.f32.mxu0 %v2462
      %3392 = vmatmul.mubr.f32.gmra.mrb[0].mxu0 %v2345
      %v3393 = vpop.f32.mrb[0].mxu0
      %v3394 = vadd.f32 0.0, %v3393
      %v3395 = vpop.f32.mrb[0].mxu0
      %3396 = vmatprep.mubr.f32.mxu0 %v2465
      %3397 = vmatmul.mubr.f32.gmra.mrb[0].mxu0 %v2347
      %v3398 = vpop.f32.mrb[0].mxu0
      %v3399 = vadd.f32 0.0, %v3398
      %v3400 = vpop.f32.mrb[0].mxu0
      %3401 = vmatprep.mubr.f32.mxu0 %v2467
      %3402 = vmatmul.mubr.f32.gmra.mrb[0].mxu0 %v2348
      %v3403 = vpop.f32.mrb[0].mxu0
      %v3404 = vadd.f32 0.0, %v3403
      %v3405 = vpop.f32.mrb[0].mxu0
      %3406 = vmatprep.mubr.f32.mxu0 %v2470
      %3407 = vmatmul.mubr.f32.gmra.mrb[0].mxu0 %v2350
      %v3408 = vpop.f32.mrb[0].mxu0
      %v3409 = vadd.f32 0.0, %v3408
      %v3410 = vpop.f32.mrb[0].mxu0
      %3411 = vmatprep.mubr.f32.mxu0 %v2472
      %3412 = vmatmul.mubr.f32.gmra.mrb[0].mxu0 %v2351
      %v3413 = vpop.f32.mrb[0].mxu0
      %v3414 = vadd.f32 0.0, %v3413
      %v3415 = vpop.f32.mrb[0].mxu0
      %3416 = vmatprep.mubr.f32.mxu0 %v2475
      %3417 = vmatmul.mubr.f32.gmra.mrb[0].mxu0 %v2353
      %v3418 = vpop.f32.mrb[0].mxu0
      %v3419 = vadd.f32 0.0, %v3418
      %v3420 = vpop.f32.mrb[0].mxu0
      %3421 = vmatprep.mubr.f32.mxu0 %v2477
      %3422 = vmatmul.mubr.f32.gmra.mrb[0].mxu0 %v2354
      %v3423 = vpop.f32.mrb[0].mxu0
      %v3424 = vadd.f32 0.0, %v3423
      %v3425 = vpop.f32.mrb[0].mxu0
      %3426 = vmatprep.mubr.f32.mxu0 %v2480
      %3427 = vmatmul.mubr.f32.gmra.mrb[0].mxu0 %v2356
      %v3428 = vpop.f32.mrb[0].mxu0
      %v3429 = vadd.f32 0.0, %v3428
      %v3430 = vpop.f32.mrb[0].mxu0
      %3431 = vmatprep.mubr.f32.mxu0 %v2482
      %3432 = vmatmul.mubr.f32.gmra.mrb[0].mxu0 %v2357
      %v3433 = vpop.f32.mrb[0].mxu0
      %v3434 = vadd.f32 0.0, %v3433
      %v3435 = vpop.f32.mrb[0].mxu0
      %3436 = vmatprep.mubr.f32.mxu0 %v2485
      %3437 = vmatmul.mubr.f32.gmra.mrb[0].mxu0 %v2359
      %v3438 = vpop.f32.mrb[0].mxu0
      %v3439 = vadd.f32 0.0, %v3438
      %v3440 = vpop.f32.mrb[0].mxu0
      %3441 = vmatprep.mubr.f32.mxu0 %v2487
      %3442 = vmatmul.mubr.f32.gmra.mrb[0].mxu0 %v2360
      %v3443 = vpop.f32.mrb[0].mxu0
      %v3444 = vadd.f32 0.0, %v3443
      %v3445 = vpop.f32.mrb[0].mxu0
      %3446 = vmatprep.mubr.f32.mxu0 %v2490
      %3447 = vmatmul.mubr.f32.gmra.mrb[0].mxu0 %v2362
      %v3448 = vpop.f32.mrb[0].mxu0
      %v3449 = vadd.f32 0.0, %v3448
      %v3450 = vpop.f32.mrb[0].mxu0
      %3451 = vmatprep.mubr.f32.mxu0 %v2492
      %3452 = vmatmul.mubr.f32.gmra.mrb[0].mxu0 %v2363
      %v3453 = vpop.f32.mrb[0].mxu0
      %v3454 = vadd.f32 0.0, %v3453
      %v3455 = vpop.f32.mrb[0].mxu0
      %3456 = vmatprep.mubr.f32.mxu0 %v2495
      %3457 = vmatmul.mubr.f32.gmra.mrb[0].mxu0 %v2365
      %v3458 = vpop.f32.mrb[0].mxu0
      %v3459 = vadd.f32 0.0, %v3458
      %v3460 = vpop.f32.mrb[0].mxu0
      %3461 = vmatprep.mubr.f32.mxu0 %v2497
      %3462 = vmatmul.mubr.f32.gmra.mrb[0].mxu0 %v2366
      %v3463 = vpop.f32.mrb[0].mxu0
      %v3464 = vadd.f32 0.0, %v3463
      %v3465 = vpop.f32.mrb[0].mxu0
      %3466 = vmatprep.mubr.f32.mxu0 %v2500
      %3467 = vmatmul.mubr.f32.gmra.mrb[0].mxu0 %v2368
      %v3468 = vpop.f32.mrb[0].mxu0
      %v3469 = vadd.f32 0.0, %v3468
      %v3470 = vpop.f32.mrb[0].mxu0
      %3471 = vmatprep.mubr.f32.mxu0 %v2502
      %3472 = vmatmul.mubr.f32.gmra.mrb[0].mxu0 %v2369
      %v3473 = vpop.f32.mrb[0].mxu0
      %v3474 = vadd.f32 0.0, %v3473
      %v3475 = vpop.f32.mrb[0].mxu0
      %3476 = vmatprep.mubr.f32.mxu0 %v2505
      %3477 = vmatmul.mubr.f32.gmra.mrb[0].mxu0 %v2371
      %v3478 = vpop.f32.mrb[0].mxu0
      %v3479 = vadd.f32 0.0, %v3478
      %v3480 = vpop.f32.mrb[0].mxu0
      %3481 = vmatprep.mubr.f32.mxu0 %v2507
      %3482 = vmatmul.mubr.f32.gmra.mrb[0].mxu0 %v2372
      %v3483 = vpop.f32.mrb[0].mxu0
      %v3484 = vadd.f32 0.0, %v3483
      %v3485 = vpop.f32.mrb[0].mxu0
      %3486 = vmatprep.mubr.f32.mxu0 %v2705
      %3487 = vmatmul.mubr.f32.gmra.mrb[0].mxu0 %v2374
      %v3488 = vpop.f32.mrb[0].mxu0
      %v3489 = vadd.f32 0.0, %v3488
      %v3490 = vpop.f32.mrb[0].mxu0
      %3491 = vmatprep.mubr.f32.mxu0 %v2707
      %3492 = vmatmul.mubr.f32.gmra.mrb[0].mxu0 %v2375
      %v3493 = vpop.f32.mrb[0].mxu0
      %v3494 = vadd.f32 0.0, %v3493
      %v3495 = vpop.f32.mrb[0].mxu0
      %3496 = vmatprep.mubr.f32.mxu0 %v3221
      %3497 = vmatmul.mubr.f32.gmra.mrb[0].mxu0 %v2377
      %v3498 = vpop.f32.mrb[0].mxu0
      %v3499 = vadd.f32 0.0, %v3498
      %v3500 = vpop.f32.mrb[0].mxu0
      %3501 = vmatprep.mubr.f32.mxu0 %v3223
      %3502 = vmatmul.mubr.f32.gmra.mrb[0].mxu0 %v2378
      %v3503 = vpop.f32.mrb[0].mxu0
      %v3504 = vadd.f32 0.0, %v3503
      %v3505 = vpop.f32.mrb[0].mxu0
      %3506 = vdwg.mxu0
      %3507 = vmatprep.subr.mxu0 0.0
      %3508 = vmatpush1.msra.mxu0 %v3266
      %3509 = vmatprep.subr.mxu0 0.0
      %3510 = vmatpush1.msra.mxu0 %v3267
      %3511 = vmatprep.subr.mxu0 0.0
      %3512 = vmatpush1.msra.mxu0 %v3268
      %3513 = vmatprep.subr.mxu0 0.0
      %3514 = vmatpush1.msra.mxu0 %v3269
      %3515 = vmatprep.subr.mxu0 0.0
      %3516 = vmatpush1.msra.mxu0 %v3270
      %3517 = vmatprep.subr.mxu0 0.0
      %3518 = vmatpush1.msra.mxu0 %v3271
      %3519 = vmatprep.subr.mxu0 0.0
      %3520 = vmatpush1.msra.mxu0 %v3272
      %3521 = vmatprep.subr.mxu0 0.0
      %3522 = vmatpush1.msra.mxu0 %v3273
      %3523 = vmatprep.subr.mxu0 0.0
      %3524 = vmatpush1.msra.mxu0 %v3274
      %3525 = vmatprep.subr.mxu0 0.0
      %3526 = vmatpush1.msra.mxu0 %v3275
      %3527 = vmatprep.subr.mxu0 0.0
      %3528 = vmatpush1.msra.mxu0 %v3276
      %3529 = vmatprep.subr.mxu0 0.0
      %3530 = vmatpush1.msra.mxu0 %v3277
      %3531 = vmatprep.subr.mxu0 0.0
      %3532 = vmatpush1.msra.mxu0 %v3278
      %3533 = vmatprep.subr.mxu0 0.0
      %3534 = vmatpush1.msra.mxu0 %v3279
      %3535 = vmatprep.subr.mxu0 0.0
      %3536 = vmatpush1.msra.mxu0 %v3280
      %3537 = vmatprep.subr.mxu0 0.0
      %3538 = vmatpush1.msra.mxu0 %v3281
      %3539 = vmatprep.subr.mxu0 0.0
      %3540 = vmatpush1.msra.mxu0 0.0
      %3541 = vmatprep.subr.mxu0 0.0
      %3542 = vmatpush1.msra.mxu0 0.0
      %3543 = vmatprep.subr.mxu0 0.0
      %3544 = vmatpush1.msra.mxu0 0.0
      %3545 = vmatprep.subr.mxu0 0.0
      %3546 = vmatpush1.msra.mxu0 0.0
      %3547 = vmatprep.subr.mxu0 0.0
      %3548 = vmatpush1.msra.mxu0 0.0
      %3549 = vmatprep.subr.mxu0 0.0
      %3550 = vmatpush1.msra.mxu0 0.0
      %3551 = vmatprep.subr.mxu0 0.0
      %3552 = vmatpush1.msra.mxu0 0.0
      %3553 = vmatprep.subr.mxu0 0.0
      %3554 = vmatpush1.msra.mxu0 0.0
      %3555 = vmatprep.subr.mxu0 0.0
      %3556 = vmatpush1.msra.mxu0 0.0
      %3557 = vmatprep.subr.mxu0 0.0
      %3558 = vmatpush1.msra.mxu0 0.0
      %3559 = vmatprep.subr.mxu0 0.0
      %3560 = vmatpush1.msra.mxu0 0.0
      %3561 = vmatprep.subr.mxu0 0.0
      %3562 = vmatpush1.msra.mxu0 0.0
      %3563 = vmatprep.subr.mxu0 0.0
      %3564 = vmatpush1.msra.mxu0 0.0
      %3565 = vmatprep.subr.mxu0 0.0
      %3566 = vmatpush1.msra.mxu0 0.0
      %3567 = vmatprep.subr.mxu0 0.0
      %3568 = vmatpush1.msra.mxu0 0.0
      %3569 = vmatprep.subr.mxu0 0.0
      %3570 = vmatpush1.msra.mxu0 0.0
      %3571 = vmatprep.mubr.f32.mxu0 0.0
      %3572 = vmatmul.mubr.f32.gmra.mrb[0].mxu0 %v2552
      %v3573 = vpop.f32.mrb[0].mxu0
      %v3574 = vadd.f32 %v3349, %v3573
      %v3575 = vpop.f32.mrb[0].mxu0
      %3576 = vmatprep.mubr.f32.mxu0 0.0
      %3577 = vmatmul.mubr.f32.gmra.mrb[0].mxu0 %v2554
      %v3578 = vpop.f32.mrb[0].mxu0
      %v3579 = vadd.f32 %v3354, %v3578
      %v3580 = vpop.f32.mrb[0].mxu0
      %3581 = vmatprep.mubr.f32.mxu0 0.0
      %3582 = vmatmul.mubr.f32.gmra.mrb[0].mxu0 %v2557
      %v3583 = vpop.f32.mrb[0].mxu0
      %v3584 = vadd.f32 %v3359, %v3583
      %v3585 = vpop.f32.mrb[0].mxu0
      %3586 = vmatprep.mubr.f32.mxu0 0.0
      %3587 = vmatmul.mubr.f32.gmra.mrb[0].mxu0 %v2559
      %v3588 = vpop.f32.mrb[0].mxu0
      %v3589 = vadd.f32 %v3364, %v3588
      %v3590 = vpop.f32.mrb[0].mxu0
      %3591 = vmatprep.mubr.f32.mxu0 0.0
      %3592 = vmatmul.mubr.f32.gmra.mrb[0].mxu0 %v2562
      %v3593 = vpop.f32.mrb[0].mxu0
      %v3594 = vadd.f32 %v3369, %v3593
      %v3595 = vpop.f32.mrb[0].mxu0
      %3596 = vmatprep.mubr.f32.mxu0 0.0
      %3597 = vmatmul.mubr.f32.gmra.mrb[0].mxu0 %v2564
      %v3598 = vpop.f32.mrb[0].mxu0
      %v3599 = vadd.f32 %v3374, %v3598
      %v3600 = vpop.f32.mrb[0].mxu0
      %3601 = vmatprep.mubr.f32.mxu0 0.0
      %3602 = vmatmul.mubr.f32.gmra.mrb[0].mxu0 %v2567
      %v3603 = vpop.f32.mrb[0].mxu0
      %v3604 = vadd.f32 %v3379, %v3603
      %v3605 = vpop.f32.mrb[0].mxu0
      %3606 = vmatprep.mubr.f32.mxu0 0.0
      %3607 = vmatmul.mubr.f32.gmra.mrb[0].mxu0 %v2569
      %v3608 = vpop.f32.mrb[0].mxu0
      %v3609 = vadd.f32 %v3384, %v3608
      %v3610 = vpop.f32.mrb[0].mxu0
      %3611 = vmatprep.mubr.f32.mxu0 0.0
      %3612 = vmatmul.mubr.f32.gmra.mrb[0].mxu0 %v2572
      %v3613 = vpop.f32.mrb[0].mxu0
      %v3614 = vadd.f32 %v3389, %v3613
      %v3615 = vpop.f32.mrb[0].mxu0
      %3616 = vmatprep.mubr.f32.mxu0 0.0
      %3617 = vmatmul.mubr.f32.gmra.mrb[0].mxu0 %v2574
      %v3618 = vpop.f32.mrb[0].mxu0
      %v3619 = vadd.f32 %v3394, %v3618
      %v3620 = vpop.f32.mrb[0].mxu0
      %3621 = vmatprep.mubr.f32.mxu0 0.0
      %3622 = vmatmul.mubr.f32.gmra.mrb[0].mxu0 %v2577
      %v3623 = vpop.f32.mrb[0].mxu0
      %v3624 = vadd.f32 %v3399, %v3623
      %v3625 = vpop.f32.mrb[0].mxu0
      %3626 = vmatprep.mubr.f32.mxu0 0.0
      %3627 = vmatmul.mubr.f32.gmra.mrb[0].mxu0 %v2579
      %v3628 = vpop.f32.mrb[0].mxu0
      %v3629 = vadd.f32 %v3404, %v3628
      %v3630 = vpop.f32.mrb[0].mxu0
      %3631 = vmatprep.mubr.f32.mxu0 0.0
      %3632 = vmatmul.mubr.f32.gmra.mrb[0].mxu0 %v2582
      %v3633 = vpop.f32.mrb[0].mxu0
      %v3634 = vadd.f32 %v3409, %v3633
      %v3635 = vpop.f32.mrb[0].mxu0
      %3636 = vmatprep.mubr.f32.mxu0 0.0
      %3637 = vmatmul.mubr.f32.gmra.mrb[0].mxu0 %v2584
      %v3638 = vpop.f32.mrb[0].mxu0
      %v3639 = vadd.f32 %v3414, %v3638
      %v3640 = vpop.f32.mrb[0].mxu0
      %3641 = vmatprep.mubr.f32.mxu0 0.0
      %3642 = vmatmul.mubr.f32.gmra.mrb[0].mxu0 %v2587
      %v3643 = vpop.f32.mrb[0].mxu0
      %v3644 = vadd.f32 %v3419, %v3643
      %v3645 = vpop.f32.mrb[0].mxu0
      %3646 = vmatprep.mubr.f32.mxu0 0.0
      %3647 = vmatmul.mubr.f32.gmra.mrb[0].mxu0 %v2589
      %v3648 = vpop.f32.mrb[0].mxu0
      %v3649 = vadd.f32 %v3424, %v3648
      %v3650 = vpop.f32.mrb[0].mxu0
      %3651 = vmatprep.mubr.f32.mxu0 0.0
      %3652 = vmatmul.mubr.f32.gmra.mrb[0].mxu0 %v2592
      %v3653 = vpop.f32.mrb[0].mxu0
      %v3654 = vadd.f32 %v3429, %v3653
      %v3655 = vpop.f32.mrb[0].mxu0
      %3656 = vmatprep.mubr.f32.mxu0 0.0
      %3657 = vmatmul.mubr.f32.gmra.mrb[0].mxu0 %v2594
      %v3658 = vpop.f32.mrb[0].mxu0
      %v3659 = vadd.f32 %v3434, %v3658
      %v3660 = vpop.f32.mrb[0].mxu0
      %3661 = vmatprep.mubr.f32.mxu0 0.0
      %3662 = vmatmul.mubr.f32.gmra.mrb[0].mxu0 %v2597
      %v3663 = vpop.f32.mrb[0].mxu0
      %v3664 = vadd.f32 %v3439, %v3663
      %v3665 = vpop.f32.mrb[0].mxu0
      %3666 = vmatprep.mubr.f32.mxu0 0.0
      %3667 = vmatmul.mubr.f32.gmra.mrb[0].mxu0 %v2599
      %v3668 = vpop.f32.mrb[0].mxu0
      %v3669 = vadd.f32 %v3444, %v3668
      %v3670 = vpop.f32.mrb[0].mxu0
      %3671 = vmatprep.mubr.f32.mxu0 0.0
      %3672 = vmatmul.mubr.f32.gmra.mrb[0].mxu0 %v2602
      %v3673 = vpop.f32.mrb[0].mxu0
      %v3674 = vadd.f32 %v3449, %v3673
      %v3675 = vpop.f32.mrb[0].mxu0
      %3676 = vmatprep.mubr.f32.mxu0 0.0
      %3677 = vmatmul.mubr.f32.gmra.mrb[0].mxu0 %v2604
      %v3678 = vpop.f32.mrb[0].mxu0
      %v3679 = vadd.f32 %v3454, %v3678
      %v3680 = vpop.f32.mrb[0].mxu0
      %3681 = vmatprep.mubr.f32.mxu0 0.0
      %3682 = vmatmul.mubr.f32.gmra.mrb[0].mxu0 %v2607
      %v3683 = vpop.f32.mrb[0].mxu0
      %v3684 = vadd.f32 %v3459, %v3683
      %v3685 = vpop.f32.mrb[0].mxu0
      %3686 = vmatprep.mubr.f32.mxu0 0.0
      %3687 = vmatmul.mubr.f32.gmra.mrb[0].mxu0 %v2609
      %v3688 = vpop.f32.mrb[0].mxu0
      %v3689 = vadd.f32 %v3464, %v3688
      %v3690 = vpop.f32.mrb[0].mxu0
      %3691 = vmatprep.mubr.f32.mxu0 0.0
      %3692 = vmatmul.mubr.f32.gmra.mrb[0].mxu0 %v2612
      %v3693 = vpop.f32.mrb[0].mxu0
      %v3694 = vadd.f32 %v3469, %v3693
      %v3695 = vpop.f32.mrb[0].mxu0
      %3696 = vmatprep.mubr.f32.mxu0 0.0
      %3697 = vmatmul.mubr.f32.gmra.mrb[0].mxu0 %v2614
      %v3698 = vpop.f32.mrb[0].mxu0
      %v3699 = vadd.f32 %v3474, %v3698
      %v3700 = vpop.f32.mrb[0].mxu0
      %3701 = vmatprep.mubr.f32.mxu0 0.0
      %3702 = vmatmul.mubr.f32.gmra.mrb[0].mxu0 %v2617
      %v3703 = vpop.f32.mrb[0].mxu0
      %v3704 = vadd.f32 %v3479, %v3703
      %v3705 = vpop.f32.mrb[0].mxu0
      %3706 = vmatprep.mubr.f32.mxu0 0.0
      %3707 = vmatmul.mubr.f32.gmra.mrb[0].mxu0 %v2619
      %v3708 = vpop.f32.mrb[0].mxu0
      %v3709 = vadd.f32 %v3484, %v3708
      %v3710 = vpop.f32.mrb[0].mxu0
      %3711 = vmatprep.mubr.f32.mxu0 0.0
      %3712 = vmatmul.mubr.f32.gmra.mrb[0].mxu0 %v2712
      %v3713 = vpop.f32.mrb[0].mxu0
      %v3714 = vadd.f32 %v3489, %v3713
      %v3715 = vpop.f32.mrb[0].mxu0
      %3716 = vmatprep.mubr.f32.mxu0 0.0
      %3717 = vmatmul.mubr.f32.gmra.mrb[0].mxu0 %v2714
      %v3718 = vpop.f32.mrb[0].mxu0
      %v3719 = vadd.f32 %v3494, %v3718
      %v3720 = vpop.f32.mrb[0].mxu0
      %3721 = vmatprep.mubr.f32.mxu0 0.0
      %3722 = vmatmul.mubr.f32.gmra.mrb[0].mxu0 %v3228
      %v3723 = vpop.f32.mrb[0].mxu0
      %v3724 = vadd.f32 %v3499, %v3723
      %v3725 = vpop.f32.mrb[0].mxu0
      %3726 = vmatprep.mubr.f32.mxu0 0.0
      %3727 = vmatmul.mubr.f32.gmra.mrb[0].mxu0 %v3230
      %v3728 = vpop.f32.mrb[0].mxu0
      %v3729 = vadd.f32 %v3504, %v3728
      %v3730 = vpop.f32.mrb[0].mxu0
      %3731 = vdwg.mxu0
      %3732 = vmatprep.subr.mxu0 0.0
      %3733 = vmatpush1.msra.mxu0 %v2652
      %3734 = vmatprep.subr.mxu0 0.0
      %3735 = vmatpush1.msra.mxu0 %v2653
      %3736 = vmatprep.subr.mxu0 0.0
      %3737 = vmatpush1.msra.mxu0 %v2654
      %3738 = vmatprep.subr.mxu0 0.0
      %3739 = vmatpush1.msra.mxu0 %v2655
      %3740 = vmatprep.subr.mxu0 0.0
      %3741 = vmatpush1.msra.mxu0 %v2656
      %3742 = vmatprep.subr.mxu0 0.0
      %3743 = vmatpush1.msra.mxu0 %v2657
      %3744 = vmatprep.subr.mxu0 0.0
      %3745 = vmatpush1.msra.mxu0 %v2658
      %3746 = vmatprep.subr.mxu0 0.0
      %3747 = vmatpush1.msra.mxu0 %v2659
      %3748 = vmatprep.subr.mxu0 0.0
      %3749 = vmatpush1.msra.mxu0 %v2660
      %3750 = vmatprep.subr.mxu0 0.0
      %3751 = vmatpush1.msra.mxu0 %v2661
      %3752 = vmatprep.subr.mxu0 0.0
      %3753 = vmatpush1.msra.mxu0 %v2662
      %3754 = vmatprep.subr.mxu0 0.0
      %3755 = vmatpush1.msra.mxu0 %v2663
      %3756 = vmatprep.subr.mxu0 0.0
      %3757 = vmatpush1.msra.mxu0 %v2664
      %3758 = vmatprep.subr.mxu0 0.0
      %3759 = vmatpush1.msra.mxu0 %v2665
      %3760 = vmatprep.subr.mxu0 0.0
      %3761 = vmatpush1.msra.mxu0 %v2666
      %3762 = vmatprep.subr.mxu0 0.0
      %3763 = vmatpush1.msra.mxu0 %v2667
      %3764 = vmatprep.subr.mxu0 0.0
      %3765 = vmatpush1.msra.mxu0 %v2668
      %3766 = vmatprep.subr.mxu0 0.0
      %3767 = vmatpush1.msra.mxu0 %v2669
      %3768 = vmatprep.subr.mxu0 0.0
      %3769 = vmatpush1.msra.mxu0 %v2670
      %3770 = vmatprep.subr.mxu0 0.0
      %3771 = vmatpush1.msra.mxu0 %v2671
      %3772 = vmatprep.subr.mxu0 0.0
      %3773 = vmatpush1.msra.mxu0 %v2672
      %3774 = vmatprep.subr.mxu0 0.0
      %3775 = vmatpush1.msra.mxu0 %v2673
      %3776 = vmatprep.subr.mxu0 0.0
      %3777 = vmatpush1.msra.mxu0 %v2674
      %3778 = vmatprep.subr.mxu0 0.0
      %3779 = vmatpush1.msra.mxu0 %v2675
      %3780 = vmatprep.subr.mxu0 0.0
      %3781 = vmatpush1.msra.mxu0 %v2676
      %3782 = vmatprep.subr.mxu0 0.0
      %3783 = vmatpush1.msra.mxu0 %v2677
      %3784 = vmatprep.subr.mxu0 0.0
      %3785 = vmatpush1.msra.mxu0 %v2678
      %3786 = vmatprep.subr.mxu0 0.0
      %3787 = vmatpush1.msra.mxu0 %v2679
      %3788 = vmatprep.subr.mxu0 0.0
      %3789 = vmatpush1.msra.mxu0 %v2680
      %3790 = vmatprep.subr.mxu0 0.0
      %3791 = vmatpush1.msra.mxu0 %v2681
      %3792 = vmatprep.subr.mxu0 0.0
      %3793 = vmatpush1.msra.mxu0 %v2682
      %3794 = vmatprep.subr.mxu0 0.0
      %3795 = vmatpush1.msra.mxu0 %v2683
      %3796 = vmatprep.mubr.f32.mxu0 %v2430
      %3797 = vmatmul.mubr.f32.gmra.mrb[0].mxu0 %v2326
      %v3798 = vpop.f32.mrb[0].mxu0
      %v3799 = vadd.f32 %v3058, %v3798
      %v3800 = vpop.f32.mrb[0].mxu0
      %3801 = vmatprep.mubr.f32.mxu0 %v2432
      %3802 = vmatmul.mubr.f32.gmra.mrb[0].mxu0 %v2327
      %v3803 = vpop.f32.mrb[0].mxu0
      %v3804 = vadd.f32 %v3063, %v3803
      %v3805 = vpop.f32.mrb[0].mxu0
      %3806 = vmatprep.mubr.f32.mxu0 %v2435
      %3807 = vmatmul.mubr.f32.gmra.mrb[0].mxu0 %v2329
      %v3808 = vpop.f32.mrb[0].mxu0
      %v3809 = vadd.f32 %v3068, %v3808
      %v3810 = vpop.f32.mrb[0].mxu0
      %3811 = vmatprep.mubr.f32.mxu0 %v2437
      %3812 = vmatmul.mubr.f32.gmra.mrb[0].mxu0 %v2330
      %v3813 = vpop.f32.mrb[0].mxu0
      %v3814 = vadd.f32 %v3073, %v3813
      %v3815 = vpop.f32.mrb[0].mxu0
      %3816 = vmatprep.mubr.f32.mxu0 %v2440
      %3817 = vmatmul.mubr.f32.gmra.mrb[0].mxu0 %v2332
      %v3818 = vpop.f32.mrb[0].mxu0
      %v3819 = vadd.f32 %v3078, %v3818
      %v3820 = vpop.f32.mrb[0].mxu0
      %3821 = vmatprep.mubr.f32.mxu0 %v2442
      %3822 = vmatmul.mubr.f32.gmra.mrb[0].mxu0 %v2333
      %v3823 = vpop.f32.mrb[0].mxu0
      %v3824 = vadd.f32 %v3083, %v3823
      %v3825 = vpop.f32.mrb[0].mxu0
      %3826 = vmatprep.mubr.f32.mxu0 %v2445
      %3827 = vmatmul.mubr.f32.gmra.mrb[0].mxu0 %v2335
      %v3828 = vpop.f32.mrb[0].mxu0
      %v3829 = vadd.f32 %v3088, %v3828
      %v3830 = vpop.f32.mrb[0].mxu0
      %3831 = vmatprep.mubr.f32.mxu0 %v2447
      %3832 = vmatmul.mubr.f32.gmra.mrb[0].mxu0 %v2336
      %v3833 = vpop.f32.mrb[0].mxu0
      %v3834 = vadd.f32 %v3093, %v3833
      %v3835 = vpop.f32.mrb[0].mxu0
      %3836 = vmatprep.mubr.f32.mxu0 %v2450
      %3837 = vmatmul.mubr.f32.gmra.mrb[0].mxu0 %v2338
      %v3838 = vpop.f32.mrb[0].mxu0
      %v3839 = vadd.f32 %v3098, %v3838
      %v3840 = vpop.f32.mrb[0].mxu0
      %3841 = vmatprep.mubr.f32.mxu0 %v2452
      %3842 = vmatmul.mubr.f32.gmra.mrb[0].mxu0 %v2339
      %v3843 = vpop.f32.mrb[0].mxu0
      %v3844 = vadd.f32 %v3103, %v3843
      %v3845 = vpop.f32.mrb[0].mxu0
      %3846 = vmatprep.mubr.f32.mxu0 %v2455
      %3847 = vmatmul.mubr.f32.gmra.mrb[0].mxu0 %v2341
      %v3848 = vpop.f32.mrb[0].mxu0
      %v3849 = vadd.f32 %v3108, %v3848
      %v3850 = vpop.f32.mrb[0].mxu0
      %3851 = vmatprep.mubr.f32.mxu0 %v2457
      %3852 = vmatmul.mubr.f32.gmra.mrb[0].mxu0 %v2342
      %v3853 = vpop.f32.mrb[0].mxu0
      %v3854 = vadd.f32 %v3113, %v3853
      %v3855 = vpop.f32.mrb[0].mxu0
      %3856 = vmatprep.mubr.f32.mxu0 %v2460
      %3857 = vmatmul.mubr.f32.gmra.mrb[0].mxu0 %v2344
      %v3858 = vpop.f32.mrb[0].mxu0
      %v3859 = vadd.f32 %v3118, %v3858
      %v3860 = vpop.f32.mrb[0].mxu0
      %3861 = vmatprep.mubr.f32.mxu0 %v2462
      %3862 = vmatmul.mubr.f32.gmra.mrb[0].mxu0 %v2345
      %v3863 = vpop.f32.mrb[0].mxu0
      %v3864 = vadd.f32 %v3123, %v3863
      %v3865 = vpop.f32.mrb[0].mxu0
      %3866 = vmatprep.mubr.f32.mxu0 %v2465
      %3867 = vmatmul.mubr.f32.gmra.mrb[0].mxu0 %v2347
      %v3868 = vpop.f32.mrb[0].mxu0
      %v3869 = vadd.f32 %v3128, %v3868
      %v3870 = vpop.f32.mrb[0].mxu0
      %3871 = vmatprep.mubr.f32.mxu0 %v2467
      %3872 = vmatmul.mubr.f32.gmra.mrb[0].mxu0 %v2348
      %v3873 = vpop.f32.mrb[0].mxu0
      %v3874 = vadd.f32 %v3133, %v3873
      %v3875 = vpop.f32.mrb[0].mxu0
      %3876 = vmatprep.mubr.f32.mxu0 %v2470
      %3877 = vmatmul.mubr.f32.gmra.mrb[0].mxu0 %v2350
      %v3878 = vpop.f32.mrb[0].mxu0
      %v3879 = vadd.f32 %v3138, %v3878
      %v3880 = vpop.f32.mrb[0].mxu0
      %3881 = vmatprep.mubr.f32.mxu0 %v2472
      %3882 = vmatmul.mubr.f32.gmra.mrb[0].mxu0 %v2351
      %v3883 = vpop.f32.mrb[0].mxu0
      %v3884 = vadd.f32 %v3143, %v3883
      %v3885 = vpop.f32.mrb[0].mxu0
      %3886 = vmatprep.mubr.f32.mxu0 %v2475
      %3887 = vmatmul.mubr.f32.gmra.mrb[0].mxu0 %v2353
      %v3888 = vpop.f32.mrb[0].mxu0
      %v3889 = vadd.f32 %v3148, %v3888
      %v3890 = vpop.f32.mrb[0].mxu0
      %3891 = vmatprep.mubr.f32.mxu0 %v2477
      %3892 = vmatmul.mubr.f32.gmra.mrb[0].mxu0 %v2354
      %v3893 = vpop.f32.mrb[0].mxu0
      %v3894 = vadd.f32 %v3153, %v3893
      %v3895 = vpop.f32.mrb[0].mxu0
      %3896 = vmatprep.mubr.f32.mxu0 %v2480
      %3897 = vmatmul.mubr.f32.gmra.mrb[0].mxu0 %v2356
      %v3898 = vpop.f32.mrb[0].mxu0
      %v3899 = vadd.f32 %v3158, %v3898
      %v3900 = vpop.f32.mrb[0].mxu0
      %3901 = vmatprep.mubr.f32.mxu0 %v2482
      %3902 = vmatmul.mubr.f32.gmra.mrb[0].mxu0 %v2357
      %v3903 = vpop.f32.mrb[0].mxu0
      %v3904 = vadd.f32 %v3163, %v3903
      %v3905 = vpop.f32.mrb[0].mxu0
      %3906 = vmatprep.mubr.f32.mxu0 %v2485
      %3907 = vmatmul.mubr.f32.gmra.mrb[0].mxu0 %v2359
      %v3908 = vpop.f32.mrb[0].mxu0
      %v3909 = vadd.f32 %v3168, %v3908
      %v3910 = vpop.f32.mrb[0].mxu0
      %3911 = vmatprep.mubr.f32.mxu0 %v2487
      %3912 = vmatmul.mubr.f32.gmra.mrb[0].mxu0 %v2360
      %v3913 = vpop.f32.mrb[0].mxu0
      %v3914 = vadd.f32 %v3173, %v3913
      %v3915 = vpop.f32.mrb[0].mxu0
      %3916 = vmatprep.mubr.f32.mxu0 %v2490
      %3917 = vmatmul.mubr.f32.gmra.mrb[0].mxu0 %v2362
      %v3918 = vpop.f32.mrb[0].mxu0
      %v3919 = vadd.f32 %v3178, %v3918
      %v3920 = vpop.f32.mrb[0].mxu0
      %3921 = vmatprep.mubr.f32.mxu0 %v2492
      %3922 = vmatmul.mubr.f32.gmra.mrb[0].mxu0 %v2363
      %v3923 = vpop.f32.mrb[0].mxu0
      %v3924 = vadd.f32 %v3183, %v3923
      %v3925 = vpop.f32.mrb[0].mxu0
      %3926 = vmatprep.mubr.f32.mxu0 %v2495
      %3927 = vmatmul.mubr.f32.gmra.mrb[0].mxu0 %v2365
      %v3928 = vpop.f32.mrb[0].mxu0
      %v3929 = vadd.f32 %v3188, %v3928
      %v3930 = vpop.f32.mrb[0].mxu0
      %3931 = vmatprep.mubr.f32.mxu0 %v2497
      %3932 = vmatmul.mubr.f32.gmra.mrb[0].mxu0 %v2366
      %v3933 = vpop.f32.mrb[0].mxu0
      %v3934 = vadd.f32 %v3193, %v3933
      %v3935 = vpop.f32.mrb[0].mxu0
      %3936 = vmatprep.mubr.f32.mxu0 %v2500
      %3937 = vmatmul.mubr.f32.gmra.mrb[0].mxu0 %v2368
      %v3938 = vpop.f32.mrb[0].mxu0
      %v3939 = vadd.f32 %v3198, %v3938
      %v3940 = vpop.f32.mrb[0].mxu0
      %3941 = vmatprep.mubr.f32.mxu0 %v2502
      %3942 = vmatmul.mubr.f32.gmra.mrb[0].mxu0 %v2369
      %v3943 = vpop.f32.mrb[0].mxu0
      %v3944 = vadd.f32 %v3203, %v3943
      %v3945 = vpop.f32.mrb[0].mxu0
      %3946 = vmatprep.mubr.f32.mxu0 %v2505
      %3947 = vmatmul.mubr.f32.gmra.mrb[0].mxu0 %v2371
      %v3948 = vpop.f32.mrb[0].mxu0
      %v3949 = vadd.f32 %v3208, %v3948
      %v3950 = vpop.f32.mrb[0].mxu0
      %3951 = vmatprep.mubr.f32.mxu0 %v2507
      %3952 = vmatmul.mubr.f32.gmra.mrb[0].mxu0 %v2372
      %v3953 = vpop.f32.mrb[0].mxu0
      %v3954 = vadd.f32 %v3213, %v3953
      %v3955 = vpop.f32.mrb[0].mxu0
      %3956 = vdwg.mxu0
      %3957 = vmatprep.subr.mxu0 0.0
      %3958 = vmatpush1.msra.mxu0 %v2684
      %3959 = vmatprep.subr.mxu0 0.0
      %3960 = vmatpush1.msra.mxu0 %v2685
      %3961 = vmatprep.subr.mxu0 0.0
      %3962 = vmatpush1.msra.mxu0 %v2686
      %3963 = vmatprep.subr.mxu0 0.0
      %3964 = vmatpush1.msra.mxu0 %v2687
      %3965 = vmatprep.subr.mxu0 0.0
      %3966 = vmatpush1.msra.mxu0 %v2688
      %3967 = vmatprep.subr.mxu0 0.0
      %3968 = vmatpush1.msra.mxu0 %v2689
      %3969 = vmatprep.subr.mxu0 0.0
      %3970 = vmatpush1.msra.mxu0 %v2690
      %3971 = vmatprep.subr.mxu0 0.0
      %3972 = vmatpush1.msra.mxu0 %v2691
      %3973 = vmatprep.subr.mxu0 0.0
      %3974 = vmatpush1.msra.mxu0 %v2692
      %3975 = vmatprep.subr.mxu0 0.0
      %3976 = vmatpush1.msra.mxu0 %v2693
      %3977 = vmatprep.subr.mxu0 0.0
      %3978 = vmatpush1.msra.mxu0 %v2694
      %3979 = vmatprep.subr.mxu0 0.0
      %3980 = vmatpush1.msra.mxu0 %v2695
      %3981 = vmatprep.subr.mxu0 0.0
      %3982 = vmatpush1.msra.mxu0 %v2696
      %3983 = vmatprep.subr.mxu0 0.0
      %3984 = vmatpush1.msra.mxu0 %v2697
      %3985 = vmatprep.subr.mxu0 0.0
      %3986 = vmatpush1.msra.mxu0 %v2698
      %3987 = vmatprep.subr.mxu0 0.0
      %3988 = vmatpush1.msra.mxu0 %v2699
      %3989 = vmatprep.subr.mxu0 0.0
      %3990 = vmatpush1.msra.mxu0 0.0
      %3991 = vmatprep.subr.mxu0 0.0
      %3992 = vmatpush1.msra.mxu0 0.0
      %3993 = vmatprep.subr.mxu0 0.0
      %3994 = vmatpush1.msra.mxu0 0.0
      %3995 = vmatprep.subr.mxu0 0.0
      %3996 = vmatpush1.msra.mxu0 0.0
      %3997 = vmatprep.subr.mxu0 0.0
      %3998 = vmatpush1.msra.mxu0 0.0
      %3999 = vmatprep.subr.mxu0 0.0
      %4000 = vmatpush1.msra.mxu0 0.0
      %4001 = vmatprep.subr.mxu0 0.0
      %4002 = vmatpush1.msra.mxu0 0.0
      %4003 = vmatprep.subr.mxu0 0.0
      %4004 = vmatpush1.msra.mxu0 0.0
      %4005 = vmatprep.subr.mxu0 0.0
      %4006 = vmatpush1.msra.mxu0 0.0
      %4007 = vmatprep.subr.mxu0 0.0
      %4008 = vmatpush1.msra.mxu0 0.0
      %4009 = vmatprep.subr.mxu0 0.0
      %4010 = vmatpush1.msra.mxu0 0.0
      %4011 = vmatprep.subr.mxu0 0.0
      %4012 = vmatpush1.msra.mxu0 0.0
      %4013 = vmatprep.subr.mxu0 0.0
      %4014 = vmatpush1.msra.mxu0 0.0
      %4015 = vmatprep.subr.mxu0 0.0
      %4016 = vmatpush1.msra.mxu0 0.0
      %4017 = vmatprep.subr.mxu0 0.0
      %4018 = vmatpush1.msra.mxu0 0.0
      %4019 = vmatprep.subr.mxu0 0.0
      %4020 = vmatpush1.msra.mxu0 0.0
      %4021 = vmatprep.mubr.f32.mxu0 0.0
      %4022 = vmatmul.mubr.f32.gmra.mrb[0].mxu0 %v2542
      %v4023 = vpop.f32.mrb[0].mxu0
      %v4024 = vadd.f32 %v3799, %v4023
      %v4025 = vpop.f32.mrb[0].mxu0
      %4026 = vmatprep.mubr.f32.mxu0 0.0
      %4027 = vmatmul.mubr.f32.gmra.mrb[0].mxu0 %v2544
      %v4028 = vpop.f32.mrb[0].mxu0
      %v4029 = vadd.f32 %v3804, %v4028
      %v4030 = vpop.f32.mrb[0].mxu0
      %4031 = vmatprep.mubr.f32.mxu0 0.0
      %4032 = vmatmul.mubr.f32.gmra.mrb[0].mxu0 %v2547
      %v4033 = vpop.f32.mrb[0].mxu0
      %v4034 = vadd.f32 %v3809, %v4033
      %v4035 = vpop.f32.mrb[0].mxu0
      %4036 = vmatprep.mubr.f32.mxu0 0.0
      %4037 = vmatmul.mubr.f32.gmra.mrb[0].mxu0 %v2549
      %v4038 = vpop.f32.mrb[0].mxu0
      %v4039 = vadd.f32 %v3814, %v4038
      %v4040 = vpop.f32.mrb[0].mxu0
      %4041 = vmatprep.mubr.f32.mxu0 0.0
      %4042 = vmatmul.mubr.f32.gmra.mrb[0].mxu0 %v2552
      %v4043 = vpop.f32.mrb[0].mxu0
      %v4044 = vadd.f32 %v3819, %v4043
      %v4045 = vpop.f32.mrb[0].mxu0
      %4046 = vmatprep.mubr.f32.mxu0 0.0
      %4047 = vmatmul.mubr.f32.gmra.mrb[0].mxu0 %v2554
      %v4048 = vpop.f32.mrb[0].mxu0
      %v4049 = vadd.f32 %v3824, %v4048
      %v4050 = vpop.f32.mrb[0].mxu0
      %4051 = vmatprep.mubr.f32.mxu0 0.0
      %4052 = vmatmul.mubr.f32.gmra.mrb[0].mxu0 %v2557
      %v4053 = vpop.f32.mrb[0].mxu0
      %v4054 = vadd.f32 %v3829, %v4053
      %v4055 = vpop.f32.mrb[0].mxu0
      %4056 = vmatprep.mubr.f32.mxu0 0.0
      %4057 = vmatmul.mubr.f32.gmra.mrb[0].mxu0 %v2559
      %v4058 = vpop.f32.mrb[0].mxu0
      %v4059 = vadd.f32 %v3834, %v4058
      %v4060 = vpop.f32.mrb[0].mxu0
      %4061 = vmatprep.mubr.f32.mxu0 0.0
      %4062 = vmatmul.mubr.f32.gmra.mrb[0].mxu0 %v2562
      %v4063 = vpop.f32.mrb[0].mxu0
      %v4064 = vadd.f32 %v3839, %v4063
      %v4065 = vpop.f32.mrb[0].mxu0
      %4066 = vmatprep.mubr.f32.mxu0 0.0
      %4067 = vmatmul.mubr.f32.gmra.mrb[0].mxu0 %v2564
      %v4068 = vpop.f32.mrb[0].mxu0
      %v4069 = vadd.f32 %v3844, %v4068
      %v4070 = vpop.f32.mrb[0].mxu0
      %4071 = vmatprep.mubr.f32.mxu0 0.0
      %4072 = vmatmul.mubr.f32.gmra.mrb[0].mxu0 %v2567
      %v4073 = vpop.f32.mrb[0].mxu0
      %v4074 = vadd.f32 %v3849, %v4073
      %v4075 = vpop.f32.mrb[0].mxu0
      %4076 = vmatprep.mubr.f32.mxu0 0.0
      %4077 = vmatmul.mubr.f32.gmra.mrb[0].mxu0 %v2569
      %v4078 = vpop.f32.mrb[0].mxu0
      %v4079 = vadd.f32 %v3854, %v4078
      %v4080 = vpop.f32.mrb[0].mxu0
      %4081 = vmatprep.mubr.f32.mxu0 0.0
      %4082 = vmatmul.mubr.f32.gmra.mrb[0].mxu0 %v2572
      %v4083 = vpop.f32.mrb[0].mxu0
      %v4084 = vadd.f32 %v3859, %v4083
      %v4085 = vpop.f32.mrb[0].mxu0
      %4086 = vmatprep.mubr.f32.mxu0 0.0
      %4087 = vmatmul.mubr.f32.gmra.mrb[0].mxu0 %v2574
      %v4088 = vpop.f32.mrb[0].mxu0
      %v4089 = vadd.f32 %v3864, %v4088
      %v4090 = vpop.f32.mrb[0].mxu0
      %4091 = vmatprep.mubr.f32.mxu0 0.0
      %4092 = vmatmul.mubr.f32.gmra.mrb[0].mxu0 %v2577
      %v4093 = vpop.f32.mrb[0].mxu0
      %v4094 = vadd.f32 %v3869, %v4093
      %v4095 = vpop.f32.mrb[0].mxu0
      %4096 = vmatprep.mubr.f32.mxu0 0.0
      %4097 = vmatmul.mubr.f32.gmra.mrb[0].mxu0 %v2579
      %v4098 = vpop.f32.mrb[0].mxu0
      %v4099 = vadd.f32 %v3874, %v4098
      %v4100 = vpop.f32.mrb[0].mxu0
      %4101 = vmatprep.mubr.f32.mxu0 0.0
      %4102 = vmatmul.mubr.f32.gmra.mrb[0].mxu0 %v2582
      %v4103 = vpop.f32.mrb[0].mxu0
      %v4104 = vadd.f32 %v3879, %v4103
      %v4105 = vpop.f32.mrb[0].mxu0
      %4106 = vmatprep.mubr.f32.mxu0 0.0
      %4107 = vmatmul.mubr.f32.gmra.mrb[0].mxu0 %v2584
      %v4108 = vpop.f32.mrb[0].mxu0
      %v4109 = vadd.f32 %v3884, %v4108
      %v4110 = vpop.f32.mrb[0].mxu0
      %4111 = vmatprep.mubr.f32.mxu0 0.0
      %4112 = vmatmul.mubr.f32.gmra.mrb[0].mxu0 %v2587
      %v4113 = vpop.f32.mrb[0].mxu0
      %v4114 = vadd.f32 %v3889, %v4113
      %v4115 = vpop.f32.mrb[0].mxu0
      %4116 = vmatprep.mubr.f32.mxu0 0.0
      %4117 = vmatmul.mubr.f32.gmra.mrb[0].mxu0 %v2589
      %v4118 = vpop.f32.mrb[0].mxu0
      %v4119 = vadd.f32 %v3894, %v4118
      %v4120 = vpop.f32.mrb[0].mxu0
      %4121 = vmatprep.mubr.f32.mxu0 0.0
      %4122 = vmatmul.mubr.f32.gmra.mrb[0].mxu0 %v2592
      %v4123 = vpop.f32.mrb[0].mxu0
      %v4124 = vadd.f32 %v3899, %v4123
      %v4125 = vpop.f32.mrb[0].mxu0
      %4126 = vmatprep.mubr.f32.mxu0 0.0
      %4127 = vmatmul.mubr.f32.gmra.mrb[0].mxu0 %v2594
      %v4128 = vpop.f32.mrb[0].mxu0
      %v4129 = vadd.f32 %v3904, %v4128
      %v4130 = vpop.f32.mrb[0].mxu0
      %4131 = vmatprep.mubr.f32.mxu0 0.0
      %4132 = vmatmul.mubr.f32.gmra.mrb[0].mxu0 %v2597
      %v4133 = vpop.f32.mrb[0].mxu0
      %v4134 = vadd.f32 %v3909, %v4133
      %v4135 = vpop.f32.mrb[0].mxu0
      %4136 = vmatprep.mubr.f32.mxu0 0.0
      %4137 = vmatmul.mubr.f32.gmra.mrb[0].mxu0 %v2599
      %v4138 = vpop.f32.mrb[0].mxu0
      %v4139 = vadd.f32 %v3914, %v4138
      %v4140 = vpop.f32.mrb[0].mxu0
      %4141 = vmatprep.mubr.f32.mxu0 0.0
      %4142 = vmatmul.mubr.f32.gmra.mrb[0].mxu0 %v2602
      %v4143 = vpop.f32.mrb[0].mxu0
      %v4144 = vadd.f32 %v3919, %v4143
      %v4145 = vpop.f32.mrb[0].mxu0
      %4146 = vmatprep.mubr.f32.mxu0 0.0
      %4147 = vmatmul.mubr.f32.gmra.mrb[0].mxu0 %v2604
      %v4148 = vpop.f32.mrb[0].mxu0
      %v4149 = vadd.f32 %v3924, %v4148
      %v4150 = vpop.f32.mrb[0].mxu0
      %4151 = vmatprep.mubr.f32.mxu0 0.0
      %4152 = vmatmul.mubr.f32.gmra.mrb[0].mxu0 %v2607
      %v4153 = vpop.f32.mrb[0].mxu0
      %v4154 = vadd.f32 %v3929, %v4153
      %v4155 = vpop.f32.mrb[0].mxu0
      %4156 = vmatprep.mubr.f32.mxu0 0.0
      %4157 = vmatmul.mubr.f32.gmra.mrb[0].mxu0 %v2609
      %v4158 = vpop.f32.mrb[0].mxu0
      %v4159 = vadd.f32 %v3934, %v4158
      %v4160 = vpop.f32.mrb[0].mxu0
      %4161 = vmatprep.mubr.f32.mxu0 0.0
      %4162 = vmatmul.mubr.f32.gmra.mrb[0].mxu0 %v2612
      %v4163 = vpop.f32.mrb[0].mxu0
      %v4164 = vadd.f32 %v3939, %v4163
      %v4165 = vpop.f32.mrb[0].mxu0
      %4166 = vmatprep.mubr.f32.mxu0 0.0
      %4167 = vmatmul.mubr.f32.gmra.mrb[0].mxu0 %v2614
      %v4168 = vpop.f32.mrb[0].mxu0
      %v4169 = vadd.f32 %v3944, %v4168
      %v4170 = vpop.f32.mrb[0].mxu0
      %4171 = vmatprep.mubr.f32.mxu0 0.0
      %4172 = vmatmul.mubr.f32.gmra.mrb[0].mxu0 %v2617
      %v4173 = vpop.f32.mrb[0].mxu0
      %v4174 = vadd.f32 %v3949, %v4173
      %v4175 = vpop.f32.mrb[0].mxu0
      %4176 = vmatprep.mubr.f32.mxu0 0.0
      %4177 = vmatmul.mubr.f32.gmra.mrb[0].mxu0 %v2619
      %v4178 = vpop.f32.mrb[0].mxu0
      %v4179 = vadd.f32 %v3954, %v4178
      %v4180 = vpop.f32.mrb[0].mxu0
      %4181 = vdwg.mxu0
      %v4182 = vadd.f32 %v4024, %v3574
      %v4183 = vadd.f32 %v4029, %v3579
      %v4184 = vadd.f32 %v4034, %v3584
      %v4185 = vadd.f32 %v4039, %v3589
      %v4186 = vadd.f32 %v4044, %v3594
      %v4187 = vadd.f32 %v4049, %v3599
      %v4188 = vadd.f32 %v4054, %v3604
      %v4189 = vadd.f32 %v4059, %v3609
      %v4190 = vadd.f32 %v4064, %v3614
      %v4191 = vadd.f32 %v4069, %v3619
      %v4192 = vadd.f32 %v4074, %v3624
      %v4193 = vadd.f32 %v4079, %v3629
      %v4194 = vadd.f32 %v4084, %v3634
      %v4195 = vadd.f32 %v4089, %v3639
      %v4196 = vadd.f32 %v4094, %v3644
      %v4197 = vadd.f32 %v4099, %v3649
      %v4198 = vadd.f32 %v4104, %v3654
      %v4199 = vadd.f32 %v4109, %v3659
      %v4200 = vadd.f32 %v4114, %v3664
      %v4201 = vadd.f32 %v4119, %v3669
      %v4202 = vadd.f32 %v4124, %v3674
      %v4203 = vadd.f32 %v4129, %v3679
      %v4204 = vadd.f32 %v4134, %v3684
      %v4205 = vadd.f32 %v4139, %v3689
      %v4206 = vadd.f32 %v4144, %v3694
      %v4207 = vadd.f32 %v4149, %v3699
      %v4208 = vadd.f32 %v4154, %v3704
      %v4209 = vadd.f32 %v4159, %v3709
      %v4210 = vadd.f32 %v4164, %v3714
      %v4211 = vadd.f32 %v4169, %v3719
      %v4212 = vadd.f32 %v4174, %v3724
      %v4213 = vadd.f32 %v4179, %v3729
      %v4214 = vld [vmem:[%s4] sm:$0x1]
      %v4216 = vlaneseq
      %v4217 = vshrl.u32 %v4216, 7
      %v4218 = vsub.s32 0, %v4217
      %v4219 = vrot.slane %v4214, %v4218
      %v4221 = vadd.f32 %v4182, %v4219
      %v4222 = vadd.f32 %v4183, %v4219
      %v4223 = vadd.f32 %v4184, %v4219
      %v4224 = vadd.f32 %v4185, %v4219
      %v4225 = vadd.f32 %v4186, %v4219
      %v4226 = vadd.f32 %v4187, %v4219
      %v4227 = vadd.f32 %v4188, %v4219
      %v4228 = vadd.f32 %v4189, %v4219
      %v4229 = vadd.f32 %v4190, %v4219
      %v4230 = vadd.f32 %v4191, %v4219
      %v4231 = vadd.f32 %v4192, %v4219
      %v4232 = vadd.f32 %v4193, %v4219
      %v4233 = vadd.f32 %v4194, %v4219
      %v4234 = vadd.f32 %v4195, %v4219
      %v4235 = vadd.f32 %v4196, %v4219
      %v4236 = vadd.f32 %v4197, %v4219
      %v4237 = vadd.f32 %v4198, %v4219
      %v4238 = vadd.f32 %v4199, %v4219
      %v4239 = vadd.f32 %v4200, %v4219
      %v4240 = vadd.f32 %v4201, %v4219
      %v4241 = vadd.f32 %v4202, %v4219
      %v4242 = vadd.f32 %v4203, %v4219
      %v4243 = vadd.f32 %v4204, %v4219
      %v4244 = vadd.f32 %v4205, %v4219
      %v4245 = vadd.f32 %v4206, %v4219
      %v4246 = vadd.f32 %v4207, %v4219
      %v4247 = vadd.f32 %v4208, %v4219
      %v4248 = vadd.f32 %v4209, %v4219
      %v4249 = vadd.f32 %v4210, %v4219
      %v4250 = vadd.f32 %v4211, %v4219
      %v4251 = vadd.f32 %v4212, %v4219
      %v4252 = vadd.f32 %v4213, %v4219
      %v4253 = vadd.f32 %v4221, %v268
      %v4254 = vadd.f32 %v4222, %v269
      %v4255 = vadd.f32 %v4223, %v270
      %v4256 = vadd.f32 %v4224, %v271
      %v4257 = vadd.f32 %v4225, %v272
      %v4258 = vadd.f32 %v4226, %v273
      %v4259 = vadd.f32 %v4227, %v274
      %v4260 = vadd.f32 %v4228, %v275
      %v4261 = vadd.f32 %v4229, %v276
      %v4262 = vadd.f32 %v4230, %v277
      %v4263 = vadd.f32 %v4231, %v278
      %v4264 = vadd.f32 %v4232, %v279
      %v4265 = vadd.f32 %v4233, %v280
      %v4266 = vadd.f32 %v4234, %v281
      %v4267 = vadd.f32 %v4235, %v282
      %v4268 = vadd.f32 %v4236, %v283
      %v4269 = vadd.f32 %v4237, %v284
      %v4270 = vadd.f32 %v4238, %v285
      %v4271 = vadd.f32 %v4239, %v286
      %v4272 = vadd.f32 %v4240, %v287
      %v4273 = vadd.f32 %v4241, %v288
      %v4274 = vadd.f32 %v4242, %v289
      %v4275 = vadd.f32 %v4243, %v290
      %v4276 = vadd.f32 %v4244, %v291
      %v4277 = vadd.f32 %v4245, %v292
      %v4278 = vadd.f32 %v4246, %v293
      %v4279 = vadd.f32 %v4247, %v294
      %v4280 = vadd.f32 %v4248, %v295
      %v4281 = vadd.f32 %v4249, %v296
      %v4282 = vadd.f32 %v4250, %v297
      %v4283 = vadd.f32 %v4251, %v298
      %v4284 = vadd.f32 %v4252, %v299
      %v4285 = vmax.f32 %v4253, 0.0
      %v4286 = vmax.f32 %v4254, 0.0
      %v4287 = vmax.f32 %v4255, 0.0
      %v4288 = vmax.f32 %v4256, 0.0
      %v4289 = vmax.f32 %v4257, 0.0
      %v4290 = vmax.f32 %v4258, 0.0
      %v4291 = vmax.f32 %v4259, 0.0
      %v4292 = vmax.f32 %v4260, 0.0
      %v4293 = vmax.f32 %v4261, 0.0
      %v4294 = vmax.f32 %v4262, 0.0
      %v4295 = vmax.f32 %v4263, 0.0
      %v4296 = vmax.f32 %v4264, 0.0
      %v4297 = vmax.f32 %v4265, 0.0
      %v4298 = vmax.f32 %v4266, 0.0
      %v4299 = vmax.f32 %v4267, 0.0
      %v4300 = vmax.f32 %v4268, 0.0
      %v4301 = vmax.f32 %v4269, 0.0
      %v4302 = vmax.f32 %v4270, 0.0
      %v4303 = vmax.f32 %v4271, 0.0
      %v4304 = vmax.f32 %v4272, 0.0
      %v4305 = vmax.f32 %v4273, 0.0
      %v4306 = vmax.f32 %v4274, 0.0
      %v4307 = vmax.f32 %v4275, 0.0
      %v4308 = vmax.f32 %v4276, 0.0
      %v4309 = vmax.f32 %v4277, 0.0
      %v4310 = vmax.f32 %v4278, 0.0
      %v4311 = vmax.f32 %v4279, 0.0
      %v4312 = vmax.f32 %v4280, 0.0
      %v4313 = vmax.f32 %v4281, 0.0
      %v4314 = vmax.f32 %v4282, 0.0
      %v4315 = vmax.f32 %v4283, 0.0
      %v4316 = vmax.f32 %v4284, 0.0
      %4317 = vst [vmem:[%s224] sm:$0xff] %v4285
      %4318 = vst [vmem:[%s224 + $0x8] sm:$0xff] %v4286
      %4319 = vst [vmem:[%s224 + $0x10] sm:$0xff] %v4287
      %4320 = vst [vmem:[%s224 + $0x18] sm:$0xff] %v4288
      %4321 = vst [vmem:[%s224 + $0x20] sm:$0xff] %v4289
      %4322 = vst [vmem:[%s224 + $0x28] sm:$0xff] %v4290
      %4323 = vst [vmem:[%s224 + $0x30] sm:$0xff] %v4291
      %4324 = vst [vmem:[%s224 + $0x38] sm:$0xff] %v4292
      %4325 = vst [vmem:[%s224 + $0x40] sm:$0xff] %v4293
      %4326 = vst [vmem:[%s224 + $0x48] sm:$0xff] %v4294
      %4327 = vst [vmem:[%s224 + $0x50] sm:$0xff] %v4295
      %4328 = vst [vmem:[%s224 + $0x58] sm:$0xff] %v4296
      %4329 = vst [vmem:[%s224 + $0x60] sm:$0xff] %v4297
      %4330 = vst [vmem:[%s224 + $0x68] sm:$0xff] %v4298
      %4331 = vst [vmem:[%s224 + $0x70] sm:$0xff] %v4299
      %4332 = vst [vmem:[%s224 + $0x78] sm:$0xff] %v4300
      %4333 = vst [vmem:[%s224 + $0x80] sm:$0xff] %v4301
      %4334 = vst [vmem:[%s224 + $0x88] sm:$0xff] %v4302
      %4335 = vst [vmem:[%s224 + $0x90] sm:$0xff] %v4303
      %4336 = vst [vmem:[%s224 + $0x98] sm:$0xff] %v4304
      %4337 = vst [vmem:[%s224 + $0xa0] sm:$0xff] %v4305
      %4338 = vst [vmem:[%s224 + $0xa8] sm:$0xff] %v4306
      %4339 = vst [vmem:[%s224 + $0xb0] sm:$0xff] %v4307
      %4340 = vst [vmem:[%s224 + $0xb8] sm:$0xff] %v4308
      %4341 = vst [vmem:[%s224 + $0xc0] sm:$0xff] %v4309
      %4342 = vst [vmem:[%s224 + $0xc8] sm:$0xff] %v4310
      %4343 = vst [vmem:[%s224 + $0xd0] sm:$0xff] %v4311
      %4344 = vst [vmem:[%s224 + $0xd8] sm:$0xff] %v4312
      %4345 = vst [vmem:[%s224 + $0xe0] sm:$0xff] %v4313
      %4346 = vst [vmem:[%s224 + $0xe8] sm:$0xff] %v4314
      %4347 = vst [vmem:[%s224 + $0xf0] sm:$0xff] %v4315
      %4348 = vst [vmem:[%s224 + $0xf8] sm:$0xff] %v4316
      %p4349 = scmp.lt.s32.totalorder %s16, 1
      %s4350 = scalar_select %p4349, %s16, 1
      %s4351 = smul.addr %s4350, 32
      %s4352 = smul.addr %s4351, 8
      %s4353 = scalar_lea.vmem %s5, %s4352
      // Predicated region
      $region41: #{residual_block_nchw.1} parent=39 // pred_check
        %p4354 = pneg %p144
      $region42: #{residual_block_nchw.1} parent=39 // pred_check_branch
        %4356 = sbr.rel (%p4354) target = $region44
      $region43: #{residual_block_nchw.1} parent=39 // pred_region
        _
      $region44: #{residual_block_nchw.1} parent=39 // pred_fallthru
        _
    $region40: #{residual_block_nchw.1} parent=5 // pred_fallthru
      _
    %p4357 = scmp.le.s32.totalorder 2, %s11
    // Predicated region
    $region45: #{residual_block_nchw.1} parent=5 // pred_check
      %p4358 = pneg %p4357
    $region46: #{residual_block_nchw.1} parent=5 // pred_check_branch
      %4360 = sbr.rel (%p4358) target = $region48
    $region47: #{residual_block_nchw.1} parent=5 // pred_region
      %s4361 = ssub.s32 %s11, 2
      // Predicated region
      $region49: #{residual_block_nchw.1} parent=47 // pred_check
        %p4362 = pneg %p150
      $region50: #{residual_block_nchw.1} parent=47 // pred_check_branch
        %4364 = sbr.rel (%p4362) target = $region52
      $region51: #{residual_block_nchw.1} parent=47 // pred_region
        %p4365 = scmp.lt.s32.totalorder %s17, 1
        %s4366 = scalar_select %p4365, %s17, 1
        %s4367 = smul.addr %s4366, 32
        %s4368 = smul.addr %s4367, 8
        %s4369 = scalar_lea.vmem %s5, %s4368
      $region52: #{residual_block_nchw.1} parent=47 // pred_fallthru
        _
    $region48: #{residual_block_nchw.1} parent=5 // pred_fallthru
      _
  $region6: #{residual_block_nchw.1} parent=0 // loop_footer
    %s15 = sadd.s32 1, %s11
  $region7: #{residual_block_nchw.1} parent=0 // loop_footer_branch
    %10 = sbr.rel target = $region3
  $region8: #{residual_block_nchw.1} parent=0 // loop_exit
    _

</llo_original>
